<compile_context>
chip_gen: v7x
topology: tpu7x:2x2x1
jax: 0.10.0
libtpu: 0.0.40
codegen_flags: <defaults>
</compile_context>

<pallas_src>
import functools

import jax
import jax.numpy as jnp
from jax.experimental import pallas as pl
from jax.experimental.pallas import tpu as pltpu


# ----------------------------------------------------------------------------
# Fused Pallas GEMM:  out = act( X @ W + b )     (bf16 inputs, f32 accumulate)
# ----------------------------------------------------------------------------

def _gemm_bias_act_kernel(x_ref, w_ref, b_ref, o_ref, acc_ref, *, activation):
    k = pl.program_id(2)

    @pl.when(k == 0)
    def _():
        acc_ref[...] = jnp.zeros_like(acc_ref)

    acc_ref[...] += jnp.dot(x_ref[...], w_ref[...],
                            preferred_element_type=jnp.float32)

    @pl.when(k == pl.num_programs(2) - 1)
    def _():
        y = acc_ref[...] + b_ref[...]              # (tm,tn) + (1,tn), f32
        if activation == "leaky_relu":
            y = jnp.where(y >= 0.0, y, 0.01 * y)   # nn.LeakyReLU(0.01)
        o_ref[...] = y.astype(o_ref.dtype)


def _round_up(x, m):
    return ((x + m - 1) // m) * m


def gemm_bias_act(x, w, b=None, *, activation=None, tm=256, tn=128, tk=512):
    """x: (M, K) f32, w: (K, N) f32, b: (N,) f32 or None -> (M, N) f32."""
    M, K = x.shape
    Kw, N = w.shape
    assert K == Kw

    # Tile sizes: bf16 operands need (16, 128)-aligned tiles; f32 out (8, 128).
    tm_e = min(tm, _round_up(M, 16))
    tn_e = min(tn, _round_up(N, 128))
    tk_e = min(tk, _round_up(K, 128))
    Mp = _round_up(M, tm_e)
    Np = _round_up(N, tn_e)        # lane-dense (>=128) output, sliced below
    Kp = _round_up(K, tk_e)

    # Zero-pad (zeros along K contribute nothing to the accumulation).
    xp = jnp.pad(x.astype(jnp.bfloat16), ((0, Mp - M), (0, Kp - K)))
    wp = jnp.pad(w.astype(jnp.bfloat16), ((0, Kp - K), (0, Np - N)))
    if b is None:
        bp = jnp.zeros((1, Np), jnp.float32)
    else:
        bp = jnp.pad(b.astype(jnp.float32), (0, Np - N)).reshape(1, Np)

    grid = (Mp // tm_e, Np // tn_e, Kp // tk_e)

    # Right-sized VMEM budget: double-buffered bf16 input tiles + double-buffered
    # f32 out tile + f32 accumulator, plus headroom for bias / internal scratch.
    vmem_limit = int(4 * (tm_e * tk_e + tk_e * tn_e)   # 2 bufs x bf16 x (x, w)
                     + 3 * 4 * tm_e * tn_e             # out (2 bufs) + acc, f32
                     + (4 << 20))                      # headroom

    out = pl.pallas_call(
        functools.partial(_gemm_bias_act_kernel, activation=activation),
        out_shape=jax.ShapeDtypeStruct((Mp, Np), jnp.float32),
        grid_spec=pltpu.PrefetchScalarGridSpec(
            num_scalar_prefetch=0,
            grid=grid,
            in_specs=[
                pl.BlockSpec((tm_e, tk_e), lambda i, j, k: (i, k)),
                pl.BlockSpec((tk_e, tn_e), lambda i, j, k: (k, j)),
                pl.BlockSpec((1, tn_e), lambda i, j, k: (0, j)),
            ],
            out_specs=pl.BlockSpec((tm_e, tn_e), lambda i, j, k: (i, j)),
            scratch_shapes=[pltpu.VMEM((tm_e, tn_e), jnp.float32)],
        ),
        compiler_params=pltpu.CompilerParams(
            dimension_semantics=("parallel", "parallel", "arbitrary"),
            vmem_limit_bytes=vmem_limit,
        ),
    )(xp, wp, bp)
    return out[:M, :N]


# ----------------------------------------------------------------------------
# Conv2d as im2col + fused Pallas GEMM.
# ----------------------------------------------------------------------------

def _im2col(x, kh, kw, stride, pad):
    """x: (N, C, H, W) -> (N, C*kh*kw, Ho, Wo), feature order (c, kh, kw)."""
    n, c, h, w = x.shape
    xp = jnp.pad(x, ((0, 0), (0, 0), (pad, pad), (pad, pad)))
    ho = (h + 2 * pad - kh) // stride + 1
    wo = (w + 2 * pad - kw) // stride + 1
    cols = []
    for i in range(kh):
        for j in range(kw):
            cols.append(xp[:, :, i:i + stride * ho:stride, j:j + stride * wo:stride])
    cols = jnp.stack(cols, axis=2)               # (N, C, kh*kw, Ho, Wo)
    return cols.reshape(n, c * kh * kw, ho, wo), ho, wo


def conv2d_pallas(x, w, b=None, *, stride=1, padding=0, activation=None):
    """NCHW conv via im2col + Pallas GEMM. w: (O, C, kh, kw) like PyTorch."""
    n, c, _, _ = x.shape
    o, cw, kh, kw = w.shape
    assert c == cw
    cols, ho, wo = _im2col(x, kh, kw, stride, padding)
    lhs = cols.transpose(0, 2, 3, 1).reshape(n * ho * wo, c * kh * kw)
    rhs = w.reshape(o, c * kh * kw).T            # same (c, kh, kw) flattening
    y = gemm_bias_act(lhs, rhs, b, activation=activation)
    return y.reshape(n, ho, wo, o).transpose(0, 3, 1, 2)


# ----------------------------------------------------------------------------
# Spectral norm (power iteration) — tiny matvecs, plain JAX.
# ----------------------------------------------------------------------------

def _l2normalize(v, eps=1e-12):
    return v / (jnp.linalg.norm(v) + eps)


def _sn_weight(w_bar, u, v):
    height = w_bar.shape[0]
    wm = w_bar.reshape(height, -1)
    v = _l2normalize(wm.T @ u)
    u = _l2normalize(wm @ v)
    sigma = u @ (wm @ v)
    return w_bar / sigma, u, v


# ----------------------------------------------------------------------------
# Discriminator parameters (deterministic stand-ins; no pretrained checkpoint).
# ----------------------------------------------------------------------------

def _init_sn_conv(key, in_c, out_c, k):
    k1, k2, k3, k4 = jax.random.split(key, 4)
    fan_in = in_c * k * k
    w_bar = jax.random.normal(k1, (out_c, in_c, k, k), jnp.float32) * jnp.sqrt(2.0 / fan_in)
    b = 0.01 * jax.random.normal(k2, (out_c,), jnp.float32)
    u = jax.random.normal(k3, (out_c,), jnp.float32)
    v = jax.random.normal(k4, (fan_in,), jnp.float32)
    # SpectralNorm.apply() runs one power iteration at construction (updates u, v).
    _, u, v = _sn_weight(w_bar, u, v)
    return {"w_bar": w_bar, "b": b, "u": u, "v": v}


def init_discriminator(key, image_size=224, conv_dim=64, repeat_num=5):
    keys = jax.random.split(key, repeat_num + 1)
    layers = []
    in_c, curr_dim = 3, conv_dim
    layers.append(_init_sn_conv(keys[0], in_c, curr_dim, 4))
    for i in range(1, repeat_num):
        layers.append(_init_sn_conv(keys[i], curr_dim, curr_dim * 2, 4))
        curr_dim *= 2
    ks = image_size // (2 ** repeat_num)
    fc_w = jax.random.normal(keys[repeat_num], (1, curr_dim, ks, ks), jnp.float32) \
        * jnp.sqrt(1.0 / (curr_dim * ks * ks))
    return {"main": layers, "fc_w": fc_w}


def discriminator_forward(x, params):
    h = x
    for layer in params["main"]:
        # Forward pre-hook: recompute spectrally-normalized weight each call.
        # TODO(synk): the in-place u/v buffer updates across repeated forwards
        # are not persisted here (functional forward); a single forward matches.
        w_sn, _, _ = _sn_weight(layer["w_bar"], layer["u"], layer["v"])
        h = conv2d_pallas(h, w_sn, layer["b"], stride=2, padding=1,
                          activation="leaky_relu")
    out = conv2d_pallas(h, params["fc_w"], None, stride=1, padding=0,
                        activation=None)          # (N, 1, 1, 1), bias=False
    return out.squeeze(-1).squeeze(-1)            # (N, 1)


if __name__ == "__main__":
    root = jax.random.PRNGKey(0)
    k_params, k_x = jax.random.split(root)

    # Small config consistent with the module: image_size divisible by 2**5.
    image_size, conv_dim, repeat_num = 32, 16, 5
    params = init_discriminator(k_params, image_size, conv_dim, repeat_num)

    x = jax.random.normal(k_x, (2, 3, image_size, image_size), jnp.float32)

    fwd = jax.jit(discriminator_forward)
    out = jax.block_until_ready(fwd(x, params))

    assert out.shape == (2, 1), out.shape
    assert bool(jnp.all(jnp.isfinite(out)))
    print("KERNEL_OK")
</pallas_src>

<mosaic_0001>
module attributes {stable_mosaic.version = 11 : i64} {
  func.func @_gemm_bias_act_kernel(%arg0: i32, %arg1: i32, %arg2: i32, %arg3: memref<256x128xbf16, #tpu.memory_space<vmem>>, %arg4: memref<128x128xbf16, #tpu.memory_space<vmem>>, %arg5: memref<1x128xf32, #tpu.memory_space<vmem>>, %arg6: memref<256x128xf32, #tpu.memory_space<vmem>>, %arg7: memref<256x128xf32, #tpu.memory_space<vmem>>) attributes {dimension_semantics = [#tpu.dimension_semantics<parallel>, #tpu.dimension_semantics<parallel>, #tpu.dimension_semantics<arbitrary>], iteration_bounds = array<i64: 2, 1, 1>, scalar_prefetch = 0 : i64, scratch_operands = 1 : i64, tpu.core_type = #tpu.core_type<tc>, window_params = [{transform_indices = @transform_0, window_bounds = array<i64: 256, 128>}, {transform_indices = @transform_1, window_bounds = array<i64: 128, 128>}, {transform_indices = @transform_2, window_bounds = array<i64: 1, 128>}, {transform_indices = @transform_3, window_bounds = array<i64: 256, 128>}]} {
    %c0_i32 = arith.constant 0 : i32
    %0 = arith.cmpi eq, %arg2, %c0_i32 : i32
    %1 = arith.extui %0 : i1 to i32
    %c0_i32_0 = arith.constant 0 : i32
    %2 = arith.cmpi ne, %1, %c0_i32_0 : i32
    scf.if %2 {
      %cst_10 = arith.constant 0.000000e+00 : f32
      %12 = vector.broadcast %cst_10 : f32 to vector<256x128xf32>
      %c0_11 = arith.constant 0 : index
      %c0_12 = arith.constant 0 : index
      %13 = vector.load %arg7[%c0_11, %c0_12] : memref<256x128xf32, #tpu.memory_space<vmem>>, vector<256x128xf32>
      tpu.vector_store %arg7[%c0_11, %c0_12], %12 {strides = array<i32>} : memref<256x128xf32, #tpu.memory_space<vmem>>, vector<256x128xf32>,
    } else {
    }
    %c0 = arith.constant 0 : index
    %c0_1 = arith.constant 0 : index
    %3 = vector.load %arg7[%c0, %c0_1] : memref<256x128xf32, #tpu.memory_space<vmem>>, vector<256x128xf32>
    %c0_2 = arith.constant 0 : index
    %c0_3 = arith.constant 0 : index
    %4 = vector.load %arg3[%c0_2, %c0_3] : memref<256x128xbf16, #tpu.memory_space<vmem>>, vector<256x128xbf16>
    %c0_4 = arith.constant 0 : index
    %c0_5 = arith.constant 0 : index
    %5 = vector.load %arg4[%c0_4, %c0_5] : memref<128x128xbf16, #tpu.memory_space<vmem>>, vector<128x128xbf16>
    %cst = arith.constant dense<0.000000e+00> : vector<256x128xf32>
    %6 = tpu.matmul %4, %5, %cst {dimension_numbers = #tpu.dot_dimension_numbers<[1], [0], [0], [1], [0, 0, 1, 1], [], []>} : vector<256x128xbf16>, vector<128x128xbf16>, vector<256x128xf32> -> vector<256x128xf32>
    %7 = arith.addf %3, %6 : vector<256x128xf32>
    %c0_6 = arith.constant 0 : index
    %c0_7 = arith.constant 0 : index
    %8 = vector.load %arg7[%c0_6, %c0_7] : memref<256x128xf32, #tpu.memory_space<vmem>>, vector<256x128xf32>
    tpu.vector_store %arg7[%c0_6, %c0_7], %7 {strides = array<i32>} : memref<256x128xf32, #tpu.memory_space<vmem>>, vector<256x128xf32>,
    %c0_i32_8 = arith.constant 0 : i32
    %9 = arith.cmpi eq, %arg2, %c0_i32_8 : i32
    %10 = arith.extui %9 : i1 to i32
    %c0_i32_9 = arith.constant 0 : i32
    %11 = arith.cmpi ne, %10, %c0_i32_9 : i32
    scf.if %11 {
      %c0_10 = arith.constant 0 : index
      %c0_11 = arith.constant 0 : index
      %12 = vector.load %arg7[%c0_10, %c0_11] : memref<256x128xf32, #tpu.memory_space<vmem>>, vector<256x128xf32>
      %c0_12 = arith.constant 0 : index
      %c0_13 = arith.constant 0 : index
      %13 = vector.load %arg5[%c0_12, %c0_13] : memref<1x128xf32, #tpu.memory_space<vmem>>, vector<1x128xf32>
      %14 = vector.broadcast %13 : vector<1x128xf32> to vector<256x128xf32>
      %15 = arith.addf %12, %14 : vector<256x128xf32>
      %cst_14 = arith.constant 0.000000e+00 : f32
      %16 = vector.broadcast %cst_14 : f32 to vector<256x128xf32>
      %17 = arith.cmpf oge, %15, %16 : vector<256x128xf32>
      %cst_15 = arith.constant 0.00999999977 : f32
      %18 = vector.broadcast %cst_15 : f32 to vector<256x128xf32>
      %19 = arith.mulf %18, %15 : vector<256x128xf32>
      %20 = arith.select %17, %15, %19 : vector<256x128xi1>, vector<256x128xf32>
      %c0_16 = arith.constant 0 : index
      %c0_17 = arith.constant 0 : index
      %21 = vector.load %arg6[%c0_16, %c0_17] : memref<256x128xf32, #tpu.memory_space<vmem>>, vector<256x128xf32>
      tpu.vector_store %arg6[%c0_16, %c0_17], %20 {strides = array<i32>} : memref<256x128xf32, #tpu.memory_space<vmem>>, vector<256x128xf32>,
    } else {
    }
    return
  }
  func.func @transform_0(%arg0: i32, %arg1: i32, %arg2: i32) -> (i32, i32) {
    %c0_i32 = arith.constant 0 : i32
    return %arg0, %arg2 : i32, i32
  }
  func.func @transform_1(%arg0: i32, %arg1: i32, %arg2: i32) -> (i32, i32) {
    %c0_i32 = arith.constant 0 : i32
    return %arg2, %arg1 : i32, i32
  }
  func.func @transform_2(%arg0: i32, %arg1: i32, %arg2: i32) -> (i32, i32) {
    %c0_i32 = arith.constant 0 : i32
    %c0_i32_0 = arith.constant 0 : i32
    return %c0_i32, %arg1 : i32, i32
  }
  func.func @transform_3(%arg0: i32, %arg1: i32, %arg2: i32) -> (i32, i32) {
    %c0_i32 = arith.constant 0 : i32
    return %arg0, %arg1 : i32, i32
  }
}

module attributes {stable_mosaic.version = 11 : i64} {
  func.func @_gemm_bias_act_kernel(%arg0: i32, %arg1: i32, %arg2: i32, %arg3: memref<128x256xbf16, #tpu.memory_space<vmem>>, %arg4: memref<256x128xbf16, #tpu.memory_space<vmem>>, %arg5: memref<1x128xf32, #tpu.memory_space<vmem>>, %arg6: memref<128x128xf32, #tpu.memory_space<vmem>>, %arg7: memref<128x128xf32, #tpu.memory_space<vmem>>) attributes {dimension_semantics = [#tpu.dimension_semantics<parallel>, #tpu.dimension_semantics<parallel>, #tpu.dimension_semantics<arbitrary>], iteration_bounds = array<i64: 1, 1, 1>, scalar_prefetch = 0 : i64, scratch_operands = 1 : i64, tpu.core_type = #tpu.core_type<tc>, window_params = [{transform_indices = @transform_0, window_bounds = array<i64: 128, 256>}, {transform_indices = @transform_1, window_bounds = array<i64: 256, 128>}, {transform_indices = @transform_2, window_bounds = array<i64: 1, 128>}, {transform_indices = @transform_3, window_bounds = array<i64: 128, 128>}]} {
    %c0_i32 = arith.constant 0 : i32
    %0 = arith.cmpi eq, %arg2, %c0_i32 : i32
    %1 = arith.extui %0 : i1 to i32
    %c0_i32_0 = arith.constant 0 : i32
    %2 = arith.cmpi ne, %1, %c0_i32_0 : i32
    scf.if %2 {
      %cst_10 = arith.constant 0.000000e+00 : f32
      %12 = vector.broadcast %cst_10 : f32 to vector<128x128xf32>
      %c0_11 = arith.constant 0 : index
      %c0_12 = arith.constant 0 : index
      %13 = vector.load %arg7[%c0_11, %c0_12] : memref<128x128xf32, #tpu.memory_space<vmem>>, vector<128x128xf32>
      tpu.vector_store %arg7[%c0_11, %c0_12], %12 {strides = array<i32>} : memref<128x128xf32, #tpu.memory_space<vmem>>, vector<128x128xf32>,
    } else {
    }
    %c0 = arith.constant 0 : index
    %c0_1 = arith.constant 0 : index
    %3 = vector.load %arg7[%c0, %c0_1] : memref<128x128xf32, #tpu.memory_space<vmem>>, vector<128x128xf32>
    %c0_2 = arith.constant 0 : index
    %c0_3 = arith.constant 0 : index
    %4 = vector.load %arg3[%c0_2, %c0_3] : memref<128x256xbf16, #tpu.memory_space<vmem>>, vector<128x256xbf16>
    %c0_4 = arith.constant 0 : index
    %c0_5 = arith.constant 0 : index
    %5 = vector.load %arg4[%c0_4, %c0_5] : memref<256x128xbf16, #tpu.memory_space<vmem>>, vector<256x128xbf16>
    %cst = arith.constant dense<0.000000e+00> : vector<128x128xf32>
    %6 = tpu.matmul %4, %5, %cst {dimension_numbers = #tpu.dot_dimension_numbers<[1], [0], [0], [1], [0, 0, 1, 1], [], []>} : vector<128x256xbf16>, vector<256x128xbf16>, vector<128x128xf32> -> vector<128x128xf32>
    %7 = arith.addf %3, %6 : vector<128x128xf32>
    %c0_6 = arith.constant 0 : index
    %c0_7 = arith.constant 0 : index
    %8 = vector.load %arg7[%c0_6, %c0_7] : memref<128x128xf32, #tpu.memory_space<vmem>>, vector<128x128xf32>
    tpu.vector_store %arg7[%c0_6, %c0_7], %7 {strides = array<i32>} : memref<128x128xf32, #tpu.memory_space<vmem>>, vector<128x128xf32>,
    %c0_i32_8 = arith.constant 0 : i32
    %9 = arith.cmpi eq, %arg2, %c0_i32_8 : i32
    %10 = arith.extui %9 : i1 to i32
    %c0_i32_9 = arith.constant 0 : i32
    %11 = arith.cmpi ne, %10, %c0_i32_9 : i32
    scf.if %11 {
      %c0_10 = arith.constant 0 : index
      %c0_11 = arith.constant 0 : index
      %12 = vector.load %arg7[%c0_10, %c0_11] : memref<128x128xf32, #tpu.memory_space<vmem>>, vector<128x128xf32>
      %c0_12 = arith.constant 0 : index
      %c0_13 = arith.constant 0 : index
      %13 = vector.load %arg5[%c0_12, %c0_13] : memref<1x128xf32, #tpu.memory_space<vmem>>, vector<1x128xf32>
      %14 = vector.broadcast %13 : vector<1x128xf32> to vector<128x128xf32>
      %15 = arith.addf %12, %14 : vector<128x128xf32>
      %cst_14 = arith.constant 0.000000e+00 : f32
      %16 = vector.broadcast %cst_14 : f32 to vector<128x128xf32>
      %17 = arith.cmpf oge, %15, %16 : vector<128x128xf32>
      %cst_15 = arith.constant 0.00999999977 : f32
      %18 = vector.broadcast %cst_15 : f32 to vector<128x128xf32>
      %19 = arith.mulf %18, %15 : vector<128x128xf32>
      %20 = arith.select %17, %15, %19 : vector<128x128xi1>, vector<128x128xf32>
      %c0_16 = arith.constant 0 : index
      %c0_17 = arith.constant 0 : index
      %21 = vector.load %arg6[%c0_16, %c0_17] : memref<128x128xf32, #tpu.memory_space<vmem>>, vector<128x128xf32>
      tpu.vector_store %arg6[%c0_16, %c0_17], %20 {strides = array<i32>} : memref<128x128xf32, #tpu.memory_space<vmem>>, vector<128x128xf32>,
    } else {
    }
    return
  }
  func.func @transform_0(%arg0: i32, %arg1: i32, %arg2: i32) -> (i32, i32) {
    %c0_i32 = arith.constant 0 : i32
    return %arg0, %arg2 : i32, i32
  }
  func.func @transform_1(%arg0: i32, %arg1: i32, %arg2: i32) -> (i32, i32) {
    %c0_i32 = arith.constant 0 : i32
    return %arg2, %arg1 : i32, i32
  }
  func.func @transform_2(%arg0: i32, %arg1: i32, %arg2: i32) -> (i32, i32) {
    %c0_i32 = arith.constant 0 : i32
    %c0_i32_0 = arith.constant 0 : i32
    return %c0_i32, %arg1 : i32, i32
  }
  func.func @transform_3(%arg0: i32, %arg1: i32, %arg2: i32) -> (i32, i32) {
    %c0_i32 = arith.constant 0 : i32
    return %arg0, %arg1 : i32, i32
  }
}

module attributes {stable_mosaic.version = 11 : i64} {
  func.func @_gemm_bias_act_kernel(%arg0: i32, %arg1: i32, %arg2: i32, %arg3: memref<32x512xbf16, #tpu.memory_space<vmem>>, %arg4: memref<512x128xbf16, #tpu.memory_space<vmem>>, %arg5: memref<1x128xf32, #tpu.memory_space<vmem>>, %arg6: memref<32x128xf32, #tpu.memory_space<vmem>>, %arg7: memref<32x128xf32, #tpu.memory_space<vmem>>) attributes {dimension_semantics = [#tpu.dimension_semantics<parallel>, #tpu.dimension_semantics<parallel>, #tpu.dimension_semantics<arbitrary>], iteration_bounds = array<i64: 1, 1, 1>, scalar_prefetch = 0 : i64, scratch_operands = 1 : i64, tpu.core_type = #tpu.core_type<tc>, window_params = [{transform_indices = @transform_0, window_bounds = array<i64: 32, 512>}, {transform_indices = @transform_1, window_bounds = array<i64: 512, 128>}, {transform_indices = @transform_2, window_bounds = array<i64: 1, 128>}, {transform_indices = @transform_3, window_bounds = array<i64: 32, 128>}]} {
    %c0_i32 = arith.constant 0 : i32
    %0 = arith.cmpi eq, %arg2, %c0_i32 : i32
    %1 = arith.extui %0 : i1 to i32
    %c0_i32_0 = arith.constant 0 : i32
    %2 = arith.cmpi ne, %1, %c0_i32_0 : i32
    scf.if %2 {
      %cst_10 = arith.constant 0.000000e+00 : f32
      %12 = vector.broadcast %cst_10 : f32 to vector<32x128xf32>
      %c0_11 = arith.constant 0 : index
      %c0_12 = arith.constant 0 : index
      %13 = vector.load %arg7[%c0_11, %c0_12] : memref<32x128xf32, #tpu.memory_space<vmem>>, vector<32x128xf32>
      tpu.vector_store %arg7[%c0_11, %c0_12], %12 {strides = array<i32>} : memref<32x128xf32, #tpu.memory_space<vmem>>, vector<32x128xf32>,
    } else {
    }
    %c0 = arith.constant 0 : index
    %c0_1 = arith.constant 0 : index
    %3 = vector.load %arg7[%c0, %c0_1] : memref<32x128xf32, #tpu.memory_space<vmem>>, vector<32x128xf32>
    %c0_2 = arith.constant 0 : index
    %c0_3 = arith.constant 0 : index
    %4 = vector.load %arg3[%c0_2, %c0_3] : memref<32x512xbf16, #tpu.memory_space<vmem>>, vector<32x512xbf16>
    %c0_4 = arith.constant 0 : index
    %c0_5 = arith.constant 0 : index
    %5 = vector.load %arg4[%c0_4, %c0_5] : memref<512x128xbf16, #tpu.memory_space<vmem>>, vector<512x128xbf16>
    %cst = arith.constant dense<0.000000e+00> : vector<32x128xf32>
    %6 = tpu.matmul %4, %5, %cst {dimension_numbers = #tpu.dot_dimension_numbers<[1], [0], [0], [1], [0, 0, 1, 1], [], []>} : vector<32x512xbf16>, vector<512x128xbf16>, vector<32x128xf32> -> vector<32x128xf32>
    %7 = arith.addf %3, %6 : vector<32x128xf32>
    %c0_6 = arith.constant 0 : index
    %c0_7 = arith.constant 0 : index
    %8 = vector.load %arg7[%c0_6, %c0_7] : memref<32x128xf32, #tpu.memory_space<vmem>>, vector<32x128xf32>
    tpu.vector_store %arg7[%c0_6, %c0_7], %7 {strides = array<i32>} : memref<32x128xf32, #tpu.memory_space<vmem>>, vector<32x128xf32>,
    %c0_i32_8 = arith.constant 0 : i32
    %9 = arith.cmpi eq, %arg2, %c0_i32_8 : i32
    %10 = arith.extui %9 : i1 to i32
    %c0_i32_9 = arith.constant 0 : i32
    %11 = arith.cmpi ne, %10, %c0_i32_9 : i32
    scf.if %11 {
      %c0_10 = arith.constant 0 : index
      %c0_11 = arith.constant 0 : index
      %12 = vector.load %arg7[%c0_10, %c0_11] : memref<32x128xf32, #tpu.memory_space<vmem>>, vector<32x128xf32>
      %c0_12 = arith.constant 0 : index
      %c0_13 = arith.constant 0 : index
      %13 = vector.load %arg5[%c0_12, %c0_13] : memref<1x128xf32, #tpu.memory_space<vmem>>, vector<1x128xf32>
      %14 = vector.broadcast %13 : vector<1x128xf32> to vector<32x128xf32>
      %15 = arith.addf %12, %14 : vector<32x128xf32>
      %cst_14 = arith.constant 0.000000e+00 : f32
      %16 = vector.broadcast %cst_14 : f32 to vector<32x128xf32>
      %17 = arith.cmpf oge, %15, %16 : vector<32x128xf32>
      %cst_15 = arith.constant 0.00999999977 : f32
      %18 = vector.broadcast %cst_15 : f32 to vector<32x128xf32>
      %19 = arith.mulf %18, %15 : vector<32x128xf32>
      %20 = arith.select %17, %15, %19 : vector<32x128xi1>, vector<32x128xf32>
      %c0_16 = arith.constant 0 : index
      %c0_17 = arith.constant 0 : index
      %21 = vector.load %arg6[%c0_16, %c0_17] : memref<32x128xf32, #tpu.memory_space<vmem>>, vector<32x128xf32>
      tpu.vector_store %arg6[%c0_16, %c0_17], %20 {strides = array<i32>} : memref<32x128xf32, #tpu.memory_space<vmem>>, vector<32x128xf32>,
    } else {
    }
    return
  }
  func.func @transform_0(%arg0: i32, %arg1: i32, %arg2: i32) -> (i32, i32) {
    %c0_i32 = arith.constant 0 : i32
    return %arg0, %arg2 : i32, i32
  }
  func.func @transform_1(%arg0: i32, %arg1: i32, %arg2: i32) -> (i32, i32) {
    %c0_i32 = arith.constant 0 : i32
    return %arg2, %arg1 : i32, i32
  }
  func.func @transform_2(%arg0: i32, %arg1: i32, %arg2: i32) -> (i32, i32) {
    %c0_i32 = arith.constant 0 : i32
    %c0_i32_0 = arith.constant 0 : i32
    return %c0_i32, %arg1 : i32, i32
  }
  func.func @transform_3(%arg0: i32, %arg1: i32, %arg2: i32) -> (i32, i32) {
    %c0_i32 = arith.constant 0 : i32
    return %arg0, %arg1 : i32, i32
  }
}

module attributes {stable_mosaic.version = 11 : i64} {
  func.func @_gemm_bias_act_kernel(%arg0: i32, %arg1: i32, %arg2: i32, %arg3: memref<16x512xbf16, #tpu.memory_space<vmem>>, %arg4: memref<512x128xbf16, #tpu.memory_space<vmem>>, %arg5: memref<1x128xf32, #tpu.memory_space<vmem>>, %arg6: memref<16x128xf32, #tpu.memory_space<vmem>>, %arg7: memref<16x128xf32, #tpu.memory_space<vmem>>) attributes {dimension_semantics = [#tpu.dimension_semantics<parallel>, #tpu.dimension_semantics<parallel>, #tpu.dimension_semantics<arbitrary>], iteration_bounds = array<i64: 1, 1, 2>, scalar_prefetch = 0 : i64, scratch_operands = 1 : i64, tpu.core_type = #tpu.core_type<tc>, window_params = [{transform_indices = @transform_0, window_bounds = array<i64: 16, 512>}, {transform_indices = @transform_1, window_bounds = array<i64: 512, 128>}, {transform_indices = @transform_2, window_bounds = array<i64: 1, 128>}, {transform_indices = @transform_3, window_bounds = array<i64: 16, 128>}]} {
    %c0_i32 = arith.constant 0 : i32
    %0 = arith.cmpi eq, %arg2, %c0_i32 : i32
    %1 = arith.extui %0 : i1 to i32
    %c0_i32_0 = arith.constant 0 : i32
    %2 = arith.cmpi ne, %1, %c0_i32_0 : i32
    scf.if %2 {
      %cst_9 = arith.constant 0.000000e+00 : f32
      %12 = vector.broadcast %cst_9 : f32 to vector<16x128xf32>
      %c0_10 = arith.constant 0 : index
      %c0_11 = arith.constant 0 : index
      %13 = vector.load %arg7[%c0_10, %c0_11] : memref<16x128xf32, #tpu.memory_space<vmem>>, vector<16x128xf32>
      tpu.vector_store %arg7[%c0_10, %c0_11], %12 {strides = array<i32>} : memref<16x128xf32, #tpu.memory_space<vmem>>, vector<16x128xf32>,
    } else {
    }
    %c0 = arith.constant 0 : index
    %c0_1 = arith.constant 0 : index
    %3 = vector.load %arg7[%c0, %c0_1] : memref<16x128xf32, #tpu.memory_space<vmem>>, vector<16x128xf32>
    %c0_2 = arith.constant 0 : index
    %c0_3 = arith.constant 0 : index
    %4 = vector.load %arg3[%c0_2, %c0_3] : memref<16x512xbf16, #tpu.memory_space<vmem>>, vector<16x512xbf16>
    %c0_4 = arith.constant 0 : index
    %c0_5 = arith.constant 0 : index
    %5 = vector.load %arg4[%c0_4, %c0_5] : memref<512x128xbf16, #tpu.memory_space<vmem>>, vector<512x128xbf16>
    %cst = arith.constant dense<0.000000e+00> : vector<16x128xf32>
    %6 = tpu.matmul %4, %5, %cst {dimension_numbers = #tpu.dot_dimension_numbers<[1], [0], [0], [1], [0, 0, 1, 1], [], []>} : vector<16x512xbf16>, vector<512x128xbf16>, vector<16x128xf32> -> vector<16x128xf32>
    %7 = arith.addf %3, %6 : vector<16x128xf32>
    %c0_6 = arith.constant 0 : index
    %c0_7 = arith.constant 0 : index
    %8 = vector.load %arg7[%c0_6, %c0_7] : memref<16x128xf32, #tpu.memory_space<vmem>>, vector<16x128xf32>
    tpu.vector_store %arg7[%c0_6, %c0_7], %7 {strides = array<i32>} : memref<16x128xf32, #tpu.memory_space<vmem>>, vector<16x128xf32>,
    %c1_i32 = arith.constant 1 : i32
    %9 = arith.cmpi eq, %arg2, %c1_i32 : i32
    %10 = arith.extui %9 : i1 to i32
    %c0_i32_8 = arith.constant 0 : i32
    %11 = arith.cmpi ne, %10, %c0_i32_8 : i32
    scf.if %11 {
      %c0_9 = arith.constant 0 : index
      %c0_10 = arith.constant 0 : index
      %12 = vector.load %arg7[%c0_9, %c0_10] : memref<16x128xf32, #tpu.memory_space<vmem>>, vector<16x128xf32>
      %c0_11 = arith.constant 0 : index
      %c0_12 = arith.constant 0 : index
      %13 = vector.load %arg5[%c0_11, %c0_12] : memref<1x128xf32, #tpu.memory_space<vmem>>, vector<1x128xf32>
      %14 = vector.broadcast %13 : vector<1x128xf32> to vector<16x128xf32>
      %15 = arith.addf %12, %14 : vector<16x128xf32>
      %cst_13 = arith.constant 0.000000e+00 : f32
      %16 = vector.broadcast %cst_13 : f32 to vector<16x128xf32>
      %17 = arith.cmpf oge, %15, %16 : vector<16x128xf32>
      %cst_14 = arith.constant 0.00999999977 : f32
      %18 = vector.broadcast %cst_14 : f32 to vector<16x128xf32>
      %19 = arith.mulf %18, %15 : vector<16x128xf32>
      %20 = arith.select %17, %15, %19 : vector<16x128xi1>, vector<16x128xf32>
      %c0_15 = arith.constant 0 : index
      %c0_16 = arith.constant 0 : index
      %21 = vector.load %arg6[%c0_15, %c0_16] : memref<16x128xf32, #tpu.memory_space<vmem>>, vector<16x128xf32>
      tpu.vector_store %arg6[%c0_15, %c0_16], %20 {strides = array<i32>} : memref<16x128xf32, #tpu.memory_space<vmem>>, vector<16x128xf32>,
    } else {
    }
    return
  }
  func.func @transform_0(%arg0: i32, %arg1: i32, %arg2: i32) -> (i32, i32) {
    %c0_i32 = arith.constant 0 : i32
    return %arg0, %arg2 : i32, i32
  }
  func.func @transform_1(%arg0: i32, %arg1: i32, %arg2: i32) -> (i32, i32) {
    %c0_i32 = arith.constant 0 : i32
    return %arg2, %arg1 : i32, i32
  }
  func.func @transform_2(%arg0: i32, %arg1: i32, %arg2: i32) -> (i32, i32) {
    %c0_i32 = arith.constant 0 : i32
    %c0_i32_0 = arith.constant 0 : i32
    return %c0_i32, %arg1 : i32, i32
  }
  func.func @transform_3(%arg0: i32, %arg1: i32, %arg2: i32) -> (i32, i32) {
    %c0_i32 = arith.constant 0 : i32
    return %arg0, %arg1 : i32, i32
  }
}

module attributes {stable_mosaic.version = 11 : i64} {
  func.func @_gemm_bias_act_kernel(%arg0: i32, %arg1: i32, %arg2: i32, %arg3: memref<16x512xbf16, #tpu.memory_space<vmem>>, %arg4: memref<512x128xbf16, #tpu.memory_space<vmem>>, %arg5: memref<1x128xf32, #tpu.memory_space<vmem>>, %arg6: memref<16x128xf32, #tpu.memory_space<vmem>>, %arg7: memref<16x128xf32, #tpu.memory_space<vmem>>) attributes {dimension_semantics = [#tpu.dimension_semantics<parallel>, #tpu.dimension_semantics<parallel>, #tpu.dimension_semantics<arbitrary>], iteration_bounds = array<i64: 1, 2, 4>, scalar_prefetch = 0 : i64, scratch_operands = 1 : i64, tpu.core_type = #tpu.core_type<tc>, window_params = [{transform_indices = @transform_0, window_bounds = array<i64: 16, 512>}, {transform_indices = @transform_1, window_bounds = array<i64: 512, 128>}, {transform_indices = @transform_2, window_bounds = array<i64: 1, 128>}, {transform_indices = @transform_3, window_bounds = array<i64: 16, 128>}]} {
    %c0_i32 = arith.constant 0 : i32
    %0 = arith.cmpi eq, %arg2, %c0_i32 : i32
    %1 = arith.extui %0 : i1 to i32
    %c0_i32_0 = arith.constant 0 : i32
    %2 = arith.cmpi ne, %1, %c0_i32_0 : i32
    scf.if %2 {
      %cst_9 = arith.constant 0.000000e+00 : f32
      %12 = vector.broadcast %cst_9 : f32 to vector<16x128xf32>
      %c0_10 = arith.constant 0 : index
      %c0_11 = arith.constant 0 : index
      %13 = vector.load %arg7[%c0_10, %c0_11] : memref<16x128xf32, #tpu.memory_space<vmem>>, vector<16x128xf32>
      tpu.vector_store %arg7[%c0_10, %c0_11], %12 {strides = array<i32>} : memref<16x128xf32, #tpu.memory_space<vmem>>, vector<16x128xf32>,
    } else {
    }
    %c0 = arith.constant 0 : index
    %c0_1 = arith.constant 0 : index
    %3 = vector.load %arg7[%c0, %c0_1] : memref<16x128xf32, #tpu.memory_space<vmem>>, vector<16x128xf32>
    %c0_2 = arith.constant 0 : index
    %c0_3 = arith.constant 0 : index
    %4 = vector.load %arg3[%c0_2, %c0_3] : memref<16x512xbf16, #tpu.memory_space<vmem>>, vector<16x512xbf16>
    %c0_4 = arith.constant 0 : index
    %c0_5 = arith.constant 0 : index
    %5 = vector.load %arg4[%c0_4, %c0_5] : memref<512x128xbf16, #tpu.memory_space<vmem>>, vector<512x128xbf16>
    %cst = arith.constant dense<0.000000e+00> : vector<16x128xf32>
    %6 = tpu.matmul %4, %5, %cst {dimension_numbers = #tpu.dot_dimension_numbers<[1], [0], [0], [1], [0, 0, 1, 1], [], []>} : vector<16x512xbf16>, vector<512x128xbf16>, vector<16x128xf32> -> vector<16x128xf32>
    %7 = arith.addf %3, %6 : vector<16x128xf32>
    %c0_6 = arith.constant 0 : index
    %c0_7 = arith.constant 0 : index
    %8 = vector.load %arg7[%c0_6, %c0_7] : memref<16x128xf32, #tpu.memory_space<vmem>>, vector<16x128xf32>
    tpu.vector_store %arg7[%c0_6, %c0_7], %7 {strides = array<i32>} : memref<16x128xf32, #tpu.memory_space<vmem>>, vector<16x128xf32>,
    %c3_i32 = arith.constant 3 : i32
    %9 = arith.cmpi eq, %arg2, %c3_i32 : i32
    %10 = arith.extui %9 : i1 to i32
    %c0_i32_8 = arith.constant 0 : i32
    %11 = arith.cmpi ne, %10, %c0_i32_8 : i32
    scf.if %11 {
      %c0_9 = arith.constant 0 : index
      %c0_10 = arith.constant 0 : index
      %12 = vector.load %arg7[%c0_9, %c0_10] : memref<16x128xf32, #tpu.memory_space<vmem>>, vector<16x128xf32>
      %c0_11 = arith.constant 0 : index
      %c0_12 = arith.constant 0 : index
      %13 = vector.load %arg5[%c0_11, %c0_12] : memref<1x128xf32, #tpu.memory_space<vmem>>, vector<1x128xf32>
      %14 = vector.broadcast %13 : vector<1x128xf32> to vector<16x128xf32>
      %15 = arith.addf %12, %14 : vector<16x128xf32>
      %cst_13 = arith.constant 0.000000e+00 : f32
      %16 = vector.broadcast %cst_13 : f32 to vector<16x128xf32>
      %17 = arith.cmpf oge, %15, %16 : vector<16x128xf32>
      %cst_14 = arith.constant 0.00999999977 : f32
      %18 = vector.broadcast %cst_14 : f32 to vector<16x128xf32>
      %19 = arith.mulf %18, %15 : vector<16x128xf32>
      %20 = arith.select %17, %15, %19 : vector<16x128xi1>, vector<16x128xf32>
      %c0_15 = arith.constant 0 : index
      %c0_16 = arith.constant 0 : index
      %21 = vector.load %arg6[%c0_15, %c0_16] : memref<16x128xf32, #tpu.memory_space<vmem>>, vector<16x128xf32>
      tpu.vector_store %arg6[%c0_15, %c0_16], %20 {strides = array<i32>} : memref<16x128xf32, #tpu.memory_space<vmem>>, vector<16x128xf32>,
    } else {
    }
    return
  }
  func.func @transform_0(%arg0: i32, %arg1: i32, %arg2: i32) -> (i32, i32) {
    %c0_i32 = arith.constant 0 : i32
    return %arg0, %arg2 : i32, i32
  }
  func.func @transform_1(%arg0: i32, %arg1: i32, %arg2: i32) -> (i32, i32) {
    %c0_i32 = arith.constant 0 : i32
    return %arg2, %arg1 : i32, i32
  }
  func.func @transform_2(%arg0: i32, %arg1: i32, %arg2: i32) -> (i32, i32) {
    %c0_i32 = arith.constant 0 : i32
    %c0_i32_0 = arith.constant 0 : i32
    return %c0_i32, %arg1 : i32, i32
  }
  func.func @transform_3(%arg0: i32, %arg1: i32, %arg2: i32) -> (i32, i32) {
    %c0_i32 = arith.constant 0 : i32
    return %arg0, %arg1 : i32, i32
  }
}

module attributes {stable_mosaic.version = 11 : i64} {
  func.func @_gemm_bias_act_kernel(%arg0: i32, %arg1: i32, %arg2: i32, %arg3: memref<16x256xbf16, #tpu.memory_space<vmem>>, %arg4: memref<256x128xbf16, #tpu.memory_space<vmem>>, %arg5: memref<1x128xf32, #tpu.memory_space<vmem>>, %arg6: memref<16x128xf32, #tpu.memory_space<vmem>>, %arg7: memref<16x128xf32, #tpu.memory_space<vmem>>) attributes {dimension_semantics = [#tpu.dimension_semantics<parallel>, #tpu.dimension_semantics<parallel>, #tpu.dimension_semantics<arbitrary>], iteration_bounds = array<i64: 1, 1, 1>, scalar_prefetch = 0 : i64, scratch_operands = 1 : i64, tpu.core_type = #tpu.core_type<tc>, window_params = [{transform_indices = @transform_0, window_bounds = array<i64: 16, 256>}, {transform_indices = @transform_1, window_bounds = array<i64: 256, 128>}, {transform_indices = @transform_2, window_bounds = array<i64: 1, 128>}, {transform_indices = @transform_3, window_bounds = array<i64: 16, 128>}]} {
    %c0_i32 = arith.constant 0 : i32
    %0 = arith.cmpi eq, %arg2, %c0_i32 : i32
    %1 = arith.extui %0 : i1 to i32
    %c0_i32_0 = arith.constant 0 : i32
    %2 = arith.cmpi ne, %1, %c0_i32_0 : i32
    scf.if %2 {
      %cst_10 = arith.constant 0.000000e+00 : f32
      %12 = vector.broadcast %cst_10 : f32 to vector<16x128xf32>
      %c0_11 = arith.constant 0 : index
      %c0_12 = arith.constant 0 : index
      %13 = vector.load %arg7[%c0_11, %c0_12] : memref<16x128xf32, #tpu.memory_space<vmem>>, vector<16x128xf32>
      tpu.vector_store %arg7[%c0_11, %c0_12], %12 {strides = array<i32>} : memref<16x128xf32, #tpu.memory_space<vmem>>, vector<16x128xf32>,
    } else {
    }
    %c0 = arith.constant 0 : index
    %c0_1 = arith.constant 0 : index
    %3 = vector.load %arg7[%c0, %c0_1] : memref<16x128xf32, #tpu.memory_space<vmem>>, vector<16x128xf32>
    %c0_2 = arith.constant 0 : index
    %c0_3 = arith.constant 0 : index
    %4 = vector.load %arg3[%c0_2, %c0_3] : memref<16x256xbf16, #tpu.memory_space<vmem>>, vector<16x256xbf16>
    %c0_4 = arith.constant 0 : index
    %c0_5 = arith.constant 0 : index
    %5 = vector.load %arg4[%c0_4, %c0_5] : memref<256x128xbf16, #tpu.memory_space<vmem>>, vector<256x128xbf16>
    %cst = arith.constant dense<0.000000e+00> : vector<16x128xf32>
    %6 = tpu.matmul %4, %5, %cst {dimension_numbers = #tpu.dot_dimension_numbers<[1], [0], [0], [1], [0, 0, 1, 1], [], []>} : vector<16x256xbf16>, vector<256x128xbf16>, vector<16x128xf32> -> vector<16x128xf32>
    %7 = arith.addf %3, %6 : vector<16x128xf32>
    %c0_6 = arith.constant 0 : index
    %c0_7 = arith.constant 0 : index
    %8 = vector.load %arg7[%c0_6, %c0_7] : memref<16x128xf32, #tpu.memory_space<vmem>>, vector<16x128xf32>
    tpu.vector_store %arg7[%c0_6, %c0_7], %7 {strides = array<i32>} : memref<16x128xf32, #tpu.memory_space<vmem>>, vector<16x128xf32>,
    %c0_i32_8 = arith.constant 0 : i32
    %9 = arith.cmpi eq, %arg2, %c0_i32_8 : i32
    %10 = arith.extui %9 : i1 to i32
    %c0_i32_9 = arith.constant 0 : i32
    %11 = arith.cmpi ne, %10, %c0_i32_9 : i32
    scf.if %11 {
      %c0_10 = arith.constant 0 : index
      %c0_11 = arith.constant 0 : index
      %12 = vector.load %arg7[%c0_10, %c0_11] : memref<16x128xf32, #tpu.memory_space<vmem>>, vector<16x128xf32>
      %c0_12 = arith.constant 0 : index
      %c0_13 = arith.constant 0 : index
      %13 = vector.load %arg5[%c0_12, %c0_13] : memref<1x128xf32, #tpu.memory_space<vmem>>, vector<1x128xf32>
      %14 = vector.broadcast %13 : vector<1x128xf32> to vector<16x128xf32>
      %15 = arith.addf %12, %14 : vector<16x128xf32>
      %c0_14 = arith.constant 0 : index
      %c0_15 = arith.constant 0 : index
      %16 = vector.load %arg6[%c0_14, %c0_15] : memref<16x128xf32, #tpu.memory_space<vmem>>, vector<16x128xf32>
      tpu.vector_store %arg6[%c0_14, %c0_15], %15 {strides = array<i32>} : memref<16x128xf32, #tpu.memory_space<vmem>>, vector<16x128xf32>,
    } else {
    }
    return
  }
  func.func @transform_0(%arg0: i32, %arg1: i32, %arg2: i32) -> (i32, i32) {
    %c0_i32 = arith.constant 0 : i32
    return %arg0, %arg2 : i32, i32
  }
  func.func @transform_1(%arg0: i32, %arg1: i32, %arg2: i32) -> (i32, i32) {
    %c0_i32 = arith.constant 0 : i32
    return %arg2, %arg1 : i32, i32
  }
  func.func @transform_2(%arg0: i32, %arg1: i32, %arg2: i32) -> (i32, i32) {
    %c0_i32 = arith.constant 0 : i32
    %c0_i32_0 = arith.constant 0 : i32
    return %c0_i32, %arg1 : i32, i32
  }
  func.func @transform_3(%arg0: i32, %arg1: i32, %arg2: i32) -> (i32, i32) {
    %c0_i32 = arith.constant 0 : i32
    return %arg0, %arg1 : i32, i32
  }
}

</mosaic_0001>

<llo_original>
// kernel: discriminator_forward.6
$region0: #{discriminator_forward.6}
  #allocation0 [shape = 'u32[]', space=smem, size = 0x4, offset = 0x4, fixed_abs, tag = 'smem constant byte address 0x4 - core index']
  #allocation1 [shape = 'u32[144,128]{1,0:T(1,128)}', space=vmem, size = 0x12000, scoped, tag = 'internal scratch']
  #allocation2 [shape = 'f32[256,128]{1,0:T(8,128)}', space=vmem, size = 0x20000, scoped, tag = 'scratch operand']
  %s0 = inlined_call_operand.vmem [shape: bf16[512,128], index: 0, kind: input, shape index: {}]
  %s1 = inlined_call_operand.vmem [shape: bf16[128,128], index: 1, kind: input, shape index: {}]
  %s2 = inlined_call_operand.vmem [shape: f32[1,128], index: 2, kind: input, shape index: {}]
  %s3 = inlined_call_operand.vmem [shape: f32[512,128], index: 3, kind: output, shape index: {}]
  %s4 = sld [smem:[#allocation0]]
  $region53: #{discriminator_forward.6} parent=0
    _
  %s6 = ssub.s32 1, %s4
  %s7 = scalar_select 0, %s6, %s4
  loop: start=0, step=1, limit=4
  $region2: #{discriminator_forward.6} parent=0 // loop_pre_header
    _
  $region3: #{discriminator_forward.6} parent=0 // loop_header
    %s9 = sphi 0, %s13
    %p10 = scmp.ge.s32.totalorder %s9, 4
    %s16 = sphi 0, %s35
    %s17 = sphi 0, %s31
    %s18 = sphi 0, %s27
    %s19 = sphi 0, %s16
    %s20 = sphi 0, %s17
    %s21 = sphi 0, %s18
    %s22 = sphi 0, %s19
    %s23 = sphi 0, %s20
    %s24 = sphi 0, %s21
    %s40 = sphi 0, %s42
    %s43 = sphi 0, %s40
    %s44 = sphi 0, %s43
    %s60 = sphi 0, %s44
    %s68 = sphi 0, %s70
    %s71 = sphi 0, %s68
    %s72 = sphi 0, %s71
    %s88 = sphi 0, %s72
    %s94 = sphi 0, %s96
    %s97 = sphi 0, %s94
    %s98 = sphi 0, %s97
    %s114 = sphi 0, %s98
    %s122 = sphi 0, %s124
    %s125 = sphi 0, %s122
    %s126 = sphi 0, %s125
    %s142 = sphi 0, %s126
  $region4: #{discriminator_forward.6} parent=0 // loop_header_branch
    %12 = sbr.rel (%p10) target = $region8
  $region5: #{discriminator_forward.6} parent=0 // loop_body
    %s14 = ssub.s32 %s9, 1
    %s15 = ssub.s32 %s9, 2
    %s25 = sadd.s32 1, %s18
    %p26 = scmp.ge.s32.totalorder %s25, 1
    %s27 = scalar_select %p26, 0, %s25
    %s28 = sadd.s32 1, %s17
    %s29 = scalar_select %p26, %s28, %s17
    %p30 = scmp.ge.s32.totalorder %s29, 1
    %s31 = scalar_select %p30, 0, %s29
    %s32 = sadd.s32 1, %s16
    %s33 = scalar_select %p30, %s32, %s16
    %p34 = scmp.ge.s32.totalorder %s33, 2
    %s35 = scalar_select %p34, 0, %s33
    %s36 = ssub.s32 %s16, %s35
    %s37 = ssub.s32 %s18, %s27
    %s38 = sor.u32 %s36, %s37
    %p39 = scmp.eq.s32.totalorder %s38, 0
    %s41 = sadd.s32 %s40, 1
    %s42 = scalar_select %p39, %s40, %s41
    %p45 = pneg %p39
    %p46 = scmp.eq.s32.totalorder %s9, 1
    %p47 = por %p45, %p46
    %p48 = scmp.ne.s32.totalorder %s40, %s43
    %p49 = scmp.eq.s32.totalorder %s9, 0
    %p50 = por %p48, %p49
    %p51 = scmp.ne.s32.totalorder %s40, %s43
    %p52 = scmp.eq.s32.totalorder %s14, 1
    %p53 = por %p51, %p52
    %p54 = scmp.ne.s32.totalorder %s43, %s44
    %p55 = scmp.eq.s32.totalorder %s14, 0
    %p56 = por %p54, %p55
    %p57 = scmp.ne.s32.totalorder %s43, %s44
    %p58 = scmp.eq.s32.totalorder %s15, 1
    %p59 = por %p57, %p58
    %p61 = scmp.ne.s32.totalorder %s44, %s60
    %p62 = scmp.eq.s32.totalorder %s15, 0
    %p63 = por %p61, %p62
    %s64 = ssub.s32 %s18, %s27
    %s65 = ssub.s32 %s17, %s31
    %s66 = sor.u32 %s64, %s65
    %p67 = scmp.eq.s32.totalorder %s66, 0
    %s69 = sadd.s32 %s68, 1
    %s70 = scalar_select %p67, %s68, %s69
    %p73 = pneg %p67
    %p74 = scmp.eq.s32.totalorder %s9, 1
    %p75 = por %p73, %p74
    %p76 = scmp.ne.s32.totalorder %s68, %s71
    %p77 = scmp.eq.s32.totalorder %s9, 0
    %p78 = por %p76, %p77
    %p79 = scmp.ne.s32.totalorder %s68, %s71
    %p80 = scmp.eq.s32.totalorder %s14, 1
    %p81 = por %p79, %p80
    %p82 = scmp.ne.s32.totalorder %s71, %s72
    %p83 = scmp.eq.s32.totalorder %s14, 0
    %p84 = por %p82, %p83
    %p85 = scmp.ne.s32.totalorder %s71, %s72
    %p86 = scmp.eq.s32.totalorder %s15, 1
    %p87 = por %p85, %p86
    %p89 = scmp.ne.s32.totalorder %s72, %s88
    %p90 = scmp.eq.s32.totalorder %s15, 0
    %p91 = por %p89, %p90
    %s92 = ssub.s32 %s17, %s31
    %p93 = scmp.eq.s32.totalorder %s92, 0
    %s95 = sadd.s32 %s94, 1
    %s96 = scalar_select %p93, %s94, %s95
    %p99 = pneg %p93
    %p100 = scmp.eq.s32.totalorder %s9, 1
    %p101 = por %p99, %p100
    %p102 = scmp.ne.s32.totalorder %s94, %s97
    %p103 = scmp.eq.s32.totalorder %s9, 0
    %p104 = por %p102, %p103
    %p105 = scmp.ne.s32.totalorder %s94, %s97
    %p106 = scmp.eq.s32.totalorder %s14, 1
    %p107 = por %p105, %p106
    %p108 = scmp.ne.s32.totalorder %s97, %s98
    %p109 = scmp.eq.s32.totalorder %s14, 0
    %p110 = por %p108, %p109
    %p111 = scmp.ne.s32.totalorder %s97, %s98
    %p112 = scmp.eq.s32.totalorder %s15, 1
    %p113 = por %p111, %p112
    %p115 = scmp.ne.s32.totalorder %s98, %s114
    %p116 = scmp.eq.s32.totalorder %s15, 0
    %p117 = por %p115, %p116
    %s118 = ssub.s32 %s16, %s35
    %s119 = ssub.s32 %s17, %s31
    %s120 = sor.u32 %s118, %s119
    %p121 = scmp.eq.s32.totalorder %s120, 0
    %s123 = sadd.s32 %s122, 1
    %s124 = scalar_select %p121, %s122, %s123
    %p127 = pneg %p121
    %p128 = scmp.eq.s32.totalorder %s9, 1
    %p129 = por %p127, %p128
    %p130 = scmp.ne.s32.totalorder %s122, %s125
    %p131 = scmp.eq.s32.totalorder %s9, 0
    %p132 = por %p130, %p131
    %p133 = scmp.ne.s32.totalorder %s122, %s125
    %p134 = scmp.eq.s32.totalorder %s14, 1
    %p135 = por %p133, %p134
    %p136 = scmp.ne.s32.totalorder %s125, %s126
    %p137 = scmp.eq.s32.totalorder %s14, 0
    %p138 = por %p136, %p137
    %p139 = scmp.ne.s32.totalorder %s125, %s126
    %p140 = scmp.eq.s32.totalorder %s15, 1
    %p141 = por %p139, %p140
    %p143 = scmp.ne.s32.totalorder %s126, %s142
    %p144 = scmp.eq.s32.totalorder %s15, 0
    %p145 = por %p143, %p144
    %p146 = scmp.le.s32.totalorder 1, %s9
    %p147 = scmp.lt.s32.totalorder %s9, 3
    %p148 = pnand %p146, %p147
    %p149 = pneg %p148
    // Predicated region
    $region9: #{discriminator_forward.6} parent=5 // pred_check
      _
    $region10: #{discriminator_forward.6} parent=5 // pred_check_branch
      %151 = sbr.rel (%p148) target = $region12
    $region11: #{discriminator_forward.6} parent=5 // pred_region
      %s152 = ssub.s32 %s9, 1
      // Predicated region
      $region13: #{discriminator_forward.6} parent=11 // pred_check
        %p153 = pneg %p84
      $region14: #{discriminator_forward.6} parent=11 // pred_check_branch
        %155 = sbr.rel (%p153) target = $region16
      $region15: #{discriminator_forward.6} parent=11 // pred_region
        %s156 = smul.u32 16, %s21
        %p157 = scmp.lt.s32.totalorder %s156, 15
        %s158 = scalar_select %p157, %s156, 15
        %p159 = scmp.lt.s32.totalorder %s20, 0
        %s160 = scalar_select %p159, %s20, 0
        %s161 = sadd.s32 %s160, %s158
        %s162 = smul.addr %s161, 4
        %s163 = scalar_lea.vmem %s1, %s162
        %s164 = smul.u32 16, %s21
      $region16: #{discriminator_forward.6} parent=11 // pred_fallthru
        _
      // Predicated region
      $region17: #{discriminator_forward.6} parent=11 // pred_check
        %p165 = pneg %p110
      $region18: #{discriminator_forward.6} parent=11 // pred_check_branch
        %167 = sbr.rel (%p165) target = $region20
      $region19: #{discriminator_forward.6} parent=11 // pred_region
        %p168 = scmp.lt.s32.totalorder %s20, 0
        %s169 = scalar_select %p168, %s20, 0
        %s170 = scalar_lea.vmem %s2, %s169
      $region20: #{discriminator_forward.6} parent=11 // pred_fallthru
        _
    $region12: #{discriminator_forward.6} parent=5 // pred_fallthru
      _
    %p171 = scmp.lt.s32.totalorder %s9, 2
    // Predicated region
    $region21: #{discriminator_forward.6} parent=5 // pred_check
      %p172 = pneg %p171
    $region22: #{discriminator_forward.6} parent=5 // pred_check_branch
      %174 = sbr.rel (%p172) target = $region24
    $region23: #{discriminator_forward.6} parent=5 // pred_region
      // Predicated region
      $region25: #{discriminator_forward.6} parent=23 // pred_check
        %p175 = pneg %p50
      $region26: #{discriminator_forward.6} parent=23 // pred_check_branch
        %177 = sbr.rel (%p175) target = $region28
      $region27: #{discriminator_forward.6} parent=23 // pred_region
        %s178 = smul.u32 32, %s16
        %p179 = scmp.lt.s32.totalorder %s178, 63
        %s180 = scalar_select %p179, %s178, 63
        %p181 = scmp.lt.s32.totalorder %s18, 0
        %s182 = scalar_select %p181, %s18, 0
        %s183 = sadd.s32 %s182, %s180
        %s184 = smul.addr %s183, 4
        %s185 = scalar_lea.vmem %s0, %s184
        %s186 = smul.u32 32, %s16
      $region28: #{discriminator_forward.6} parent=23 // pred_fallthru
        _
    $region24: #{discriminator_forward.6} parent=5 // pred_fallthru
      _
    %p187 = scmp.le.s32.totalorder 1, %s9
    %p188 = scmp.lt.s32.totalorder %s9, 3
    %p189 = pnand %p187, %p188
    %p190 = pneg %p189
    // Predicated region
    $region29: #{discriminator_forward.6} parent=5 // pred_check
      _
    $region30: #{discriminator_forward.6} parent=5 // pred_check_branch
      %192 = sbr.rel (%p189) target = $region32
    $region31: #{discriminator_forward.6} parent=5 // pred_region
      %s193 = ssub.s32 %s9, 1
      %s194 = smul.u32 32, %s19
      %p195 = scmp.lt.s32.totalorder %s194, 63
      %s196 = scalar_select %p195, %s194, 63
      %p197 = scmp.lt.s32.totalorder %s21, 0
      %s198 = scalar_select %p197, %s21, 0
      %s199 = sadd.s32 %s198, %s196
      %s200 = smul.addr %s199, 4
      %s201 = scalar_lea.vmem %s0, %s200
      %p202 = pneg %p56
      %p203 = pneg %p53
      %s204 = smul.u32 16, %s21
      %p205 = scmp.lt.s32.totalorder %s204, 15
      %s206 = scalar_select %p205, %s204, 15
      %p207 = scmp.lt.s32.totalorder %s20, 0
      %s208 = scalar_select %p207, %s20, 0
      %s209 = sadd.s32 %s208, %s206
      %s210 = smul.addr %s209, 4
      %s211 = scalar_lea.vmem %s1, %s210
      %p212 = pneg %p84
      %p213 = pneg %p81
      %p214 = scmp.lt.s32.totalorder %s20, 0
      %s215 = scalar_select %p214, %s20, 0
      %s216 = scalar_lea.vmem %s2, %s215
      %p217 = pneg %p110
      %p218 = pneg %p107
      %p219 = pneg %p138
      %p220 = pneg %p135
      %s221 = smul.u32 32, %s19
      %p222 = scmp.lt.s32.totalorder %s221, 63
      %s223 = scalar_select %p222, %s221, 63
      %p224 = scmp.lt.s32.totalorder %s20, 0
      %s225 = scalar_select %p224, %s20, 0
      %s226 = sadd.s32 %s225, %s223
      %s227 = smul.addr %s226, 8
      %s228 = scalar_lea.vmem %s3, %s227
      %s229 = smul.u32 32, %s19
      %p230 = scmp.lt.s32.totalorder %s229, 63
      %s231 = scalar_select %p230, %s229, 63
      %p232 = scmp.lt.s32.totalorder %s21, 0
      %s233 = scalar_select %p232, %s21, 0
      %s234 = sadd.s32 %s233, %s231
      %s235 = smul.addr %s234, 4
      %s236 = scalar_lea.vmem %s0, %s235
      %s237 = smul.u32 32, %s19
      %s238 = smul.u32 16, %s21
      %p239 = scmp.lt.s32.totalorder %s238, 15
      %s240 = scalar_select %p239, %s238, 15
      %p241 = scmp.lt.s32.totalorder %s20, 0
      %s242 = scalar_select %p241, %s20, 0
      %s243 = sadd.s32 %s242, %s240
      %s244 = smul.addr %s243, 4
      %s245 = scalar_lea.vmem %s1, %s244
      %s246 = smul.u32 16, %s21
      %p247 = scmp.lt.s32.totalorder %s20, 0
      %s248 = scalar_select %p247, %s20, 0
      %s249 = scalar_lea.vmem %s2, %s248
      %s250 = smul.u32 32, %s19
      %p251 = scmp.lt.s32.totalorder %s250, 63
      %s252 = scalar_select %p251, %s250, 63
      %p253 = scmp.lt.s32.totalorder %s20, 0
      %s254 = scalar_select %p253, %s20, 0
      %s255 = sadd.s32 %s254, %s252
      %s256 = smul.addr %s255, 8
      %s257 = scalar_lea.vmem %s3, %s256
      %s258 = smul.u32 32, %s19
      %p260 = scmp.eq.s32.totalorder %s21, 0
      // Predicated region
      $region33: #{discriminator_forward.6} parent=31 // pred_check
        %p261 = pneg %p260
      $region34: #{discriminator_forward.6} parent=31 // pred_check_branch
        %263 = sbr.rel (%p261) target = $region36
      $region35: #{discriminator_forward.6} parent=31 // pred_region
        %264 = vst [vmem:[#allocation2] sm:$0xff] 0.0
        %265 = vst [vmem:[#allocation2 + $0x8] sm:$0xff] 0.0
        %266 = vst [vmem:[#allocation2 + $0x10] sm:$0xff] 0.0
        %267 = vst [vmem:[#allocation2 + $0x18] sm:$0xff] 0.0
        %268 = vst [vmem:[#allocation2 + $0x20] sm:$0xff] 0.0
        %269 = vst [vmem:[#allocation2 + $0x28] sm:$0xff] 0.0
        %270 = vst [vmem:[#allocation2 + $0x30] sm:$0xff] 0.0
        %271 = vst [vmem:[#allocation2 + $0x38] sm:$0xff] 0.0
        %272 = vst [vmem:[#allocation2 + $0x40] sm:$0xff] 0.0
        %273 = vst [vmem:[#allocation2 + $0x48] sm:$0xff] 0.0
        %274 = vst [vmem:[#allocation2 + $0x50] sm:$0xff] 0.0
        %275 = vst [vmem:[#allocation2 + $0x58] sm:$0xff] 0.0
        %276 = vst [vmem:[#allocation2 + $0x60] sm:$0xff] 0.0
        %277 = vst [vmem:[#allocation2 + $0x68] sm:$0xff] 0.0
        %278 = vst [vmem:[#allocation2 + $0x70] sm:$0xff] 0.0
        %279 = vst [vmem:[#allocation2 + $0x78] sm:$0xff] 0.0
        %280 = vst [vmem:[#allocation2 + $0x80] sm:$0xff] 0.0
        %281 = vst [vmem:[#allocation2 + $0x88] sm:$0xff] 0.0
        %282 = vst [vmem:[#allocation2 + $0x90] sm:$0xff] 0.0
        %283 = vst [vmem:[#allocation2 + $0x98] sm:$0xff] 0.0
        %284 = vst [vmem:[#allocation2 + $0xa0] sm:$0xff] 0.0
        %285 = vst [vmem:[#allocation2 + $0xa8] sm:$0xff] 0.0
        %286 = vst [vmem:[#allocation2 + $0xb0] sm:$0xff] 0.0
        %287 = vst [vmem:[#allocation2 + $0xb8] sm:$0xff] 0.0
        %288 = vst [vmem:[#allocation2 + $0xc0] sm:$0xff] 0.0
        %289 = vst [vmem:[#allocation2 + $0xc8] sm:$0xff] 0.0
        %290 = vst [vmem:[#allocation2 + $0xd0] sm:$0xff] 0.0
        %291 = vst [vmem:[#allocation2 + $0xd8] sm:$0xff] 0.0
        %292 = vst [vmem:[#allocation2 + $0xe0] sm:$0xff] 0.0
        %293 = vst [vmem:[#allocation2 + $0xe8] sm:$0xff] 0.0
        %294 = vst [vmem:[#allocation2 + $0xf0] sm:$0xff] 0.0
        %295 = vst [vmem:[#allocation2 + $0xf8] sm:$0xff] 0.0
      $region36: #{discriminator_forward.6} parent=31 // pred_fallthru
        _
      %v296 = vld [vmem:[#allocation2] sm:$0xff]
      %v297 = vld [vmem:[#allocation2 + $0x8] sm:$0xff]
      %v298 = vld [vmem:[#allocation2 + $0x10] sm:$0xff]
      %v299 = vld [vmem:[#allocation2 + $0x18] sm:$0xff]
      %v300 = vld [vmem:[#allocation2 + $0x20] sm:$0xff]
      %v301 = vld [vmem:[#allocation2 + $0x28] sm:$0xff]
      %v302 = vld [vmem:[#allocation2 + $0x30] sm:$0xff]
      %v303 = vld [vmem:[#allocation2 + $0x38] sm:$0xff]
      %v304 = vld [vmem:[#allocation2 + $0x40] sm:$0xff]
      %v305 = vld [vmem:[#allocation2 + $0x48] sm:$0xff]
      %v306 = vld [vmem:[#allocation2 + $0x50] sm:$0xff]
      %v307 = vld [vmem:[#allocation2 + $0x58] sm:$0xff]
      %v308 = vld [vmem:[#allocation2 + $0x60] sm:$0xff]
      %v309 = vld [vmem:[#allocation2 + $0x68] sm:$0xff]
      %v310 = vld [vmem:[#allocation2 + $0x70] sm:$0xff]
      %v311 = vld [vmem:[#allocation2 + $0x78] sm:$0xff]
      %v312 = vld [vmem:[#allocation2 + $0x80] sm:$0xff]
      %v313 = vld [vmem:[#allocation2 + $0x88] sm:$0xff]
      %v314 = vld [vmem:[#allocation2 + $0x90] sm:$0xff]
      %v315 = vld [vmem:[#allocation2 + $0x98] sm:$0xff]
      %v316 = vld [vmem:[#allocation2 + $0xa0] sm:$0xff]
      %v317 = vld [vmem:[#allocation2 + $0xa8] sm:$0xff]
      %v318 = vld [vmem:[#allocation2 + $0xb0] sm:$0xff]
      %v319 = vld [vmem:[#allocation2 + $0xb8] sm:$0xff]
      %v320 = vld [vmem:[#allocation2 + $0xc0] sm:$0xff]
      %v321 = vld [vmem:[#allocation2 + $0xc8] sm:$0xff]
      %v322 = vld [vmem:[#allocation2 + $0xd0] sm:$0xff]
      %v323 = vld [vmem:[#allocation2 + $0xd8] sm:$0xff]
      %v324 = vld [vmem:[#allocation2 + $0xe0] sm:$0xff]
      %v325 = vld [vmem:[#allocation2 + $0xe8] sm:$0xff]
      %v326 = vld [vmem:[#allocation2 + $0xf0] sm:$0xff]
      %v327 = vld [vmem:[#allocation2 + $0xf8] sm:$0xff]
      %v328 = vld [vmem:[%s236] sm:$0xf]
      %v329 = vld [vmem:[%s236 + $0x4] sm:$0xf]
      %v330 = vld [vmem:[%s236 + $0x8] sm:$0xf]
      %v331 = vld [vmem:[%s236 + $0xc] sm:$0xf]
      %v332 = vld [vmem:[%s236 + $0x10] sm:$0xf]
      %v333 = vld [vmem:[%s236 + $0x14] sm:$0xf]
      %v334 = vld [vmem:[%s236 + $0x18] sm:$0xf]
      %v335 = vld [vmem:[%s236 + $0x1c] sm:$0xf]
      %v336 = vld [vmem:[%s236 + $0x20] sm:$0xf]
      %v337 = vld [vmem:[%s236 + $0x24] sm:$0xf]
      %v338 = vld [vmem:[%s236 + $0x28] sm:$0xf]
      %v339 = vld [vmem:[%s236 + $0x2c] sm:$0xf]
      %v340 = vld [vmem:[%s236 + $0x30] sm:$0xf]
      %v341 = vld [vmem:[%s236 + $0x34] sm:$0xf]
      %v342 = vld [vmem:[%s236 + $0x38] sm:$0xf]
      %v343 = vld [vmem:[%s236 + $0x3c] sm:$0xf]
      %v344 = vld [vmem:[%s236 + $0x40] sm:$0xf]
      %v345 = vld [vmem:[%s236 + $0x44] sm:$0xf]
      %v346 = vld [vmem:[%s236 + $0x48] sm:$0xf]
      %v347 = vld [vmem:[%s236 + $0x4c] sm:$0xf]
      %v348 = vld [vmem:[%s236 + $0x50] sm:$0xf]
      %v349 = vld [vmem:[%s236 + $0x54] sm:$0xf]
      %v350 = vld [vmem:[%s236 + $0x58] sm:$0xf]
      %v351 = vld [vmem:[%s236 + $0x5c] sm:$0xf]
      %v352 = vld [vmem:[%s236 + $0x60] sm:$0xf]
      %v353 = vld [vmem:[%s236 + $0x64] sm:$0xf]
      %v354 = vld [vmem:[%s236 + $0x68] sm:$0xf]
      %v355 = vld [vmem:[%s236 + $0x6c] sm:$0xf]
      %v356 = vld [vmem:[%s236 + $0x70] sm:$0xf]
      %v357 = vld [vmem:[%s236 + $0x74] sm:$0xf]
      %v358 = vld [vmem:[%s236 + $0x78] sm:$0xf]
      %v359 = vld [vmem:[%s236 + $0x7c] sm:$0xf]
      %v360 = vld [vmem:[%s245] sm:$0xf]
      %v361 = vld [vmem:[%s245 + $0x4] sm:$0xf]
      %v362 = vld [vmem:[%s245 + $0x8] sm:$0xf]
      %v363 = vld [vmem:[%s245 + $0xc] sm:$0xf]
      %v364 = vld [vmem:[%s245 + $0x10] sm:$0xf]
      %v365 = vld [vmem:[%s245 + $0x14] sm:$0xf]
      %v366 = vld [vmem:[%s245 + $0x18] sm:$0xf]
      %v367 = vld [vmem:[%s245 + $0x1c] sm:$0xf]
      %v368 = vld [vmem:[%s245 + $0x20] sm:$0xf]
      %v369 = vld [vmem:[%s245 + $0x24] sm:$0xf]
      %v370 = vld [vmem:[%s245 + $0x28] sm:$0xf]
      %v371 = vld [vmem:[%s245 + $0x2c] sm:$0xf]
      %v372 = vld [vmem:[%s245 + $0x30] sm:$0xf]
      %v373 = vld [vmem:[%s245 + $0x34] sm:$0xf]
      %v374 = vld [vmem:[%s245 + $0x38] sm:$0xf]
      %v375 = vld [vmem:[%s245 + $0x3c] sm:$0xf]
      %v408 = vunpack.c.l.b16 %v328
      %v409 = vunpack.c.l.b16 %v329
      %v410 = vunpack.c.l.b16 %v330
      %v411 = vunpack.c.l.b16 %v331
      %v412 = vunpack.c.l.b16 %v332
      %v413 = vunpack.c.l.b16 %v333
      %v414 = vunpack.c.l.b16 %v334
      %v415 = vunpack.c.l.b16 %v335
      %v416 = vunpack.c.l.b16 %v336
      %v417 = vunpack.c.l.b16 %v337
      %v418 = vunpack.c.l.b16 %v338
      %v419 = vunpack.c.l.b16 %v339
      %v420 = vunpack.c.l.b16 %v340
      %v421 = vunpack.c.l.b16 %v341
      %v422 = vunpack.c.l.b16 %v342
      %v423 = vunpack.c.l.b16 %v343
      %v424 = vunpack.c.l.b16 %v344
      %v425 = vunpack.c.l.b16 %v345
      %v426 = vunpack.c.l.b16 %v346
      %v427 = vunpack.c.l.b16 %v347
      %v428 = vunpack.c.l.b16 %v348
      %v429 = vunpack.c.l.b16 %v349
      %v430 = vunpack.c.l.b16 %v350
      %v431 = vunpack.c.l.b16 %v351
      %v432 = vunpack.c.l.b16 %v352
      %v433 = vunpack.c.l.b16 %v353
      %v434 = vunpack.c.l.b16 %v354
      %v435 = vunpack.c.l.b16 %v355
      %v436 = vunpack.c.l.b16 %v356
      %v437 = vunpack.c.l.b16 %v357
      %v438 = vunpack.c.l.b16 %v358
      %v439 = vunpack.c.l.b16 %v359
      %v440 = vpack.c.b16 %v409, %v408
      %v441 = vpack.c.b16 %v411, %v410
      %v442 = vpack.c.b16 %v413, %v412
      %v443 = vpack.c.b16 %v415, %v414
      %v444 = vpack.c.b16 %v417, %v416
      %v445 = vpack.c.b16 %v419, %v418
      %v446 = vpack.c.b16 %v421, %v420
      %v447 = vpack.c.b16 %v423, %v422
      %v448 = vpack.c.b16 %v425, %v424
      %v449 = vpack.c.b16 %v427, %v426
      %v450 = vpack.c.b16 %v429, %v428
      %v451 = vpack.c.b16 %v431, %v430
      %v452 = vpack.c.b16 %v433, %v432
      %v453 = vpack.c.b16 %v435, %v434
      %v454 = vpack.c.b16 %v437, %v436
      %v455 = vpack.c.b16 %v439, %v438
      %v488 = vunpack.c.l.b16 %v360
      %v489 = vunpack.c.l.b16 %v361
      %v490 = vunpack.c.l.b16 %v362
      %v491 = vunpack.c.l.b16 %v363
      %v492 = vunpack.c.l.b16 %v364
      %v493 = vunpack.c.l.b16 %v365
      %v494 = vunpack.c.l.b16 %v366
      %v495 = vunpack.c.l.b16 %v367
      %v496 = vunpack.c.l.b16 %v368
      %v497 = vunpack.c.l.b16 %v369
      %v498 = vunpack.c.l.b16 %v370
      %v499 = vunpack.c.l.b16 %v371
      %v500 = vunpack.c.l.b16 %v372
      %v501 = vunpack.c.l.b16 %v373
      %v502 = vunpack.c.l.b16 %v374
      %v503 = vunpack.c.l.b16 %v375
      %v504 = vpack.c.b16 %v489, %v488
      %v505 = vpack.c.b16 %v491, %v490
      %v506 = vpack.c.b16 %v493, %v492
      %v507 = vpack.c.b16 %v495, %v494
      %v508 = vpack.c.b16 %v497, %v496
      %v509 = vpack.c.b16 %v499, %v498
      %v510 = vpack.c.b16 %v501, %v500
      %v511 = vpack.c.b16 %v503, %v502
      %520 = vmatprep.subr.bf16.mxu0 0
      %521 = vmatpush1.bf16.msra.mxu0 %v504
      %522 = vmatprep.subr.bf16.mxu0 0
      %523 = vmatpush1.bf16.msra.mxu0 %v505
      %524 = vmatprep.subr.bf16.mxu0 0
      %525 = vmatpush1.bf16.msra.mxu0 %v506
      %526 = vmatprep.subr.bf16.mxu0 0
      %527 = vmatpush1.bf16.msra.mxu0 %v507
      %528 = vmatprep.subr.bf16.mxu0 0
      %529 = vmatpush1.bf16.msra.mxu0 %v508
      %530 = vmatprep.subr.bf16.mxu0 0
      %531 = vmatpush1.bf16.msra.mxu0 %v509
      %532 = vmatprep.subr.bf16.mxu0 0
      %533 = vmatpush1.bf16.msra.mxu0 %v510
      %534 = vmatprep.subr.bf16.mxu0 0
      %535 = vmatpush1.bf16.msra.mxu0 %v511
      %536 = vmatprep.subr.bf16.mxu0 0
      %537 = vmatpush1.bf16.msra.mxu0 0
      %538 = vmatprep.subr.bf16.mxu0 0
      %539 = vmatpush1.bf16.msra.mxu0 0
      %540 = vmatprep.subr.bf16.mxu0 0
      %541 = vmatpush1.bf16.msra.mxu0 0
      %542 = vmatprep.subr.bf16.mxu0 0
      %543 = vmatpush1.bf16.msra.mxu0 0
      %544 = vmatprep.subr.bf16.mxu0 0
      %545 = vmatpush1.bf16.msra.mxu0 0
      %546 = vmatprep.subr.bf16.mxu0 0
      %547 = vmatpush1.bf16.msra.mxu0 0
      %548 = vmatprep.subr.bf16.mxu0 0
      %549 = vmatpush1.bf16.msra.mxu0 0
      %550 = vmatprep.subr.bf16.mxu0 0
      %551 = vmatpush1.bf16.msra.mxu0 0
      %552 = vmatprep.mubr.bf16.mxu0 0
      %553 = vmatmul.mubr.bf16.gmra.mrb[0].mxu0 %v440
      %v554 = vpop.f32.mrb[0].mxu0
      %v555 = vadd.f32 0.0, %v554
      %v556 = vpop.f32.mrb[0].mxu0
      %v557 = vpop.f32.mrb[0].mxu0
      %v558 = vadd.f32 0.0, %v557
      %v559 = vpop.f32.mrb[0].mxu0
      %560 = vmatprep.mubr.bf16.mxu0 0
      %561 = vmatmul.mubr.bf16.gmra.mrb[0].mxu0 %v441
      %v562 = vpop.f32.mrb[0].mxu0
      %v563 = vadd.f32 0.0, %v562
      %v564 = vpop.f32.mrb[0].mxu0
      %v565 = vpop.f32.mrb[0].mxu0
      %v566 = vadd.f32 0.0, %v565
      %v567 = vpop.f32.mrb[0].mxu0
      %568 = vmatprep.mubr.bf16.mxu0 0
      %569 = vmatmul.mubr.bf16.gmra.mrb[0].mxu0 %v442
      %v570 = vpop.f32.mrb[0].mxu0
      %v571 = vadd.f32 0.0, %v570
      %v572 = vpop.f32.mrb[0].mxu0
      %v573 = vpop.f32.mrb[0].mxu0
      %v574 = vadd.f32 0.0, %v573
      %v575 = vpop.f32.mrb[0].mxu0
      %576 = vmatprep.mubr.bf16.mxu0 0
      %577 = vmatmul.mubr.bf16.gmra.mrb[0].mxu0 %v443
      %v578 = vpop.f32.mrb[0].mxu0
      %v579 = vadd.f32 0.0, %v578
      %v580 = vpop.f32.mrb[0].mxu0
      %v581 = vpop.f32.mrb[0].mxu0
      %v582 = vadd.f32 0.0, %v581
      %v583 = vpop.f32.mrb[0].mxu0
      %584 = vmatprep.mubr.bf16.mxu0 0
      %585 = vmatmul.mubr.bf16.gmra.mrb[0].mxu0 %v444
      %v586 = vpop.f32.mrb[0].mxu0
      %v587 = vadd.f32 0.0, %v586
      %v588 = vpop.f32.mrb[0].mxu0
      %v589 = vpop.f32.mrb[0].mxu0
      %v590 = vadd.f32 0.0, %v589
      %v591 = vpop.f32.mrb[0].mxu0
      %592 = vmatprep.mubr.bf16.mxu0 0
      %593 = vmatmul.mubr.bf16.gmra.mrb[0].mxu0 %v445
      %v594 = vpop.f32.mrb[0].mxu0
      %v595 = vadd.f32 0.0, %v594
      %v596 = vpop.f32.mrb[0].mxu0
      %v597 = vpop.f32.mrb[0].mxu0
      %v598 = vadd.f32 0.0, %v597
      %v599 = vpop.f32.mrb[0].mxu0
      %600 = vmatprep.mubr.bf16.mxu0 0
      %601 = vmatmul.mubr.bf16.gmra.mrb[0].mxu0 %v446
      %v602 = vpop.f32.mrb[0].mxu0
      %v603 = vadd.f32 0.0, %v602
      %v604 = vpop.f32.mrb[0].mxu0
      %v605 = vpop.f32.mrb[0].mxu0
      %v606 = vadd.f32 0.0, %v605
      %v607 = vpop.f32.mrb[0].mxu0
      %608 = vmatprep.mubr.bf16.mxu0 0
      %609 = vmatmul.mubr.bf16.gmra.mrb[0].mxu0 %v447
      %v610 = vpop.f32.mrb[0].mxu0
      %v611 = vadd.f32 0.0, %v610
      %v612 = vpop.f32.mrb[0].mxu0
      %v613 = vpop.f32.mrb[0].mxu0
      %v614 = vadd.f32 0.0, %v613
      %v615 = vpop.f32.mrb[0].mxu0
      %616 = vmatprep.mubr.bf16.mxu0 0
      %617 = vmatmul.mubr.bf16.gmra.mrb[0].mxu0 %v448
      %v618 = vpop.f32.mrb[0].mxu0
      %v619 = vadd.f32 0.0, %v618
      %v620 = vpop.f32.mrb[0].mxu0
      %v621 = vpop.f32.mrb[0].mxu0
      %v622 = vadd.f32 0.0, %v621
      %v623 = vpop.f32.mrb[0].mxu0
      %624 = vmatprep.mubr.bf16.mxu0 0
      %625 = vmatmul.mubr.bf16.gmra.mrb[0].mxu0 %v449
      %v626 = vpop.f32.mrb[0].mxu0
      %v627 = vadd.f32 0.0, %v626
      %v628 = vpop.f32.mrb[0].mxu0
      %v629 = vpop.f32.mrb[0].mxu0
      %v630 = vadd.f32 0.0, %v629
      %v631 = vpop.f32.mrb[0].mxu0
      %632 = vmatprep.mubr.bf16.mxu0 0
      %633 = vmatmul.mubr.bf16.gmra.mrb[0].mxu0 %v450
      %v634 = vpop.f32.mrb[0].mxu0
      %v635 = vadd.f32 0.0, %v634
      %v636 = vpop.f32.mrb[0].mxu0
      %v637 = vpop.f32.mrb[0].mxu0
      %v638 = vadd.f32 0.0, %v637
      %v639 = vpop.f32.mrb[0].mxu0
      %640 = vmatprep.mubr.bf16.mxu0 0
      %641 = vmatmul.mubr.bf16.gmra.mrb[0].mxu0 %v451
      %v642 = vpop.f32.mrb[0].mxu0
      %v643 = vadd.f32 0.0, %v642
      %v644 = vpop.f32.mrb[0].mxu0
      %v645 = vpop.f32.mrb[0].mxu0
      %v646 = vadd.f32 0.0, %v645
      %v647 = vpop.f32.mrb[0].mxu0
      %648 = vmatprep.mubr.bf16.mxu0 0
      %649 = vmatmul.mubr.bf16.gmra.mrb[0].mxu0 %v452
      %v650 = vpop.f32.mrb[0].mxu0
      %v651 = vadd.f32 0.0, %v650
      %v652 = vpop.f32.mrb[0].mxu0
      %v653 = vpop.f32.mrb[0].mxu0
      %v654 = vadd.f32 0.0, %v653
      %v655 = vpop.f32.mrb[0].mxu0
      %656 = vmatprep.mubr.bf16.mxu0 0
      %657 = vmatmul.mubr.bf16.gmra.mrb[0].mxu0 %v453
      %v658 = vpop.f32.mrb[0].mxu0
      %v659 = vadd.f32 0.0, %v658
      %v660 = vpop.f32.mrb[0].mxu0
      %v661 = vpop.f32.mrb[0].mxu0
      %v662 = vadd.f32 0.0, %v661
      %v663 = vpop.f32.mrb[0].mxu0
      %664 = vmatprep.mubr.bf16.mxu0 0
      %665 = vmatmul.mubr.bf16.gmra.mrb[0].mxu0 %v454
      %v666 = vpop.f32.mrb[0].mxu0
      %v667 = vadd.f32 0.0, %v666
      %v668 = vpop.f32.mrb[0].mxu0
      %v669 = vpop.f32.mrb[0].mxu0
      %v670 = vadd.f32 0.0, %v669
      %v671 = vpop.f32.mrb[0].mxu0
      %672 = vmatprep.mubr.bf16.mxu0 0
      %673 = vmatmul.mubr.bf16.gmra.mrb[0].mxu0 %v455
      %v674 = vpop.f32.mrb[0].mxu0
      %v675 = vadd.f32 0.0, %v674
      %v676 = vpop.f32.mrb[0].mxu0
      %v677 = vpop.f32.mrb[0].mxu0
      %v678 = vadd.f32 0.0, %v677
      %v679 = vpop.f32.mrb[0].mxu0
      %680 = vdwg.mxu0
      %v681 = vadd.f32 %v296, %v555
      %v682 = vadd.f32 %v297, %v558
      %v683 = vadd.f32 %v298, %v563
      %v684 = vadd.f32 %v299, %v566
      %v685 = vadd.f32 %v300, %v571
      %v686 = vadd.f32 %v301, %v574
      %v687 = vadd.f32 %v302, %v579
      %v688 = vadd.f32 %v303, %v582
      %v689 = vadd.f32 %v304, %v587
      %v690 = vadd.f32 %v305, %v590
      %v691 = vadd.f32 %v306, %v595
      %v692 = vadd.f32 %v307, %v598
      %v693 = vadd.f32 %v308, %v603
      %v694 = vadd.f32 %v309, %v606
      %v695 = vadd.f32 %v310, %v611
      %v696 = vadd.f32 %v311, %v614
      %v697 = vadd.f32 %v312, %v619
      %v698 = vadd.f32 %v313, %v622
      %v699 = vadd.f32 %v314, %v627
      %v700 = vadd.f32 %v315, %v630
      %v701 = vadd.f32 %v316, %v635
      %v702 = vadd.f32 %v317, %v638
      %v703 = vadd.f32 %v318, %v643
      %v704 = vadd.f32 %v319, %v646
      %v705 = vadd.f32 %v320, %v651
      %v706 = vadd.f32 %v321, %v654
      %v707 = vadd.f32 %v322, %v659
      %v708 = vadd.f32 %v323, %v662
      %v709 = vadd.f32 %v324, %v667
      %v710 = vadd.f32 %v325, %v670
      %v711 = vadd.f32 %v326, %v675
      %v712 = vadd.f32 %v327, %v678
      %713 = vst [vmem:[#allocation2] sm:$0xff] %v681
      %714 = vst [vmem:[#allocation2 + $0x8] sm:$0xff] %v682
      %715 = vst [vmem:[#allocation2 + $0x10] sm:$0xff] %v683
      %716 = vst [vmem:[#allocation2 + $0x18] sm:$0xff] %v684
      %717 = vst [vmem:[#allocation2 + $0x20] sm:$0xff] %v685
      %718 = vst [vmem:[#allocation2 + $0x28] sm:$0xff] %v686
      %719 = vst [vmem:[#allocation2 + $0x30] sm:$0xff] %v687
      %720 = vst [vmem:[#allocation2 + $0x38] sm:$0xff] %v688
      %721 = vst [vmem:[#allocation2 + $0x40] sm:$0xff] %v689
      %722 = vst [vmem:[#allocation2 + $0x48] sm:$0xff] %v690
      %723 = vst [vmem:[#allocation2 + $0x50] sm:$0xff] %v691
      %724 = vst [vmem:[#allocation2 + $0x58] sm:$0xff] %v692
      %725 = vst [vmem:[#allocation2 + $0x60] sm:$0xff] %v693
      %726 = vst [vmem:[#allocation2 + $0x68] sm:$0xff] %v694
      %727 = vst [vmem:[#allocation2 + $0x70] sm:$0xff] %v695
      %728 = vst [vmem:[#allocation2 + $0x78] sm:$0xff] %v696
      %729 = vst [vmem:[#allocation2 + $0x80] sm:$0xff] %v697
      %730 = vst [vmem:[#allocation2 + $0x88] sm:$0xff] %v698
      %731 = vst [vmem:[#allocation2 + $0x90] sm:$0xff] %v699
      %732 = vst [vmem:[#allocation2 + $0x98] sm:$0xff] %v700
      %733 = vst [vmem:[#allocation2 + $0xa0] sm:$0xff] %v701
      %734 = vst [vmem:[#allocation2 + $0xa8] sm:$0xff] %v702
      %735 = vst [vmem:[#allocation2 + $0xb0] sm:$0xff] %v703
      %736 = vst [vmem:[#allocation2 + $0xb8] sm:$0xff] %v704
      %737 = vst [vmem:[#allocation2 + $0xc0] sm:$0xff] %v705
      %738 = vst [vmem:[#allocation2 + $0xc8] sm:$0xff] %v706
      %739 = vst [vmem:[#allocation2 + $0xd0] sm:$0xff] %v707
      %740 = vst [vmem:[#allocation2 + $0xd8] sm:$0xff] %v708
      %741 = vst [vmem:[#allocation2 + $0xe0] sm:$0xff] %v709
      %742 = vst [vmem:[#allocation2 + $0xe8] sm:$0xff] %v710
      %743 = vst [vmem:[#allocation2 + $0xf0] sm:$0xff] %v711
      %744 = vst [vmem:[#allocation2 + $0xf8] sm:$0xff] %v712
      // Predicated region
      $region37: #{discriminator_forward.6} parent=31 // pred_check
        %p745 = pneg %p260
      $region38: #{discriminator_forward.6} parent=31 // pred_check_branch
        %747 = sbr.rel (%p745) target = $region40
      $region39: #{discriminator_forward.6} parent=31 // pred_region
        %v748 = vld [vmem:[#allocation2] sm:$0xff]
        %v749 = vld [vmem:[#allocation2 + $0x8] sm:$0xff]
        %v750 = vld [vmem:[#allocation2 + $0x10] sm:$0xff]
        %v751 = vld [vmem:[#allocation2 + $0x18] sm:$0xff]
        %v752 = vld [vmem:[#allocation2 + $0x20] sm:$0xff]
        %v753 = vld [vmem:[#allocation2 + $0x28] sm:$0xff]
        %v754 = vld [vmem:[#allocation2 + $0x30] sm:$0xff]
        %v755 = vld [vmem:[#allocation2 + $0x38] sm:$0xff]
        %v756 = vld [vmem:[#allocation2 + $0x40] sm:$0xff]
        %v757 = vld [vmem:[#allocation2 + $0x48] sm:$0xff]
        %v758 = vld [vmem:[#allocation2 + $0x50] sm:$0xff]
        %v759 = vld [vmem:[#allocation2 + $0x58] sm:$0xff]
        %v760 = vld [vmem:[#allocation2 + $0x60] sm:$0xff]
        %v761 = vld [vmem:[#allocation2 + $0x68] sm:$0xff]
        %v762 = vld [vmem:[#allocation2 + $0x70] sm:$0xff]
        %v763 = vld [vmem:[#allocation2 + $0x78] sm:$0xff]
        %v764 = vld [vmem:[#allocation2 + $0x80] sm:$0xff]
        %v765 = vld [vmem:[#allocation2 + $0x88] sm:$0xff]
        %v766 = vld [vmem:[#allocation2 + $0x90] sm:$0xff]
        %v767 = vld [vmem:[#allocation2 + $0x98] sm:$0xff]
        %v768 = vld [vmem:[#allocation2 + $0xa0] sm:$0xff]
        %v769 = vld [vmem:[#allocation2 + $0xa8] sm:$0xff]
        %v770 = vld [vmem:[#allocation2 + $0xb0] sm:$0xff]
        %v771 = vld [vmem:[#allocation2 + $0xb8] sm:$0xff]
        %v772 = vld [vmem:[#allocation2 + $0xc0] sm:$0xff]
        %v773 = vld [vmem:[#allocation2 + $0xc8] sm:$0xff]
        %v774 = vld [vmem:[#allocation2 + $0xd0] sm:$0xff]
        %v775 = vld [vmem:[#allocation2 + $0xd8] sm:$0xff]
        %v776 = vld [vmem:[#allocation2 + $0xe0] sm:$0xff]
        %v777 = vld [vmem:[#allocation2 + $0xe8] sm:$0xff]
        %v778 = vld [vmem:[#allocation2 + $0xf0] sm:$0xff]
        %v779 = vld [vmem:[#allocation2 + $0xf8] sm:$0xff]
        %v780 = vld [vmem:[%s249] sm:$0x1]
        %v782 = vlaneseq
        %v783 = vshrl.u32 %v782, 7
        %v784 = vsub.s32 0, %v783
        %v785 = vrot.slane %v780, %v784
        %v787 = vadd.f32 %v748, %v785
        %v788 = vadd.f32 %v749, %v785
        %v789 = vadd.f32 %v750, %v785
        %v790 = vadd.f32 %v751, %v785
        %v791 = vadd.f32 %v752, %v785
        %v792 = vadd.f32 %v753, %v785
        %v793 = vadd.f32 %v754, %v785
        %v794 = vadd.f32 %v755, %v785
        %v795 = vadd.f32 %v756, %v785
        %v796 = vadd.f32 %v757, %v785
        %v797 = vadd.f32 %v758, %v785
        %v798 = vadd.f32 %v759, %v785
        %v799 = vadd.f32 %v760, %v785
        %v800 = vadd.f32 %v761, %v785
        %v801 = vadd.f32 %v762, %v785
        %v802 = vadd.f32 %v763, %v785
        %v803 = vadd.f32 %v764, %v785
        %v804 = vadd.f32 %v765, %v785
        %v805 = vadd.f32 %v766, %v785
        %v806 = vadd.f32 %v767, %v785
        %v807 = vadd.f32 %v768, %v785
        %v808 = vadd.f32 %v769, %v785
        %v809 = vadd.f32 %v770, %v785
        %v810 = vadd.f32 %v771, %v785
        %v811 = vadd.f32 %v772, %v785
        %v812 = vadd.f32 %v773, %v785
        %v813 = vadd.f32 %v774, %v785
        %v814 = vadd.f32 %v775, %v785
        %v815 = vadd.f32 %v776, %v785
        %v816 = vadd.f32 %v777, %v785
        %v817 = vadd.f32 %v778, %v785
        %v818 = vadd.f32 %v779, %v785
        %vm819 = vcmp.ge.f32.partialorder %v787, 0.0
        %vm820 = vcmp.ge.f32.partialorder %v788, 0.0
        %vm821 = vcmp.ge.f32.partialorder %v789, 0.0
        %vm822 = vcmp.ge.f32.partialorder %v790, 0.0
        %vm823 = vcmp.ge.f32.partialorder %v791, 0.0
        %vm824 = vcmp.ge.f32.partialorder %v792, 0.0
        %vm825 = vcmp.ge.f32.partialorder %v793, 0.0
        %vm826 = vcmp.ge.f32.partialorder %v794, 0.0
        %vm827 = vcmp.ge.f32.partialorder %v795, 0.0
        %vm828 = vcmp.ge.f32.partialorder %v796, 0.0
        %vm829 = vcmp.ge.f32.partialorder %v797, 0.0
        %vm830 = vcmp.ge.f32.partialorder %v798, 0.0
        %vm831 = vcmp.ge.f32.partialorder %v799, 0.0
        %vm832 = vcmp.ge.f32.partialorder %v800, 0.0
        %vm833 = vcmp.ge.f32.partialorder %v801, 0.0
        %vm834 = vcmp.ge.f32.partialorder %v802, 0.0
        %vm835 = vcmp.ge.f32.partialorder %v803, 0.0
        %vm836 = vcmp.ge.f32.partialorder %v804, 0.0
        %vm837 = vcmp.ge.f32.partialorder %v805, 0.0
        %vm838 = vcmp.ge.f32.partialorder %v806, 0.0
        %vm839 = vcmp.ge.f32.partialorder %v807, 0.0
        %vm840 = vcmp.ge.f32.partialorder %v808, 0.0
        %vm841 = vcmp.ge.f32.partialorder %v809, 0.0
        %vm842 = vcmp.ge.f32.partialorder %v810, 0.0
        %vm843 = vcmp.ge.f32.partialorder %v811, 0.0
        %vm844 = vcmp.ge.f32.partialorder %v812, 0.0
        %vm845 = vcmp.ge.f32.partialorder %v813, 0.0
        %vm846 = vcmp.ge.f32.partialorder %v814, 0.0
        %vm847 = vcmp.ge.f32.partialorder %v815, 0.0
        %vm848 = vcmp.ge.f32.partialorder %v816, 0.0
        %vm849 = vcmp.ge.f32.partialorder %v817, 0.0
        %vm850 = vcmp.ge.f32.partialorder %v818, 0.0
        %v851 = vmul.f32 %v787, 0.01
        %v852 = vmul.f32 %v788, 0.01
        %v853 = vmul.f32 %v789, 0.01
        %v854 = vmul.f32 %v790, 0.01
        %v855 = vmul.f32 %v791, 0.01
        %v856 = vmul.f32 %v792, 0.01
        %v857 = vmul.f32 %v793, 0.01
        %v858 = vmul.f32 %v794, 0.01
        %v859 = vmul.f32 %v795, 0.01
        %v860 = vmul.f32 %v796, 0.01
        %v861 = vmul.f32 %v797, 0.01
        %v862 = vmul.f32 %v798, 0.01
        %v863 = vmul.f32 %v799, 0.01
        %v864 = vmul.f32 %v800, 0.01
        %v865 = vmul.f32 %v801, 0.01
        %v866 = vmul.f32 %v802, 0.01
        %v867 = vmul.f32 %v803, 0.01
        %v868 = vmul.f32 %v804, 0.01
        %v869 = vmul.f32 %v805, 0.01
        %v870 = vmul.f32 %v806, 0.01
        %v871 = vmul.f32 %v807, 0.01
        %v872 = vmul.f32 %v808, 0.01
        %v873 = vmul.f32 %v809, 0.01
        %v874 = vmul.f32 %v810, 0.01
        %v875 = vmul.f32 %v811, 0.01
        %v876 = vmul.f32 %v812, 0.01
        %v877 = vmul.f32 %v813, 0.01
        %v878 = vmul.f32 %v814, 0.01
        %v879 = vmul.f32 %v815, 0.01
        %v880 = vmul.f32 %v816, 0.01
        %v881 = vmul.f32 %v817, 0.01
        %v882 = vmul.f32 %v818, 0.01
        %v883 = vsel %vm819, %v787, %v851
        %v884 = vsel %vm820, %v788, %v852
        %v885 = vsel %vm821, %v789, %v853
        %v886 = vsel %vm822, %v790, %v854
        %v887 = vsel %vm823, %v791, %v855
        %v888 = vsel %vm824, %v792, %v856
        %v889 = vsel %vm825, %v793, %v857
        %v890 = vsel %vm826, %v794, %v858
        %v891 = vsel %vm827, %v795, %v859
        %v892 = vsel %vm828, %v796, %v860
        %v893 = vsel %vm829, %v797, %v861
        %v894 = vsel %vm830, %v798, %v862
        %v895 = vsel %vm831, %v799, %v863
        %v896 = vsel %vm832, %v800, %v864
        %v897 = vsel %vm833, %v801, %v865
        %v898 = vsel %vm834, %v802, %v866
        %v899 = vsel %vm835, %v803, %v867
        %v900 = vsel %vm836, %v804, %v868
        %v901 = vsel %vm837, %v805, %v869
        %v902 = vsel %vm838, %v806, %v870
        %v903 = vsel %vm839, %v807, %v871
        %v904 = vsel %vm840, %v808, %v872
        %v905 = vsel %vm841, %v809, %v873
        %v906 = vsel %vm842, %v810, %v874
        %v907 = vsel %vm843, %v811, %v875
        %v908 = vsel %vm844, %v812, %v876
        %v909 = vsel %vm845, %v813, %v877
        %v910 = vsel %vm846, %v814, %v878
        %v911 = vsel %vm847, %v815, %v879
        %v912 = vsel %vm848, %v816, %v880
        %v913 = vsel %vm849, %v817, %v881
        %v914 = vsel %vm850, %v818, %v882
        %915 = vst [vmem:[%s257] sm:$0xff] %v883
        %916 = vst [vmem:[%s257 + $0x8] sm:$0xff] %v884
        %917 = vst [vmem:[%s257 + $0x10] sm:$0xff] %v885
        %918 = vst [vmem:[%s257 + $0x18] sm:$0xff] %v886
        %919 = vst [vmem:[%s257 + $0x20] sm:$0xff] %v887
        %920 = vst [vmem:[%s257 + $0x28] sm:$0xff] %v888
        %921 = vst [vmem:[%s257 + $0x30] sm:$0xff] %v889
        %922 = vst [vmem:[%s257 + $0x38] sm:$0xff] %v890
        %923 = vst [vmem:[%s257 + $0x40] sm:$0xff] %v891
        %924 = vst [vmem:[%s257 + $0x48] sm:$0xff] %v892
        %925 = vst [vmem:[%s257 + $0x50] sm:$0xff] %v893
        %926 = vst [vmem:[%s257 + $0x58] sm:$0xff] %v894
        %927 = vst [vmem:[%s257 + $0x60] sm:$0xff] %v895
        %928 = vst [vmem:[%s257 + $0x68] sm:$0xff] %v896
        %929 = vst [vmem:[%s257 + $0x70] sm:$0xff] %v897
        %930 = vst [vmem:[%s257 + $0x78] sm:$0xff] %v898
        %931 = vst [vmem:[%s257 + $0x80] sm:$0xff] %v899
        %932 = vst [vmem:[%s257 + $0x88] sm:$0xff] %v900
        %933 = vst [vmem:[%s257 + $0x90] sm:$0xff] %v901
        %934 = vst [vmem:[%s257 + $0x98] sm:$0xff] %v902
        %935 = vst [vmem:[%s257 + $0xa0] sm:$0xff] %v903
        %936 = vst [vmem:[%s257 + $0xa8] sm:$0xff] %v904
        %937 = vst [vmem:[%s257 + $0xb0] sm:$0xff] %v905
        %938 = vst [vmem:[%s257 + $0xb8] sm:$0xff] %v906
        %939 = vst [vmem:[%s257 + $0xc0] sm:$0xff] %v907
        %940 = vst [vmem:[%s257 + $0xc8] sm:$0xff] %v908
        %941 = vst [vmem:[%s257 + $0xd0] sm:$0xff] %v909
        %942 = vst [vmem:[%s257 + $0xd8] sm:$0xff] %v910
        %943 = vst [vmem:[%s257 + $0xe0] sm:$0xff] %v911
        %944 = vst [vmem:[%s257 + $0xe8] sm:$0xff] %v912
        %945 = vst [vmem:[%s257 + $0xf0] sm:$0xff] %v913
        %946 = vst [vmem:[%s257 + $0xf8] sm:$0xff] %v914
      $region40: #{discriminator_forward.6} parent=31 // pred_fallthru
        _
      %s947 = smul.u32 32, %s19
      %p948 = scmp.lt.s32.totalorder %s947, 63
      %s949 = scalar_select %p948, %s947, 63
      %p950 = scmp.lt.s32.totalorder %s20, 0
      %s951 = scalar_select %p950, %s20, 0
      %s952 = sadd.s32 %s951, %s949
      %s953 = smul.addr %s952, 8
      %s954 = scalar_lea.vmem %s3, %s953
      // Predicated region
      $region41: #{discriminator_forward.6} parent=31 // pred_check
        %p955 = pneg %p135
      $region42: #{discriminator_forward.6} parent=31 // pred_check_branch
        %957 = sbr.rel (%p955) target = $region44
      $region43: #{discriminator_forward.6} parent=31 // pred_region
        %s958 = smul.u32 32, %s19
      $region44: #{discriminator_forward.6} parent=31 // pred_fallthru
        _
    $region32: #{discriminator_forward.6} parent=5 // pred_fallthru
      _
    %p959 = scmp.le.s32.totalorder 2, %s9
    // Predicated region
    $region45: #{discriminator_forward.6} parent=5 // pred_check
      %p960 = pneg %p959
    $region46: #{discriminator_forward.6} parent=5 // pred_check_branch
      %962 = sbr.rel (%p960) target = $region48
    $region47: #{discriminator_forward.6} parent=5 // pred_region
      %s963 = ssub.s32 %s9, 2
      // Predicated region
      $region49: #{discriminator_forward.6} parent=47 // pred_check
        %p964 = pneg %p141
      $region50: #{discriminator_forward.6} parent=47 // pred_check_branch
        %966 = sbr.rel (%p964) target = $region52
      $region51: #{discriminator_forward.6} parent=47 // pred_region
        %s967 = smul.u32 32, %s22
        %p968 = scmp.lt.s32.totalorder %s967, 63
        %s969 = scalar_select %p968, %s967, 63
        %p970 = scmp.lt.s32.totalorder %s23, 0
        %s971 = scalar_select %p970, %s23, 0
        %s972 = sadd.s32 %s971, %s969
        %s973 = smul.addr %s972, 8
        %s974 = scalar_lea.vmem %s3, %s973
      $region52: #{discriminator_forward.6} parent=47 // pred_fallthru
        _
    $region48: #{discriminator_forward.6} parent=5 // pred_fallthru
      _
  $region6: #{discriminator_forward.6} parent=0 // loop_footer
    %s13 = sadd.s32 1, %s9
  $region7: #{discriminator_forward.6} parent=0 // loop_footer_branch
    %8 = sbr.rel target = $region3
  $region8: #{discriminator_forward.6} parent=0 // loop_exit
    _

// kernel: discriminator_forward.7
$region0: #{discriminator_forward.7}
  #allocation0 [shape = 'u32[]', space=smem, size = 0x4, offset = 0x4, fixed_abs, tag = 'smem constant byte address 0x4 - core index']
  #allocation1 [shape = 'u32[144,128]{1,0:T(1,128)}', space=vmem, size = 0x12000, scoped, tag = 'internal scratch']
  #allocation2 [shape = 'f32[128,128]{1,0:T(8,128)}', space=vmem, size = 0x10000, scoped, tag = 'scratch operand']
  %s0 = inlined_call_operand.vmem [shape: bf16[128,256], index: 0, kind: input, shape index: {}]
  %s1 = inlined_call_operand.vmem [shape: bf16[256,128], index: 1, kind: input, shape index: {}]
  %s2 = inlined_call_operand.vmem [shape: f32[1,128], index: 2, kind: input, shape index: {}]
  %s3 = inlined_call_operand.vmem [shape: f32[128,128], index: 3, kind: output, shape index: {}]
  %s4 = sld [smem:[#allocation0]]
  $region30: #{discriminator_forward.7} parent=0
    _
  %s6 = ssub.s32 1, %s4
  %s7 = scalar_select 0, %s6, %s4
  // Predicated region
  $region2: #{discriminator_forward.7} parent=0 // pred_check
    _
  $region3: #{discriminator_forward.7} parent=0 // pred_check_branch
    %9 = sbr.rel (0) target = $region5
  $region4: #{discriminator_forward.7} parent=0 // pred_region
    _
  $region5: #{discriminator_forward.7} parent=0 // pred_fallthru
    _
  // Predicated region
  $region6: #{discriminator_forward.7} parent=0 // pred_check
    _
  $region7: #{discriminator_forward.7} parent=0 // pred_check_branch
    %11 = sbr.rel (0) target = $region9
  $region8: #{discriminator_forward.7} parent=0 // pred_region
    _
  $region9: #{discriminator_forward.7} parent=0 // pred_fallthru
    _
  // Predicated region
  $region10: #{discriminator_forward.7} parent=0 // pred_check
    _
  $region11: #{discriminator_forward.7} parent=0 // pred_check_branch
    %13 = sbr.rel (0) target = $region13
  $region12: #{discriminator_forward.7} parent=0 // pred_region
    _
  $region13: #{discriminator_forward.7} parent=0 // pred_fallthru
    _
  %p15 = scmp.eq.s32.totalorder 0, 0
  // Predicated region
  $region14: #{discriminator_forward.7} parent=0 // pred_check
    %p16 = pneg %p15
  $region15: #{discriminator_forward.7} parent=0 // pred_check_branch
    %18 = sbr.rel (%p16) target = $region17
  $region16: #{discriminator_forward.7} parent=0 // pred_region
    %19 = vst [vmem:[#allocation2] sm:$0xff] 0.0
    %20 = vst [vmem:[#allocation2 + $0x8] sm:$0xff] 0.0
    %21 = vst [vmem:[#allocation2 + $0x10] sm:$0xff] 0.0
    %22 = vst [vmem:[#allocation2 + $0x18] sm:$0xff] 0.0
    %23 = vst [vmem:[#allocation2 + $0x20] sm:$0xff] 0.0
    %24 = vst [vmem:[#allocation2 + $0x28] sm:$0xff] 0.0
    %25 = vst [vmem:[#allocation2 + $0x30] sm:$0xff] 0.0
    %26 = vst [vmem:[#allocation2 + $0x38] sm:$0xff] 0.0
    %27 = vst [vmem:[#allocation2 + $0x40] sm:$0xff] 0.0
    %28 = vst [vmem:[#allocation2 + $0x48] sm:$0xff] 0.0
    %29 = vst [vmem:[#allocation2 + $0x50] sm:$0xff] 0.0
    %30 = vst [vmem:[#allocation2 + $0x58] sm:$0xff] 0.0
    %31 = vst [vmem:[#allocation2 + $0x60] sm:$0xff] 0.0
    %32 = vst [vmem:[#allocation2 + $0x68] sm:$0xff] 0.0
    %33 = vst [vmem:[#allocation2 + $0x70] sm:$0xff] 0.0
    %34 = vst [vmem:[#allocation2 + $0x78] sm:$0xff] 0.0
  $region17: #{discriminator_forward.7} parent=0 // pred_fallthru
    _
  %v35 = vld [vmem:[#allocation2] sm:$0xff]
  %v36 = vld [vmem:[#allocation2 + $0x8] sm:$0xff]
  %v37 = vld [vmem:[#allocation2 + $0x10] sm:$0xff]
  %v38 = vld [vmem:[#allocation2 + $0x18] sm:$0xff]
  %v39 = vld [vmem:[#allocation2 + $0x20] sm:$0xff]
  %v40 = vld [vmem:[#allocation2 + $0x28] sm:$0xff]
  %v41 = vld [vmem:[#allocation2 + $0x30] sm:$0xff]
  %v42 = vld [vmem:[#allocation2 + $0x38] sm:$0xff]
  %v43 = vld [vmem:[#allocation2 + $0x40] sm:$0xff]
  %v44 = vld [vmem:[#allocation2 + $0x48] sm:$0xff]
  %v45 = vld [vmem:[#allocation2 + $0x50] sm:$0xff]
  %v46 = vld [vmem:[#allocation2 + $0x58] sm:$0xff]
  %v47 = vld [vmem:[#allocation2 + $0x60] sm:$0xff]
  %v48 = vld [vmem:[#allocation2 + $0x68] sm:$0xff]
  %v49 = vld [vmem:[#allocation2 + $0x70] sm:$0xff]
  %v50 = vld [vmem:[#allocation2 + $0x78] sm:$0xff]
  %v51 = vld [vmem:[%s0] sm:$0xff]
  %v52 = vld [vmem:[%s0 + $0x8] sm:$0xff]
  %v53 = vld [vmem:[%s0 + $0x10] sm:$0xff]
  %v54 = vld [vmem:[%s0 + $0x18] sm:$0xff]
  %v55 = vld [vmem:[%s0 + $0x20] sm:$0xff]
  %v56 = vld [vmem:[%s0 + $0x28] sm:$0xff]
  %v57 = vld [vmem:[%s0 + $0x30] sm:$0xff]
  %v58 = vld [vmem:[%s0 + $0x38] sm:$0xff]
  %v59 = vld [vmem:[%s0 + $0x40] sm:$0xff]
  %v60 = vld [vmem:[%s0 + $0x48] sm:$0xff]
  %v61 = vld [vmem:[%s0 + $0x50] sm:$0xff]
  %v62 = vld [vmem:[%s0 + $0x58] sm:$0xff]
  %v63 = vld [vmem:[%s0 + $0x60] sm:$0xff]
  %v64 = vld [vmem:[%s0 + $0x68] sm:$0xff]
  %v65 = vld [vmem:[%s0 + $0x70] sm:$0xff]
  %v66 = vld [vmem:[%s0 + $0x78] sm:$0xff]
  %v67 = vld [vmem:[%s1] sm:$0xf]
  %v68 = vld [vmem:[%s1 + $0x4] sm:$0xf]
  %v69 = vld [vmem:[%s1 + $0x8] sm:$0xf]
  %v70 = vld [vmem:[%s1 + $0xc] sm:$0xf]
  %v71 = vld [vmem:[%s1 + $0x10] sm:$0xf]
  %v72 = vld [vmem:[%s1 + $0x14] sm:$0xf]
  %v73 = vld [vmem:[%s1 + $0x18] sm:$0xf]
  %v74 = vld [vmem:[%s1 + $0x1c] sm:$0xf]
  %v75 = vld [vmem:[%s1 + $0x20] sm:$0xf]
  %v76 = vld [vmem:[%s1 + $0x24] sm:$0xf]
  %v77 = vld [vmem:[%s1 + $0x28] sm:$0xf]
  %v78 = vld [vmem:[%s1 + $0x2c] sm:$0xf]
  %v79 = vld [vmem:[%s1 + $0x30] sm:$0xf]
  %v80 = vld [vmem:[%s1 + $0x34] sm:$0xf]
  %v81 = vld [vmem:[%s1 + $0x38] sm:$0xf]
  %v82 = vld [vmem:[%s1 + $0x3c] sm:$0xf]
  %v83 = vld [vmem:[%s1 + $0x40] sm:$0xf]
  %v84 = vld [vmem:[%s1 + $0x44] sm:$0xf]
  %v85 = vld [vmem:[%s1 + $0x48] sm:$0xf]
  %v86 = vld [vmem:[%s1 + $0x4c] sm:$0xf]
  %v87 = vld [vmem:[%s1 + $0x50] sm:$0xf]
  %v88 = vld [vmem:[%s1 + $0x54] sm:$0xf]
  %v89 = vld [vmem:[%s1 + $0x58] sm:$0xf]
  %v90 = vld [vmem:[%s1 + $0x5c] sm:$0xf]
  %v91 = vld [vmem:[%s1 + $0x60] sm:$0xf]
  %v92 = vld [vmem:[%s1 + $0x64] sm:$0xf]
  %v93 = vld [vmem:[%s1 + $0x68] sm:$0xf]
  %v94 = vld [vmem:[%s1 + $0x6c] sm:$0xf]
  %v95 = vld [vmem:[%s1 + $0x70] sm:$0xf]
  %v96 = vld [vmem:[%s1 + $0x74] sm:$0xf]
  %v97 = vld [vmem:[%s1 + $0x78] sm:$0xf]
  %v98 = vld [vmem:[%s1 + $0x7c] sm:$0xf]
  %v115 = vunpack.c.l.b16 %v51
  %v116 = vunpack.c.h.b16 %v51
  %v117 = vunpack.c.l.b16 %v52
  %v118 = vunpack.c.h.b16 %v52
  %v119 = vunpack.c.l.b16 %v53
  %v120 = vunpack.c.h.b16 %v53
  %v121 = vunpack.c.l.b16 %v54
  %v122 = vunpack.c.h.b16 %v54
  %v123 = vunpack.c.l.b16 %v55
  %v124 = vunpack.c.h.b16 %v55
  %v125 = vunpack.c.l.b16 %v56
  %v126 = vunpack.c.h.b16 %v56
  %v127 = vunpack.c.l.b16 %v57
  %v128 = vunpack.c.h.b16 %v57
  %v129 = vunpack.c.l.b16 %v58
  %v130 = vunpack.c.h.b16 %v58
  %v131 = vunpack.c.l.b16 %v59
  %v132 = vunpack.c.h.b16 %v59
  %v133 = vunpack.c.l.b16 %v60
  %v134 = vunpack.c.h.b16 %v60
  %v135 = vunpack.c.l.b16 %v61
  %v136 = vunpack.c.h.b16 %v61
  %v137 = vunpack.c.l.b16 %v62
  %v138 = vunpack.c.h.b16 %v62
  %v139 = vunpack.c.l.b16 %v63
  %v140 = vunpack.c.h.b16 %v63
  %v141 = vunpack.c.l.b16 %v64
  %v142 = vunpack.c.h.b16 %v64
  %v143 = vunpack.c.l.b16 %v65
  %v144 = vunpack.c.h.b16 %v65
  %v145 = vunpack.c.l.b16 %v66
  %v146 = vunpack.c.h.b16 %v66
  %v147 = vpack.c.b16 %v117, %v115
  %v148 = vpack.c.b16 %v118, %v116
  %v149 = vpack.c.b16 %v121, %v119
  %v150 = vpack.c.b16 %v122, %v120
  %v151 = vpack.c.b16 %v125, %v123
  %v152 = vpack.c.b16 %v126, %v124
  %v153 = vpack.c.b16 %v129, %v127
  %v154 = vpack.c.b16 %v130, %v128
  %v155 = vpack.c.b16 %v133, %v131
  %v156 = vpack.c.b16 %v134, %v132
  %v157 = vpack.c.b16 %v137, %v135
  %v158 = vpack.c.b16 %v138, %v136
  %v159 = vpack.c.b16 %v141, %v139
  %v160 = vpack.c.b16 %v142, %v140
  %v161 = vpack.c.b16 %v145, %v143
  %v162 = vpack.c.b16 %v146, %v144
  %v211 = vunpack.c.l.b16 %v67
  %v212 = vunpack.c.l.b16 %v68
  %v213 = vunpack.c.l.b16 %v69
  %v214 = vunpack.c.l.b16 %v70
  %v215 = vunpack.c.l.b16 %v71
  %v216 = vunpack.c.l.b16 %v72
  %v217 = vunpack.c.l.b16 %v73
  %v218 = vunpack.c.l.b16 %v74
  %v219 = vunpack.c.l.b16 %v75
  %v220 = vunpack.c.l.b16 %v76
  %v221 = vunpack.c.l.b16 %v77
  %v222 = vunpack.c.l.b16 %v78
  %v223 = vunpack.c.l.b16 %v79
  %v224 = vunpack.c.l.b16 %v80
  %v225 = vunpack.c.l.b16 %v81
  %v226 = vunpack.c.l.b16 %v82
  %v227 = vunpack.c.l.b16 %v83
  %v228 = vunpack.c.l.b16 %v84
  %v229 = vunpack.c.l.b16 %v85
  %v230 = vunpack.c.l.b16 %v86
  %v231 = vunpack.c.l.b16 %v87
  %v232 = vunpack.c.l.b16 %v88
  %v233 = vunpack.c.l.b16 %v89
  %v234 = vunpack.c.l.b16 %v90
  %v235 = vunpack.c.l.b16 %v91
  %v236 = vunpack.c.l.b16 %v92
  %v237 = vunpack.c.l.b16 %v93
  %v238 = vunpack.c.l.b16 %v94
  %v239 = vunpack.c.l.b16 %v95
  %v240 = vunpack.c.l.b16 %v96
  %v241 = vunpack.c.l.b16 %v97
  %v242 = vunpack.c.l.b16 %v98
  %v243 = vpack.c.b16 %v212, %v211
  %v244 = vpack.c.b16 %v214, %v213
  %v245 = vpack.c.b16 %v216, %v215
  %v246 = vpack.c.b16 %v218, %v217
  %v247 = vpack.c.b16 %v220, %v219
  %v248 = vpack.c.b16 %v222, %v221
  %v249 = vpack.c.b16 %v224, %v223
  %v250 = vpack.c.b16 %v226, %v225
  %v251 = vpack.c.b16 %v228, %v227
  %v252 = vpack.c.b16 %v230, %v229
  %v253 = vpack.c.b16 %v232, %v231
  %v254 = vpack.c.b16 %v234, %v233
  %v255 = vpack.c.b16 %v236, %v235
  %v256 = vpack.c.b16 %v238, %v237
  %v257 = vpack.c.b16 %v240, %v239
  %v258 = vpack.c.b16 %v242, %v241
  %275 = vmatprep.subr.bf16.mxu0 0
  %276 = vmatpush1.bf16.msra.mxu0 %v243
  %277 = vmatprep.subr.bf16.mxu0 0
  %278 = vmatpush1.bf16.msra.mxu0 %v244
  %279 = vmatprep.subr.bf16.mxu0 0
  %280 = vmatpush1.bf16.msra.mxu0 %v245
  %281 = vmatprep.subr.bf16.mxu0 0
  %282 = vmatpush1.bf16.msra.mxu0 %v246
  %283 = vmatprep.subr.bf16.mxu0 0
  %284 = vmatpush1.bf16.msra.mxu0 %v247
  %285 = vmatprep.subr.bf16.mxu0 0
  %286 = vmatpush1.bf16.msra.mxu0 %v248
  %287 = vmatprep.subr.bf16.mxu0 0
  %288 = vmatpush1.bf16.msra.mxu0 %v249
  %289 = vmatprep.subr.bf16.mxu0 0
  %290 = vmatpush1.bf16.msra.mxu0 %v250
  %291 = vmatprep.subr.bf16.mxu0 0
  %292 = vmatpush1.bf16.msra.mxu0 %v251
  %293 = vmatprep.subr.bf16.mxu0 0
  %294 = vmatpush1.bf16.msra.mxu0 %v252
  %295 = vmatprep.subr.bf16.mxu0 0
  %296 = vmatpush1.bf16.msra.mxu0 %v253
  %297 = vmatprep.subr.bf16.mxu0 0
  %298 = vmatpush1.bf16.msra.mxu0 %v254
  %299 = vmatprep.subr.bf16.mxu0 0
  %300 = vmatpush1.bf16.msra.mxu0 %v255
  %301 = vmatprep.subr.bf16.mxu0 0
  %302 = vmatpush1.bf16.msra.mxu0 %v256
  %303 = vmatprep.subr.bf16.mxu0 0
  %304 = vmatpush1.bf16.msra.mxu0 %v257
  %305 = vmatprep.subr.bf16.mxu0 0
  %306 = vmatpush1.bf16.msra.mxu0 %v258
  %307 = vmatprep.mubr.bf16.mxu0 %v148
  %308 = vmatmul.mubr.bf16.gmra.mrb[0].mxu0 %v147
  %v309 = vpop.f32.mrb[0].mxu0
  %v310 = vadd.f32 0.0, %v309
  %v311 = vpop.f32.mrb[0].mxu0
  %v312 = vpop.f32.mrb[0].mxu0
  %v313 = vadd.f32 0.0, %v312
  %v314 = vpop.f32.mrb[0].mxu0
  %315 = vmatprep.mubr.bf16.mxu0 %v150
  %316 = vmatmul.mubr.bf16.gmra.mrb[0].mxu0 %v149
  %v317 = vpop.f32.mrb[0].mxu0
  %v318 = vadd.f32 0.0, %v317
  %v319 = vpop.f32.mrb[0].mxu0
  %v320 = vpop.f32.mrb[0].mxu0
  %v321 = vadd.f32 0.0, %v320
  %v322 = vpop.f32.mrb[0].mxu0
  %323 = vmatprep.mubr.bf16.mxu0 %v152
  %324 = vmatmul.mubr.bf16.gmra.mrb[0].mxu0 %v151
  %v325 = vpop.f32.mrb[0].mxu0
  %v326 = vadd.f32 0.0, %v325
  %v327 = vpop.f32.mrb[0].mxu0
  %v328 = vpop.f32.mrb[0].mxu0
  %v329 = vadd.f32 0.0, %v328
  %v330 = vpop.f32.mrb[0].mxu0
  %331 = vmatprep.mubr.bf16.mxu0 %v154
  %332 = vmatmul.mubr.bf16.gmra.mrb[0].mxu0 %v153
  %v333 = vpop.f32.mrb[0].mxu0
  %v334 = vadd.f32 0.0, %v333
  %v335 = vpop.f32.mrb[0].mxu0
  %v336 = vpop.f32.mrb[0].mxu0
  %v337 = vadd.f32 0.0, %v336
  %v338 = vpop.f32.mrb[0].mxu0
  %339 = vmatprep.mubr.bf16.mxu0 %v156
  %340 = vmatmul.mubr.bf16.gmra.mrb[0].mxu0 %v155
  %v341 = vpop.f32.mrb[0].mxu0
  %v342 = vadd.f32 0.0, %v341
  %v343 = vpop.f32.mrb[0].mxu0
  %v344 = vpop.f32.mrb[0].mxu0
  %v345 = vadd.f32 0.0, %v344
  %v346 = vpop.f32.mrb[0].mxu0
  %347 = vmatprep.mubr.bf16.mxu0 %v158
  %348 = vmatmul.mubr.bf16.gmra.mrb[0].mxu0 %v157
  %v349 = vpop.f32.mrb[0].mxu0
  %v350 = vadd.f32 0.0, %v349
  %v351 = vpop.f32.mrb[0].mxu0
  %v352 = vpop.f32.mrb[0].mxu0
  %v353 = vadd.f32 0.0, %v352
  %v354 = vpop.f32.mrb[0].mxu0
  %355 = vmatprep.mubr.bf16.mxu0 %v160
  %356 = vmatmul.mubr.bf16.gmra.mrb[0].mxu0 %v159
  %v357 = vpop.f32.mrb[0].mxu0
  %v358 = vadd.f32 0.0, %v357
  %v359 = vpop.f32.mrb[0].mxu0
  %v360 = vpop.f32.mrb[0].mxu0
  %v361 = vadd.f32 0.0, %v360
  %v362 = vpop.f32.mrb[0].mxu0
  %363 = vmatprep.mubr.bf16.mxu0 %v162
  %364 = vmatmul.mubr.bf16.gmra.mrb[0].mxu0 %v161
  %v365 = vpop.f32.mrb[0].mxu0
  %v366 = vadd.f32 0.0, %v365
  %v367 = vpop.f32.mrb[0].mxu0
  %v368 = vpop.f32.mrb[0].mxu0
  %v369 = vadd.f32 0.0, %v368
  %v370 = vpop.f32.mrb[0].mxu0
  %371 = vdwg.mxu0
  %v372 = vadd.f32 %v35, %v310
  %v373 = vadd.f32 %v36, %v313
  %v374 = vadd.f32 %v37, %v318
  %v375 = vadd.f32 %v38, %v321
  %v376 = vadd.f32 %v39, %v326
  %v377 = vadd.f32 %v40, %v329
  %v378 = vadd.f32 %v41, %v334
  %v379 = vadd.f32 %v42, %v337
  %v380 = vadd.f32 %v43, %v342
  %v381 = vadd.f32 %v44, %v345
  %v382 = vadd.f32 %v45, %v350
  %v383 = vadd.f32 %v46, %v353
  %v384 = vadd.f32 %v47, %v358
  %v385 = vadd.f32 %v48, %v361
  %v386 = vadd.f32 %v49, %v366
  %v387 = vadd.f32 %v50, %v369
  %388 = vst [vmem:[#allocation2] sm:$0xff] %v372
  %389 = vst [vmem:[#allocation2 + $0x8] sm:$0xff] %v373
  %390 = vst [vmem:[#allocation2 + $0x10] sm:$0xff] %v374
  %391 = vst [vmem:[#allocation2 + $0x18] sm:$0xff] %v375
  %392 = vst [vmem:[#allocation2 + $0x20] sm:$0xff] %v376
  %393 = vst [vmem:[#allocation2 + $0x28] sm:$0xff] %v377
  %394 = vst [vmem:[#allocation2 + $0x30] sm:$0xff] %v378
  %395 = vst [vmem:[#allocation2 + $0x38] sm:$0xff] %v379
  %396 = vst [vmem:[#allocation2 + $0x40] sm:$0xff] %v380
  %397 = vst [vmem:[#allocation2 + $0x48] sm:$0xff] %v381
  %398 = vst [vmem:[#allocation2 + $0x50] sm:$0xff] %v382
  %399 = vst [vmem:[#allocation2 + $0x58] sm:$0xff] %v383
  %400 = vst [vmem:[#allocation2 + $0x60] sm:$0xff] %v384
  %401 = vst [vmem:[#allocation2 + $0x68] sm:$0xff] %v385
  %402 = vst [vmem:[#allocation2 + $0x70] sm:$0xff] %v386
  %403 = vst [vmem:[#allocation2 + $0x78] sm:$0xff] %v387
  // Predicated region
  $region18: #{discriminator_forward.7} parent=0 // pred_check
    %p404 = pneg %p15
  $region19: #{discriminator_forward.7} parent=0 // pred_check_branch
    %406 = sbr.rel (%p404) target = $region21
  $region20: #{discriminator_forward.7} parent=0 // pred_region
    %v407 = vld [vmem:[#allocation2] sm:$0xff]
    %v408 = vld [vmem:[#allocation2 + $0x8] sm:$0xff]
    %v409 = vld [vmem:[#allocation2 + $0x10] sm:$0xff]
    %v410 = vld [vmem:[#allocation2 + $0x18] sm:$0xff]
    %v411 = vld [vmem:[#allocation2 + $0x20] sm:$0xff]
    %v412 = vld [vmem:[#allocation2 + $0x28] sm:$0xff]
    %v413 = vld [vmem:[#allocation2 + $0x30] sm:$0xff]
    %v414 = vld [vmem:[#allocation2 + $0x38] sm:$0xff]
    %v415 = vld [vmem:[#allocation2 + $0x40] sm:$0xff]
    %v416 = vld [vmem:[#allocation2 + $0x48] sm:$0xff]
    %v417 = vld [vmem:[#allocation2 + $0x50] sm:$0xff]
    %v418 = vld [vmem:[#allocation2 + $0x58] sm:$0xff]
    %v419 = vld [vmem:[#allocation2 + $0x60] sm:$0xff]
    %v420 = vld [vmem:[#allocation2 + $0x68] sm:$0xff]
    %v421 = vld [vmem:[#allocation2 + $0x70] sm:$0xff]
    %v422 = vld [vmem:[#allocation2 + $0x78] sm:$0xff]
    %v423 = vld [vmem:[%s2] sm:$0x1]
    %v425 = vlaneseq
    %v426 = vshrl.u32 %v425, 7
    %v427 = vsub.s32 0, %v426
    %v428 = vrot.slane %v423, %v427
    %v430 = vadd.f32 %v407, %v428
    %v431 = vadd.f32 %v408, %v428
    %v432 = vadd.f32 %v409, %v428
    %v433 = vadd.f32 %v410, %v428
    %v434 = vadd.f32 %v411, %v428
    %v435 = vadd.f32 %v412, %v428
    %v436 = vadd.f32 %v413, %v428
    %v437 = vadd.f32 %v414, %v428
    %v438 = vadd.f32 %v415, %v428
    %v439 = vadd.f32 %v416, %v428
    %v440 = vadd.f32 %v417, %v428
    %v441 = vadd.f32 %v418, %v428
    %v442 = vadd.f32 %v419, %v428
    %v443 = vadd.f32 %v420, %v428
    %v444 = vadd.f32 %v421, %v428
    %v445 = vadd.f32 %v422, %v428
    %vm446 = vcmp.ge.f32.partialorder %v430, 0.0
    %vm447 = vcmp.ge.f32.partialorder %v431, 0.0
    %vm448 = vcmp.ge.f32.partialorder %v432, 0.0
    %vm449 = vcmp.ge.f32.partialorder %v433, 0.0
    %vm450 = vcmp.ge.f32.partialorder %v434, 0.0
    %vm451 = vcmp.ge.f32.partialorder %v435, 0.0
    %vm452 = vcmp.ge.f32.partialorder %v436, 0.0
    %vm453 = vcmp.ge.f32.partialorder %v437, 0.0
    %vm454 = vcmp.ge.f32.partialorder %v438, 0.0
    %vm455 = vcmp.ge.f32.partialorder %v439, 0.0
    %vm456 = vcmp.ge.f32.partialorder %v440, 0.0
    %vm457 = vcmp.ge.f32.partialorder %v441, 0.0
    %vm458 = vcmp.ge.f32.partialorder %v442, 0.0
    %vm459 = vcmp.ge.f32.partialorder %v443, 0.0
    %vm460 = vcmp.ge.f32.partialorder %v444, 0.0
    %vm461 = vcmp.ge.f32.partialorder %v445, 0.0
    %v462 = vmul.f32 %v430, 0.01
    %v463 = vmul.f32 %v431, 0.01
    %v464 = vmul.f32 %v432, 0.01
    %v465 = vmul.f32 %v433, 0.01
    %v466 = vmul.f32 %v434, 0.01
    %v467 = vmul.f32 %v435, 0.01
    %v468 = vmul.f32 %v436, 0.01
    %v469 = vmul.f32 %v437, 0.01
    %v470 = vmul.f32 %v438, 0.01
    %v471 = vmul.f32 %v439, 0.01
    %v472 = vmul.f32 %v440, 0.01
    %v473 = vmul.f32 %v441, 0.01
    %v474 = vmul.f32 %v442, 0.01
    %v475 = vmul.f32 %v443, 0.01
    %v476 = vmul.f32 %v444, 0.01
    %v477 = vmul.f32 %v445, 0.01
    %v478 = vsel %vm446, %v430, %v462
    %v479 = vsel %vm447, %v431, %v463
    %v480 = vsel %vm448, %v432, %v464
    %v481 = vsel %vm449, %v433, %v465
    %v482 = vsel %vm450, %v434, %v466
    %v483 = vsel %vm451, %v435, %v467
    %v484 = vsel %vm452, %v436, %v468
    %v485 = vsel %vm453, %v437, %v469
    %v486 = vsel %vm454, %v438, %v470
    %v487 = vsel %vm455, %v439, %v471
    %v488 = vsel %vm456, %v440, %v472
    %v489 = vsel %vm457, %v441, %v473
    %v490 = vsel %vm458, %v442, %v474
    %v491 = vsel %vm459, %v443, %v475
    %v492 = vsel %vm460, %v444, %v476
    %v493 = vsel %vm461, %v445, %v477
    %494 = vst [vmem:[%s3] sm:$0xff] %v478
    %495 = vst [vmem:[%s3 + $0x8] sm:$0xff] %v479
    %496 = vst [vmem:[%s3 + $0x10] sm:$0xff] %v480
    %497 = vst [vmem:[%s3 + $0x18] sm:$0xff] %v481
    %498 = vst [vmem:[%s3 + $0x20] sm:$0xff] %v482
    %499 = vst [vmem:[%s3 + $0x28] sm:$0xff] %v483
    %500 = vst [vmem:[%s3 + $0x30] sm:$0xff] %v484
    %501 = vst [vmem:[%s3 + $0x38] sm:$0xff] %v485
    %502 = vst [vmem:[%s3 + $0x40] sm:$0xff] %v486
    %503 = vst [vmem:[%s3 + $0x48] sm:$0xff] %v487
    %504 = vst [vmem:[%s3 + $0x50] sm:$0xff] %v488
    %505 = vst [vmem:[%s3 + $0x58] sm:$0xff] %v489
    %506 = vst [vmem:[%s3 + $0x60] sm:$0xff] %v490
    %507 = vst [vmem:[%s3 + $0x68] sm:$0xff] %v491
    %508 = vst [vmem:[%s3 + $0x70] sm:$0xff] %v492
    %509 = vst [vmem:[%s3 + $0x78] sm:$0xff] %v493
  $region21: #{discriminator_forward.7} parent=0 // pred_fallthru
    _
  // Predicated region
  $region22: #{discriminator_forward.7} parent=0 // pred_check
    _
  $region23: #{discriminator_forward.7} parent=0 // pred_check_branch
    %511 = sbr.rel (0) target = $region25
  $region24: #{discriminator_forward.7} parent=0 // pred_region
    _
  $region25: #{discriminator_forward.7} parent=0 // pred_fallthru
    _
  // Predicated region
  $region26: #{discriminator_forward.7} parent=0 // pred_check
    _
  $region27: #{discriminator_forward.7} parent=0 // pred_check_branch
    %513 = sbr.rel (0) target = $region29
  $region28: #{discriminator_forward.7} parent=0 // pred_region
    _
  $region29: #{discriminator_forward.7} parent=0 // pred_fallthru
    _

// kernel: discriminator_forward.8
$region0: #{discriminator_forward.8}
  #allocation0 [shape = 'u32[]', space=smem, size = 0x4, offset = 0x4, fixed_abs, tag = 'smem constant byte address 0x4 - core index']
  #allocation1 [shape = 'u32[144,128]{1,0:T(1,128)}', space=vmem, size = 0x12000, scoped, tag = 'internal scratch']
  #allocation2 [shape = 'f32[32,128]{1,0:T(8,128)}', space=vmem, size = 0x4000, scoped, tag = 'scratch operand']
  %s0 = inlined_call_operand.vmem [shape: bf16[32,512], index: 0, kind: input, shape index: {}]
  %s1 = inlined_call_operand.vmem [shape: bf16[512,128], index: 1, kind: input, shape index: {}]
  %s2 = inlined_call_operand.vmem [shape: f32[1,128], index: 2, kind: input, shape index: {}]
  %s3 = inlined_call_operand.vmem [shape: f32[32,128], index: 3, kind: output, shape index: {}]
  %s4 = sld [smem:[#allocation0]]
  $region30: #{discriminator_forward.8} parent=0
    _
  %s6 = ssub.s32 1, %s4
  %s7 = scalar_select 0, %s6, %s4
  // Predicated region
  $region2: #{discriminator_forward.8} parent=0 // pred_check
    _
  $region3: #{discriminator_forward.8} parent=0 // pred_check_branch
    %9 = sbr.rel (0) target = $region5
  $region4: #{discriminator_forward.8} parent=0 // pred_region
    _
  $region5: #{discriminator_forward.8} parent=0 // pred_fallthru
    _
  // Predicated region
  $region6: #{discriminator_forward.8} parent=0 // pred_check
    _
  $region7: #{discriminator_forward.8} parent=0 // pred_check_branch
    %11 = sbr.rel (0) target = $region9
  $region8: #{discriminator_forward.8} parent=0 // pred_region
    _
  $region9: #{discriminator_forward.8} parent=0 // pred_fallthru
    _
  // Predicated region
  $region10: #{discriminator_forward.8} parent=0 // pred_check
    _
  $region11: #{discriminator_forward.8} parent=0 // pred_check_branch
    %13 = sbr.rel (0) target = $region13
  $region12: #{discriminator_forward.8} parent=0 // pred_region
    _
  $region13: #{discriminator_forward.8} parent=0 // pred_fallthru
    _
  %p15 = scmp.eq.s32.totalorder 0, 0
  // Predicated region
  $region14: #{discriminator_forward.8} parent=0 // pred_check
    %p16 = pneg %p15
  $region15: #{discriminator_forward.8} parent=0 // pred_check_branch
    %18 = sbr.rel (%p16) target = $region17
  $region16: #{discriminator_forward.8} parent=0 // pred_region
    %19 = vst [vmem:[#allocation2] sm:$0xff] 0.0
    %20 = vst [vmem:[#allocation2 + $0x8] sm:$0xff] 0.0
    %21 = vst [vmem:[#allocation2 + $0x10] sm:$0xff] 0.0
    %22 = vst [vmem:[#allocation2 + $0x18] sm:$0xff] 0.0
  $region17: #{discriminator_forward.8} parent=0 // pred_fallthru
    _
  %v23 = vld [vmem:[#allocation2] sm:$0xff]
  %v24 = vld [vmem:[#allocation2 + $0x8] sm:$0xff]
  %v25 = vld [vmem:[#allocation2 + $0x10] sm:$0xff]
  %v26 = vld [vmem:[#allocation2 + $0x18] sm:$0xff]
  %v27 = vld [vmem:[%s0] sm:$0xff]
  %v28 = vld [vmem:[%s0 + $0x8] sm:$0xff]
  %v29 = vld [vmem:[%s0 + $0x10] sm:$0xff]
  %v30 = vld [vmem:[%s0 + $0x18] sm:$0xff]
  %v31 = vld [vmem:[%s0 + $0x20] sm:$0xff]
  %v32 = vld [vmem:[%s0 + $0x28] sm:$0xff]
  %v33 = vld [vmem:[%s0 + $0x30] sm:$0xff]
  %v34 = vld [vmem:[%s0 + $0x38] sm:$0xff]
  %v35 = vld [vmem:[%s1] sm:$0xf]
  %v36 = vld [vmem:[%s1 + $0x4] sm:$0xf]
  %v37 = vld [vmem:[%s1 + $0x8] sm:$0xf]
  %v38 = vld [vmem:[%s1 + $0xc] sm:$0xf]
  %v39 = vld [vmem:[%s1 + $0x10] sm:$0xf]
  %v40 = vld [vmem:[%s1 + $0x14] sm:$0xf]
  %v41 = vld [vmem:[%s1 + $0x18] sm:$0xf]
  %v42 = vld [vmem:[%s1 + $0x1c] sm:$0xf]
  %v43 = vld [vmem:[%s1 + $0x20] sm:$0xf]
  %v44 = vld [vmem:[%s1 + $0x24] sm:$0xf]
  %v45 = vld [vmem:[%s1 + $0x28] sm:$0xf]
  %v46 = vld [vmem:[%s1 + $0x2c] sm:$0xf]
  %v47 = vld [vmem:[%s1 + $0x30] sm:$0xf]
  %v48 = vld [vmem:[%s1 + $0x34] sm:$0xf]
  %v49 = vld [vmem:[%s1 + $0x38] sm:$0xf]
  %v50 = vld [vmem:[%s1 + $0x3c] sm:$0xf]
  %v51 = vld [vmem:[%s1 + $0x40] sm:$0xf]
  %v52 = vld [vmem:[%s1 + $0x44] sm:$0xf]
  %v53 = vld [vmem:[%s1 + $0x48] sm:$0xf]
  %v54 = vld [vmem:[%s1 + $0x4c] sm:$0xf]
  %v55 = vld [vmem:[%s1 + $0x50] sm:$0xf]
  %v56 = vld [vmem:[%s1 + $0x54] sm:$0xf]
  %v57 = vld [vmem:[%s1 + $0x58] sm:$0xf]
  %v58 = vld [vmem:[%s1 + $0x5c] sm:$0xf]
  %v59 = vld [vmem:[%s1 + $0x60] sm:$0xf]
  %v60 = vld [vmem:[%s1 + $0x64] sm:$0xf]
  %v61 = vld [vmem:[%s1 + $0x68] sm:$0xf]
  %v62 = vld [vmem:[%s1 + $0x6c] sm:$0xf]
  %v63 = vld [vmem:[%s1 + $0x70] sm:$0xf]
  %v64 = vld [vmem:[%s1 + $0x74] sm:$0xf]
  %v65 = vld [vmem:[%s1 + $0x78] sm:$0xf]
  %v66 = vld [vmem:[%s1 + $0x7c] sm:$0xf]
  %v67 = vld [vmem:[%s1 + $0x80] sm:$0xf]
  %v68 = vld [vmem:[%s1 + $0x84] sm:$0xf]
  %v69 = vld [vmem:[%s1 + $0x88] sm:$0xf]
  %v70 = vld [vmem:[%s1 + $0x8c] sm:$0xf]
  %v71 = vld [vmem:[%s1 + $0x90] sm:$0xf]
  %v72 = vld [vmem:[%s1 + $0x94] sm:$0xf]
  %v73 = vld [vmem:[%s1 + $0x98] sm:$0xf]
  %v74 = vld [vmem:[%s1 + $0x9c] sm:$0xf]
  %v75 = vld [vmem:[%s1 + $0xa0] sm:$0xf]
  %v76 = vld [vmem:[%s1 + $0xa4] sm:$0xf]
  %v77 = vld [vmem:[%s1 + $0xa8] sm:$0xf]
  %v78 = vld [vmem:[%s1 + $0xac] sm:$0xf]
  %v79 = vld [vmem:[%s1 + $0xb0] sm:$0xf]
  %v80 = vld [vmem:[%s1 + $0xb4] sm:$0xf]
  %v81 = vld [vmem:[%s1 + $0xb8] sm:$0xf]
  %v82 = vld [vmem:[%s1 + $0xbc] sm:$0xf]
  %v83 = vld [vmem:[%s1 + $0xc0] sm:$0xf]
  %v84 = vld [vmem:[%s1 + $0xc4] sm:$0xf]
  %v85 = vld [vmem:[%s1 + $0xc8] sm:$0xf]
  %v86 = vld [vmem:[%s1 + $0xcc] sm:$0xf]
  %v87 = vld [vmem:[%s1 + $0xd0] sm:$0xf]
  %v88 = vld [vmem:[%s1 + $0xd4] sm:$0xf]
  %v89 = vld [vmem:[%s1 + $0xd8] sm:$0xf]
  %v90 = vld [vmem:[%s1 + $0xdc] sm:$0xf]
  %v91 = vld [vmem:[%s1 + $0xe0] sm:$0xf]
  %v92 = vld [vmem:[%s1 + $0xe4] sm:$0xf]
  %v93 = vld [vmem:[%s1 + $0xe8] sm:$0xf]
  %v94 = vld [vmem:[%s1 + $0xec] sm:$0xf]
  %v95 = vld [vmem:[%s1 + $0xf0] sm:$0xf]
  %v96 = vld [vmem:[%s1 + $0xf4] sm:$0xf]
  %v97 = vld [vmem:[%s1 + $0xf8] sm:$0xf]
  %v98 = vld [vmem:[%s1 + $0xfc] sm:$0xf]
  %v107 = vunpack.c.l.b16 %v27
  %v108 = vunpack.c.h.b16 %v27
  %v109 = vunpack.c.l.b16 %v28
  %v110 = vunpack.c.h.b16 %v28
  %v111 = vunpack.c.l.b16 %v29
  %v112 = vunpack.c.h.b16 %v29
  %v113 = vunpack.c.l.b16 %v30
  %v114 = vunpack.c.h.b16 %v30
  %v115 = vunpack.c.l.b16 %v31
  %v116 = vunpack.c.h.b16 %v31
  %v117 = vunpack.c.l.b16 %v32
  %v118 = vunpack.c.h.b16 %v32
  %v119 = vunpack.c.l.b16 %v33
  %v120 = vunpack.c.h.b16 %v33
  %v121 = vunpack.c.l.b16 %v34
  %v122 = vunpack.c.h.b16 %v34
  %v123 = vpack.c.b16 %v111, %v107
  %v124 = vpack.c.b16 %v112, %v108
  %v125 = vpack.c.b16 %v113, %v109
  %v126 = vpack.c.b16 %v114, %v110
  %v127 = vpack.c.b16 %v119, %v115
  %v128 = vpack.c.b16 %v120, %v116
  %v129 = vpack.c.b16 %v121, %v117
  %v130 = vpack.c.b16 %v122, %v118
  %v203 = vunpack.c.l.b16 %v35
  %v204 = vunpack.c.l.b16 %v36
  %v205 = vunpack.c.l.b16 %v37
  %v206 = vunpack.c.l.b16 %v38
  %v207 = vunpack.c.l.b16 %v39
  %v208 = vunpack.c.l.b16 %v40
  %v209 = vunpack.c.l.b16 %v41
  %v210 = vunpack.c.l.b16 %v42
  %v211 = vunpack.c.l.b16 %v43
  %v212 = vunpack.c.l.b16 %v44
  %v213 = vunpack.c.l.b16 %v45
  %v214 = vunpack.c.l.b16 %v46
  %v215 = vunpack.c.l.b16 %v47
  %v216 = vunpack.c.l.b16 %v48
  %v217 = vunpack.c.l.b16 %v49
  %v218 = vunpack.c.l.b16 %v50
  %v219 = vunpack.c.l.b16 %v51
  %v220 = vunpack.c.l.b16 %v52
  %v221 = vunpack.c.l.b16 %v53
  %v222 = vunpack.c.l.b16 %v54
  %v223 = vunpack.c.l.b16 %v55
  %v224 = vunpack.c.l.b16 %v56
  %v225 = vunpack.c.l.b16 %v57
  %v226 = vunpack.c.l.b16 %v58
  %v227 = vunpack.c.l.b16 %v59
  %v228 = vunpack.c.l.b16 %v60
  %v229 = vunpack.c.l.b16 %v61
  %v230 = vunpack.c.l.b16 %v62
  %v231 = vunpack.c.l.b16 %v63
  %v232 = vunpack.c.l.b16 %v64
  %v233 = vunpack.c.l.b16 %v65
  %v234 = vunpack.c.l.b16 %v66
  %v235 = vunpack.c.l.b16 %v67
  %v236 = vunpack.c.l.b16 %v68
  %v237 = vunpack.c.l.b16 %v69
  %v238 = vunpack.c.l.b16 %v70
  %v239 = vunpack.c.l.b16 %v71
  %v240 = vunpack.c.l.b16 %v72
  %v241 = vunpack.c.l.b16 %v73
  %v242 = vunpack.c.l.b16 %v74
  %v243 = vunpack.c.l.b16 %v75
  %v244 = vunpack.c.l.b16 %v76
  %v245 = vunpack.c.l.b16 %v77
  %v246 = vunpack.c.l.b16 %v78
  %v247 = vunpack.c.l.b16 %v79
  %v248 = vunpack.c.l.b16 %v80
  %v249 = vunpack.c.l.b16 %v81
  %v250 = vunpack.c.l.b16 %v82
  %v251 = vunpack.c.l.b16 %v83
  %v252 = vunpack.c.l.b16 %v84
  %v253 = vunpack.c.l.b16 %v85
  %v254 = vunpack.c.l.b16 %v86
  %v255 = vunpack.c.l.b16 %v87
  %v256 = vunpack.c.l.b16 %v88
  %v257 = vunpack.c.l.b16 %v89
  %v258 = vunpack.c.l.b16 %v90
  %v259 = vunpack.c.l.b16 %v91
  %v260 = vunpack.c.l.b16 %v92
  %v261 = vunpack.c.l.b16 %v93
  %v262 = vunpack.c.l.b16 %v94
  %v263 = vunpack.c.l.b16 %v95
  %v264 = vunpack.c.l.b16 %v96
  %v265 = vunpack.c.l.b16 %v97
  %v266 = vunpack.c.l.b16 %v98
  %v267 = vpack.c.b16 %v204, %v203
  %v268 = vpack.c.b16 %v206, %v205
  %v269 = vpack.c.b16 %v208, %v207
  %v270 = vpack.c.b16 %v210, %v209
  %v271 = vpack.c.b16 %v212, %v211
  %v272 = vpack.c.b16 %v214, %v213
  %v273 = vpack.c.b16 %v216, %v215
  %v274 = vpack.c.b16 %v218, %v217
  %v275 = vpack.c.b16 %v220, %v219
  %v276 = vpack.c.b16 %v222, %v221
  %v277 = vpack.c.b16 %v224, %v223
  %v278 = vpack.c.b16 %v226, %v225
  %v279 = vpack.c.b16 %v228, %v227
  %v280 = vpack.c.b16 %v230, %v229
  %v281 = vpack.c.b16 %v232, %v231
  %v282 = vpack.c.b16 %v234, %v233
  %v283 = vpack.c.b16 %v236, %v235
  %v284 = vpack.c.b16 %v238, %v237
  %v285 = vpack.c.b16 %v240, %v239
  %v286 = vpack.c.b16 %v242, %v241
  %v287 = vpack.c.b16 %v244, %v243
  %v288 = vpack.c.b16 %v246, %v245
  %v289 = vpack.c.b16 %v248, %v247
  %v290 = vpack.c.b16 %v250, %v249
  %v291 = vpack.c.b16 %v252, %v251
  %v292 = vpack.c.b16 %v254, %v253
  %v293 = vpack.c.b16 %v256, %v255
  %v294 = vpack.c.b16 %v258, %v257
  %v295 = vpack.c.b16 %v260, %v259
  %v296 = vpack.c.b16 %v262, %v261
  %v297 = vpack.c.b16 %v264, %v263
  %v298 = vpack.c.b16 %v266, %v265
  %331 = vmatprep.subr.bf16.mxu0 0
  %332 = vmatpush1.bf16.msra.mxu0 %v267
  %333 = vmatprep.subr.bf16.mxu0 0
  %334 = vmatpush1.bf16.msra.mxu0 %v268
  %335 = vmatprep.subr.bf16.mxu0 0
  %336 = vmatpush1.bf16.msra.mxu0 %v269
  %337 = vmatprep.subr.bf16.mxu0 0
  %338 = vmatpush1.bf16.msra.mxu0 %v270
  %339 = vmatprep.subr.bf16.mxu0 0
  %340 = vmatpush1.bf16.msra.mxu0 %v271
  %341 = vmatprep.subr.bf16.mxu0 0
  %342 = vmatpush1.bf16.msra.mxu0 %v272
  %343 = vmatprep.subr.bf16.mxu0 0
  %344 = vmatpush1.bf16.msra.mxu0 %v273
  %345 = vmatprep.subr.bf16.mxu0 0
  %346 = vmatpush1.bf16.msra.mxu0 %v274
  %347 = vmatprep.subr.bf16.mxu0 0
  %348 = vmatpush1.bf16.msra.mxu0 %v275
  %349 = vmatprep.subr.bf16.mxu0 0
  %350 = vmatpush1.bf16.msra.mxu0 %v276
  %351 = vmatprep.subr.bf16.mxu0 0
  %352 = vmatpush1.bf16.msra.mxu0 %v277
  %353 = vmatprep.subr.bf16.mxu0 0
  %354 = vmatpush1.bf16.msra.mxu0 %v278
  %355 = vmatprep.subr.bf16.mxu0 0
  %356 = vmatpush1.bf16.msra.mxu0 %v279
  %357 = vmatprep.subr.bf16.mxu0 0
  %358 = vmatpush1.bf16.msra.mxu0 %v280
  %359 = vmatprep.subr.bf16.mxu0 0
  %360 = vmatpush1.bf16.msra.mxu0 %v281
  %361 = vmatprep.subr.bf16.mxu0 0
  %362 = vmatpush1.bf16.msra.mxu0 %v282
  %363 = vmatprep.mubr.bf16.mxu0 %v124
  %364 = vmatmul.mubr.bf16.gmra.mrb[0].mxu0 %v123
  %v365 = vpop.f32.mrb[0].mxu0
  %v366 = vadd.f32 0.0, %v365
  %v367 = vpop.f32.mrb[0].mxu0
  %v368 = vpop.f32.mrb[0].mxu0
  %v369 = vadd.f32 0.0, %v368
  %v370 = vpop.f32.mrb[0].mxu0
  %371 = vmatprep.mubr.bf16.mxu0 %v128
  %372 = vmatmul.mubr.bf16.gmra.mrb[0].mxu0 %v127
  %v373 = vpop.f32.mrb[0].mxu0
  %v374 = vadd.f32 0.0, %v373
  %v375 = vpop.f32.mrb[0].mxu0
  %v376 = vpop.f32.mrb[0].mxu0
  %v377 = vadd.f32 0.0, %v376
  %v378 = vpop.f32.mrb[0].mxu0
  %379 = vdwg.mxu0
  %380 = vmatprep.subr.bf16.mxu0 0
  %381 = vmatpush1.bf16.msra.mxu0 %v283
  %382 = vmatprep.subr.bf16.mxu0 0
  %383 = vmatpush1.bf16.msra.mxu0 %v284
  %384 = vmatprep.subr.bf16.mxu0 0
  %385 = vmatpush1.bf16.msra.mxu0 %v285
  %386 = vmatprep.subr.bf16.mxu0 0
  %387 = vmatpush1.bf16.msra.mxu0 %v286
  %388 = vmatprep.subr.bf16.mxu0 0
  %389 = vmatpush1.bf16.msra.mxu0 %v287
  %390 = vmatprep.subr.bf16.mxu0 0
  %391 = vmatpush1.bf16.msra.mxu0 %v288
  %392 = vmatprep.subr.bf16.mxu0 0
  %393 = vmatpush1.bf16.msra.mxu0 %v289
  %394 = vmatprep.subr.bf16.mxu0 0
  %395 = vmatpush1.bf16.msra.mxu0 %v290
  %396 = vmatprep.subr.bf16.mxu0 0
  %397 = vmatpush1.bf16.msra.mxu0 %v291
  %398 = vmatprep.subr.bf16.mxu0 0
  %399 = vmatpush1.bf16.msra.mxu0 %v292
  %400 = vmatprep.subr.bf16.mxu0 0
  %401 = vmatpush1.bf16.msra.mxu0 %v293
  %402 = vmatprep.subr.bf16.mxu0 0
  %403 = vmatpush1.bf16.msra.mxu0 %v294
  %404 = vmatprep.subr.bf16.mxu0 0
  %405 = vmatpush1.bf16.msra.mxu0 %v295
  %406 = vmatprep.subr.bf16.mxu0 0
  %407 = vmatpush1.bf16.msra.mxu0 %v296
  %408 = vmatprep.subr.bf16.mxu0 0
  %409 = vmatpush1.bf16.msra.mxu0 %v297
  %410 = vmatprep.subr.bf16.mxu0 0
  %411 = vmatpush1.bf16.msra.mxu0 %v298
  %412 = vmatprep.mubr.bf16.mxu0 %v126
  %413 = vmatmul.mubr.bf16.gmra.mrb[0].mxu0 %v125
  %v414 = vpop.f32.mrb[0].mxu0
  %v415 = vadd.f32 %v366, %v414
  %v416 = vpop.f32.mrb[0].mxu0
  %v417 = vpop.f32.mrb[0].mxu0
  %v418 = vadd.f32 %v369, %v417
  %v419 = vpop.f32.mrb[0].mxu0
  %420 = vmatprep.mubr.bf16.mxu0 %v130
  %421 = vmatmul.mubr.bf16.gmra.mrb[0].mxu0 %v129
  %v422 = vpop.f32.mrb[0].mxu0
  %v423 = vadd.f32 %v374, %v422
  %v424 = vpop.f32.mrb[0].mxu0
  %v425 = vpop.f32.mrb[0].mxu0
  %v426 = vadd.f32 %v377, %v425
  %v427 = vpop.f32.mrb[0].mxu0
  %428 = vdwg.mxu0
  %v429 = vadd.f32 %v23, %v415
  %v430 = vadd.f32 %v24, %v418
  %v431 = vadd.f32 %v25, %v423
  %v432 = vadd.f32 %v26, %v426
  %433 = vst [vmem:[#allocation2] sm:$0xff] %v429
  %434 = vst [vmem:[#allocation2 + $0x8] sm:$0xff] %v430
  %435 = vst [vmem:[#allocation2 + $0x10] sm:$0xff] %v431
  %436 = vst [vmem:[#allocation2 + $0x18] sm:$0xff] %v432
  // Predicated region
  $region18: #{discriminator_forward.8} parent=0 // pred_check
    %p437 = pneg %p15
  $region19: #{discriminator_forward.8} parent=0 // pred_check_branch
    %439 = sbr.rel (%p437) target = $region21
  $region20: #{discriminator_forward.8} parent=0 // pred_region
    %v440 = vld [vmem:[#allocation2] sm:$0xff]
    %v441 = vld [vmem:[#allocation2 + $0x8] sm:$0xff]
    %v442 = vld [vmem:[#allocation2 + $0x10] sm:$0xff]
    %v443 = vld [vmem:[#allocation2 + $0x18] sm:$0xff]
    %v444 = vld [vmem:[%s2] sm:$0x1]
    %v446 = vlaneseq
    %v447 = vshrl.u32 %v446, 7
    %v448 = vsub.s32 0, %v447
    %v449 = vrot.slane %v444, %v448
    %v451 = vadd.f32 %v440, %v449
    %v452 = vadd.f32 %v441, %v449
    %v453 = vadd.f32 %v442, %v449
    %v454 = vadd.f32 %v443, %v449
    %vm455 = vcmp.ge.f32.partialorder %v451, 0.0
    %vm456 = vcmp.ge.f32.partialorder %v452, 0.0
    %vm457 = vcmp.ge.f32.partialorder %v453, 0.0
    %vm458 = vcmp.ge.f32.partialorder %v454, 0.0
    %v459 = vmul.f32 %v451, 0.01
    %v460 = vmul.f32 %v452, 0.01
    %v461 = vmul.f32 %v453, 0.01
    %v462 = vmul.f32 %v454, 0.01
    %v463 = vsel %vm455, %v451, %v459
    %v464 = vsel %vm456, %v452, %v460
    %v465 = vsel %vm457, %v453, %v461
    %v466 = vsel %vm458, %v454, %v462
    %467 = vst [vmem:[%s3] sm:$0xff] %v463
    %468 = vst [vmem:[%s3 + $0x8] sm:$0xff] %v464
    %469 = vst [vmem:[%s3 + $0x10] sm:$0xff] %v465
    %470 = vst [vmem:[%s3 + $0x18] sm:$0xff] %v466
  $region21: #{discriminator_forward.8} parent=0 // pred_fallthru
    _
  // Predicated region
  $region22: #{discriminator_forward.8} parent=0 // pred_check
    _
  $region23: #{discriminator_forward.8} parent=0 // pred_check_branch
    %472 = sbr.rel (0) target = $region25
  $region24: #{discriminator_forward.8} parent=0 // pred_region
    _
  $region25: #{discriminator_forward.8} parent=0 // pred_fallthru
    _
  // Predicated region
  $region26: #{discriminator_forward.8} parent=0 // pred_check
    _
  $region27: #{discriminator_forward.8} parent=0 // pred_check_branch
    %474 = sbr.rel (0) target = $region29
  $region28: #{discriminator_forward.8} parent=0 // pred_region
    _
  $region29: #{discriminator_forward.8} parent=0 // pred_fallthru
    _

// kernel: discriminator_forward.9
$region0: #{discriminator_forward.9}
  #allocation0 [shape = 'u32[]', space=smem, size = 0x4, offset = 0x4, fixed_abs, tag = 'smem constant byte address 0x4 - core index']
  #allocation1 [shape = 'u32[144,128]{1,0:T(1,128)}', space=vmem, size = 0x12000, scoped, tag = 'internal scratch']
  #allocation2 [shape = 'f32[16,128]{1,0:T(8,128)}', space=vmem, size = 0x2000, scoped, tag = 'scratch operand']
  %s0 = inlined_call_operand.vmem [shape: bf16[16,1024], index: 0, kind: input, shape index: {}]
  %s1 = inlined_call_operand.vmem [shape: bf16[1024,128], index: 1, kind: input, shape index: {}]
  %s2 = inlined_call_operand.vmem [shape: f32[1,128], index: 2, kind: input, shape index: {}]
  %s3 = inlined_call_operand.vmem [shape: f32[16,128], index: 3, kind: output, shape index: {}]
  %s4 = sld [smem:[#allocation0]]
  $region76: #{discriminator_forward.9} parent=0
    _
  %s6 = ssub.s32 1, %s4
  %s7 = scalar_select 0, %s6, %s4
  $region1: #{discriminator_forward.9} parent=0
    #allocation3 [shape = 'u8[32768]{0}', space=vmem, size = 0x8000, scoped, tag = 'input window, operand 0']
    loop: start=0, step=1, limit=4
    $region2: #{discriminator_forward.9} parent=1 // loop_pre_header
      _
    $region3: #{discriminator_forward.9} parent=1 // loop_header
      %s9 = sphi 0, %s13
      %p10 = scmp.ge.s32.totalorder %s9, 4
      %s16 = sphi 0, %s35
      %s17 = sphi 0, %s31
      %s18 = sphi 0, %s27
      %s19 = sphi 0, %s16
      %s20 = sphi 0, %s17
      %s21 = sphi 0, %s18
      %s22 = sphi 0, %s19
      %s23 = sphi 0, %s20
      %s24 = sphi 0, %s21
      %s40 = sphi 0, %s42
      %s43 = sphi 0, %s40
      %s44 = sphi 0, %s43
      %s60 = sphi 0, %s44
      %s68 = sphi 0, %s70
      %s71 = sphi 0, %s68
      %s72 = sphi 0, %s71
      %s88 = sphi 0, %s72
      %s94 = sphi 0, %s96
      %s97 = sphi 0, %s94
      %s98 = sphi 0, %s97
      %s114 = sphi 0, %s98
      %s122 = sphi 0, %s124
      %s125 = sphi 0, %s122
      %s126 = sphi 0, %s125
      %s142 = sphi 0, %s126
    $region4: #{discriminator_forward.9} parent=1 // loop_header_branch
      %12 = sbr.rel (%p10) target = $region8
    $region5: #{discriminator_forward.9} parent=1 // loop_body
      %s14 = ssub.s32 %s9, 1
      %s15 = ssub.s32 %s9, 2
      %s25 = sadd.s32 1, %s18
      %p26 = scmp.ge.s32.totalorder %s25, 2
      %s27 = scalar_select %p26, 0, %s25
      %s28 = sadd.s32 1, %s17
      %s29 = scalar_select %p26, %s28, %s17
      %p30 = scmp.ge.s32.totalorder %s29, 1
      %s31 = scalar_select %p30, 0, %s29
      %s32 = sadd.s32 1, %s16
      %s33 = scalar_select %p30, %s32, %s16
      %p34 = scmp.ge.s32.totalorder %s33, 1
      %s35 = scalar_select %p34, 0, %s33
      %s36 = ssub.s32 %s16, %s35
      %s37 = ssub.s32 %s18, %s27
      %s38 = sor.u32 %s36, %s37
      %p39 = scmp.eq.s32.totalorder %s38, 0
      %s41 = sadd.s32 %s40, 1
      %s42 = scalar_select %p39, %s40, %s41
      %p45 = pneg %p39
      %p46 = scmp.eq.s32.totalorder %s9, 1
      %p47 = por %p45, %p46
      %p48 = scmp.ne.s32.totalorder %s40, %s43
      %p49 = scmp.eq.s32.totalorder %s9, 0
      %p50 = por %p48, %p49
      %p51 = scmp.ne.s32.totalorder %s40, %s43
      %p52 = scmp.eq.s32.totalorder %s14, 1
      %p53 = por %p51, %p52
      %p54 = scmp.ne.s32.totalorder %s43, %s44
      %p55 = scmp.eq.s32.totalorder %s14, 0
      %p56 = por %p54, %p55
      %p57 = scmp.ne.s32.totalorder %s43, %s44
      %p58 = scmp.eq.s32.totalorder %s15, 1
      %p59 = por %p57, %p58
      %p61 = scmp.ne.s32.totalorder %s44, %s60
      %p62 = scmp.eq.s32.totalorder %s15, 0
      %p63 = por %p61, %p62
      %s64 = ssub.s32 %s18, %s27
      %s65 = ssub.s32 %s17, %s31
      %s66 = sor.u32 %s64, %s65
      %p67 = scmp.eq.s32.totalorder %s66, 0
      %s69 = sadd.s32 %s68, 1
      %s70 = scalar_select %p67, %s68, %s69
      %p73 = pneg %p67
      %p74 = scmp.eq.s32.totalorder %s9, 1
      %p75 = por %p73, %p74
      %p76 = scmp.ne.s32.totalorder %s68, %s71
      %p77 = scmp.eq.s32.totalorder %s9, 0
      %p78 = por %p76, %p77
      %p79 = scmp.ne.s32.totalorder %s68, %s71
      %p80 = scmp.eq.s32.totalorder %s14, 1
      %p81 = por %p79, %p80
      %p82 = scmp.ne.s32.totalorder %s71, %s72
      %p83 = scmp.eq.s32.totalorder %s14, 0
      %p84 = por %p82, %p83
      %p85 = scmp.ne.s32.totalorder %s71, %s72
      %p86 = scmp.eq.s32.totalorder %s15, 1
      %p87 = por %p85, %p86
      %p89 = scmp.ne.s32.totalorder %s72, %s88
      %p90 = scmp.eq.s32.totalorder %s15, 0
      %p91 = por %p89, %p90
      %s92 = ssub.s32 %s17, %s31
      %p93 = scmp.eq.s32.totalorder %s92, 0
      %s95 = sadd.s32 %s94, 1
      %s96 = scalar_select %p93, %s94, %s95
      %p99 = pneg %p93
      %p100 = scmp.eq.s32.totalorder %s9, 1
      %p101 = por %p99, %p100
      %p102 = scmp.ne.s32.totalorder %s94, %s97
      %p103 = scmp.eq.s32.totalorder %s9, 0
      %p104 = por %p102, %p103
      %p105 = scmp.ne.s32.totalorder %s94, %s97
      %p106 = scmp.eq.s32.totalorder %s14, 1
      %p107 = por %p105, %p106
      %p108 = scmp.ne.s32.totalorder %s97, %s98
      %p109 = scmp.eq.s32.totalorder %s14, 0
      %p110 = por %p108, %p109
      %p111 = scmp.ne.s32.totalorder %s97, %s98
      %p112 = scmp.eq.s32.totalorder %s15, 1
      %p113 = por %p111, %p112
      %p115 = scmp.ne.s32.totalorder %s98, %s114
      %p116 = scmp.eq.s32.totalorder %s15, 0
      %p117 = por %p115, %p116
      %s118 = ssub.s32 %s16, %s35
      %s119 = ssub.s32 %s17, %s31
      %s120 = sor.u32 %s118, %s119
      %p121 = scmp.eq.s32.totalorder %s120, 0
      %s123 = sadd.s32 %s122, 1
      %s124 = scalar_select %p121, %s122, %s123
      %p127 = pneg %p121
      %p128 = scmp.eq.s32.totalorder %s9, 1
      %p129 = por %p127, %p128
      %p130 = scmp.ne.s32.totalorder %s122, %s125
      %p131 = scmp.eq.s32.totalorder %s9, 0
      %p132 = por %p130, %p131
      %p133 = scmp.ne.s32.totalorder %s122, %s125
      %p134 = scmp.eq.s32.totalorder %s14, 1
      %p135 = por %p133, %p134
      %p136 = scmp.ne.s32.totalorder %s125, %s126
      %p137 = scmp.eq.s32.totalorder %s14, 0
      %p138 = por %p136, %p137
      %p139 = scmp.ne.s32.totalorder %s125, %s126
      %p140 = scmp.eq.s32.totalorder %s15, 1
      %p141 = por %p139, %p140
      %p143 = scmp.ne.s32.totalorder %s126, %s142
      %p144 = scmp.eq.s32.totalorder %s15, 0
      %p145 = por %p143, %p144
      %p146 = scmp.le.s32.totalorder 1, %s9
      %p147 = scmp.lt.s32.totalorder %s9, 3
      %p148 = pnand %p146, %p147
      %p149 = pneg %p148
      // Predicated region
      $region9: #{discriminator_forward.9} parent=5 // pred_check
        _
      $region10: #{discriminator_forward.9} parent=5 // pred_check_branch
        %151 = sbr.rel (%p148) target = $region12
      $region11: #{discriminator_forward.9} parent=5 // pred_region
        %s152 = ssub.s32 %s9, 1
        // Predicated region
        $region13: #{discriminator_forward.9} parent=11 // pred_check
          %p153 = pneg %p110
        $region14: #{discriminator_forward.9} parent=11 // pred_check_branch
          %155 = sbr.rel (%p153) target = $region16
        $region15: #{discriminator_forward.9} parent=11 // pred_region
          %p156 = scmp.lt.s32.totalorder %s20, 0
          %s157 = scalar_select %p156, %s20, 0
          %s158 = scalar_lea.vmem %s2, %s157
        $region16: #{discriminator_forward.9} parent=11 // pred_fallthru
          _
      $region12: #{discriminator_forward.9} parent=5 // pred_fallthru
        _
      %p159 = scmp.lt.s32.totalorder %s9, 2
      // Predicated region
      $region17: #{discriminator_forward.9} parent=5 // pred_check
        %p160 = pneg %p159
      $region18: #{discriminator_forward.9} parent=5 // pred_check_branch
        %162 = sbr.rel (%p160) target = $region20
      $region19: #{discriminator_forward.9} parent=5 // pred_region
        // Predicated region
        $region21: #{discriminator_forward.9} parent=19 // pred_check
          %p163 = pneg %p50
        $region22: #{discriminator_forward.9} parent=19 // pred_check_branch
          %165 = sbr.rel (%p163) target = $region24
        $region23: #{discriminator_forward.9} parent=19 // pred_region
          %s166 = sand.u32 %s40, 1
          %s167 = sand.u32 %s40, 1
          %s168 = smul.addr %s167, 32
          %s169 = scalar_lea.vmem [#allocation3], %s168
          %s170 = smul.u32 2, %s16
          %s171 = smul.u32 4, %s18
          %s172 = smul.addr %s170, 8
          %s173 = sadd.s32 %s171, %s172
          %s174 = smul.addr %s173, 4
          %s175 = scalar_lea.vmem %s0, %s174
          // Predicated region
          $region25: #{discriminator_forward.9} parent=23 // pred_check
            _
          $region26: #{discriminator_forward.9} parent=23 // pred_check_branch
            %177 = sbr.rel (0) target = $region28
          $region27: #{discriminator_forward.9} parent=23 // pred_region
            // Predicated region
            $region29: #{discriminator_forward.9} parent=27 // pred_check
              _
            $region30: #{discriminator_forward.9} parent=27 // pred_check_branch
              %179 = sbr.rel (0) target = $region32
            $region31: #{discriminator_forward.9} parent=27 // pred_region
              loop: start=0, step=1, limit=1
              $region33: #{discriminator_forward.9} parent=31 // loop_pre_header
                _
              $region34: #{discriminator_forward.9} parent=31 // loop_header
                %s181 = sphi 0, %s185
                %p182 = scmp.ge.s32.totalorder %s181, 1
                %s186 = sphi %s175, %s175
                %s187 = sphi %s169, %s169
              $region35: #{discriminator_forward.9} parent=31 // loop_header_branch
                %184 = sbr.rel (%p182) target = $region39
              $region36: #{discriminator_forward.9} parent=31 // loop_body
                %v188 = vld [vmem:[%s186] sm:$0xff]
                %189 = vst [vmem:[%s187] sm:$0xff] %v188
                %v190 = vld [vmem:[%s186 + $0x8] sm:$0xff]
                %191 = vst [vmem:[%s187 + $0x8] sm:$0xff] %v190
                %v192 = vld [vmem:[%s186 + $0x20] sm:$0xff]
                %193 = vst [vmem:[%s187 + $0x10] sm:$0xff] %v192
                %v194 = vld [vmem:[%s186 + $0x28] sm:$0xff]
                %195 = vst [vmem:[%s187 + $0x18] sm:$0xff] %v194
              $region37: #{discriminator_forward.9} parent=31 // loop_footer
                %s185 = sadd.s32 1, %s181
              $region38: #{discriminator_forward.9} parent=31 // loop_footer_branch
                %180 = sbr.rel target = $region34
              $region39: #{discriminator_forward.9} parent=31 // loop_exit
                _
            $region32: #{discriminator_forward.9} parent=27 // pred_fallthru
              _
            // Predicated region
            $region40: #{discriminator_forward.9} parent=27 // pred_check
              _
            $region41: #{discriminator_forward.9} parent=27 // pred_check_branch
              %197 = sbr.rel target = $region43
            $region42: #{discriminator_forward.9} parent=27 // pred_region
              _
            $region43: #{discriminator_forward.9} parent=27 // pred_fallthru
              _
          $region28: #{discriminator_forward.9} parent=23 // pred_fallthru
            _
          %198 = vnop
        $region24: #{discriminator_forward.9} parent=19 // pred_fallthru
          _
        // Predicated region
        $region44: #{discriminator_forward.9} parent=19 // pred_check
          %p199 = pneg %p78
        $region45: #{discriminator_forward.9} parent=19 // pred_check_branch
          %201 = sbr.rel (%p199) target = $region47
        $region46: #{discriminator_forward.9} parent=19 // pred_region
          %s202 = smul.u32 64, %s18
          %p203 = scmp.lt.s32.totalorder %s202, 127
          %s204 = scalar_select %p203, %s202, 127
          %p205 = scmp.lt.s32.totalorder %s17, 0
          %s206 = scalar_select %p205, %s17, 0
          %s207 = sadd.s32 %s206, %s204
          %s208 = smul.addr %s207, 4
          %s209 = scalar_lea.vmem %s1, %s208
          %s210 = smul.u32 64, %s18
        $region47: #{discriminator_forward.9} parent=19 // pred_fallthru
          _
      $region20: #{discriminator_forward.9} parent=5 // pred_fallthru
        _
      %p211 = scmp.le.s32.totalorder 1, %s9
      %p212 = scmp.lt.s32.totalorder %s9, 3
      %p213 = pnand %p211, %p212
      %p214 = pneg %p213
      // Predicated region
      $region48: #{discriminator_forward.9} parent=5 // pred_check
        _
      $region49: #{discriminator_forward.9} parent=5 // pred_check_branch
        %216 = sbr.rel (%p213) target = $region51
      $region50: #{discriminator_forward.9} parent=5 // pred_region
        %s217 = ssub.s32 %s9, 1
        %s218 = sand.u32 %s43, 1
        %s219 = sand.u32 %s43, 1
        %s220 = smul.addr %s219, 32
        %s221 = scalar_lea.vmem [#allocation3], %s220
        // Predicated region
        $region52: #{discriminator_forward.9} parent=50 // pred_check
          %p222 = pneg %p56
        $region53: #{discriminator_forward.9} parent=50 // pred_check_branch
          %224 = sbr.rel (%p222) target = $region55
        $region54: #{discriminator_forward.9} parent=50 // pred_region
          _
        $region55: #{discriminator_forward.9} parent=50 // pred_fallthru
          _
        %s225 = sand.u32 %s43, 1
        %s226 = sand.u32 %s43, 1
        %s227 = smul.addr %s226, 32
        %s228 = scalar_lea.vmem [#allocation3], %s227
        %p229 = pneg %p56
        %p230 = pneg %p53
        %s231 = smul.u32 64, %s21
        %p232 = scmp.lt.s32.totalorder %s231, 127
        %s233 = scalar_select %p232, %s231, 127
        %p234 = scmp.lt.s32.totalorder %s20, 0
        %s235 = scalar_select %p234, %s20, 0
        %s236 = sadd.s32 %s235, %s233
        %s237 = smul.addr %s236, 4
        %s238 = scalar_lea.vmem %s1, %s237
        %p239 = pneg %p84
        %p240 = pneg %p81
        %p241 = scmp.lt.s32.totalorder %s20, 0
        %s242 = scalar_select %p241, %s20, 0
        %s243 = scalar_lea.vmem %s2, %s242
        %p244 = pneg %p110
        %p245 = pneg %p107
        %p246 = pneg %p138
        %p247 = pneg %p135
        %s248 = smul.u32 2, %s19
        %p249 = scmp.lt.s32.totalorder %s248, 1
        %s250 = scalar_select %p249, %s248, 1
        %p251 = scmp.lt.s32.totalorder %s20, 0
        %s252 = scalar_select %p251, %s20, 0
        %s253 = sadd.s32 %s252, %s250
        %s254 = smul.addr %s253, 8
        %s255 = scalar_lea.vmem %s3, %s254
        %s256 = smul.u32 2, %s19
        %s257 = smul.u32 4, %s21
        %s258 = smul.u32 64, %s21
        %p259 = scmp.lt.s32.totalorder %s258, 127
        %s260 = scalar_select %p259, %s258, 127
        %p261 = scmp.lt.s32.totalorder %s20, 0
        %s262 = scalar_select %p261, %s20, 0
        %s263 = sadd.s32 %s262, %s260
        %s264 = smul.addr %s263, 4
        %s265 = scalar_lea.vmem %s1, %s264
        %s266 = smul.u32 64, %s21
        %p267 = scmp.lt.s32.totalorder %s20, 0
        %s268 = scalar_select %p267, %s20, 0
        %s269 = scalar_lea.vmem %s2, %s268
        %s270 = smul.u32 2, %s19
        %p271 = scmp.lt.s32.totalorder %s270, 1
        %s272 = scalar_select %p271, %s270, 1
        %p273 = scmp.lt.s32.totalorder %s20, 0
        %s274 = scalar_select %p273, %s20, 0
        %s275 = sadd.s32 %s274, %s272
        %s276 = smul.addr %s275, 8
        %s277 = scalar_lea.vmem %s3, %s276
        %s278 = smul.u32 2, %s19
        %p280 = scmp.eq.s32.totalorder %s21, 0
        // Predicated region
        $region56: #{discriminator_forward.9} parent=50 // pred_check
          %p281 = pneg %p280
        $region57: #{discriminator_forward.9} parent=50 // pred_check_branch
          %283 = sbr.rel (%p281) target = $region59
        $region58: #{discriminator_forward.9} parent=50 // pred_region
          %284 = vst [vmem:[#allocation2] sm:$0xff] 0.0
          %285 = vst [vmem:[#allocation2 + $0x8] sm:$0xff] 0.0
        $region59: #{discriminator_forward.9} parent=50 // pred_fallthru
          _
        %v286 = vld [vmem:[#allocation2] sm:$0xff]
        %v287 = vld [vmem:[#allocation2 + $0x8] sm:$0xff]
        %v288 = vld [vmem:[%s221] sm:$0xff]
        %v289 = vld [vmem:[%s221 + $0x8] sm:$0xff]
        %v290 = vld [vmem:[%s221 + $0x10] sm:$0xff]
        %v291 = vld [vmem:[%s221 + $0x18] sm:$0xff]
        %v292 = vld [vmem:[%s265] sm:$0xf]
        %v293 = vld [vmem:[%s265 + $0x4] sm:$0xf]
        %v294 = vld [vmem:[%s265 + $0x8] sm:$0xf]
        %v295 = vld [vmem:[%s265 + $0xc] sm:$0xf]
        %v296 = vld [vmem:[%s265 + $0x10] sm:$0xf]
        %v297 = vld [vmem:[%s265 + $0x14] sm:$0xf]
        %v298 = vld [vmem:[%s265 + $0x18] sm:$0xf]
        %v299 = vld [vmem:[%s265 + $0x1c] sm:$0xf]
        %v300 = vld [vmem:[%s265 + $0x20] sm:$0xf]
        %v301 = vld [vmem:[%s265 + $0x24] sm:$0xf]
        %v302 = vld [vmem:[%s265 + $0x28] sm:$0xf]
        %v303 = vld [vmem:[%s265 + $0x2c] sm:$0xf]
        %v304 = vld [vmem:[%s265 + $0x30] sm:$0xf]
        %v305 = vld [vmem:[%s265 + $0x34] sm:$0xf]
        %v306 = vld [vmem:[%s265 + $0x38] sm:$0xf]
        %v307 = vld [vmem:[%s265 + $0x3c] sm:$0xf]
        %v308 = vld [vmem:[%s265 + $0x40] sm:$0xf]
        %v309 = vld [vmem:[%s265 + $0x44] sm:$0xf]
        %v310 = vld [vmem:[%s265 + $0x48] sm:$0xf]
        %v311 = vld [vmem:[%s265 + $0x4c] sm:$0xf]
        %v312 = vld [vmem:[%s265 + $0x50] sm:$0xf]
        %v313 = vld [vmem:[%s265 + $0x54] sm:$0xf]
        %v314 = vld [vmem:[%s265 + $0x58] sm:$0xf]
        %v315 = vld [vmem:[%s265 + $0x5c] sm:$0xf]
        %v316 = vld [vmem:[%s265 + $0x60] sm:$0xf]
        %v317 = vld [vmem:[%s265 + $0x64] sm:$0xf]
        %v318 = vld [vmem:[%s265 + $0x68] sm:$0xf]
        %v319 = vld [vmem:[%s265 + $0x6c] sm:$0xf]
        %v320 = vld [vmem:[%s265 + $0x70] sm:$0xf]
        %v321 = vld [vmem:[%s265 + $0x74] sm:$0xf]
        %v322 = vld [vmem:[%s265 + $0x78] sm:$0xf]
        %v323 = vld [vmem:[%s265 + $0x7c] sm:$0xf]
        %v324 = vld [vmem:[%s265 + $0x80] sm:$0xf]
        %v325 = vld [vmem:[%s265 + $0x84] sm:$0xf]
        %v326 = vld [vmem:[%s265 + $0x88] sm:$0xf]
        %v327 = vld [vmem:[%s265 + $0x8c] sm:$0xf]
        %v328 = vld [vmem:[%s265 + $0x90] sm:$0xf]
        %v329 = vld [vmem:[%s265 + $0x94] sm:$0xf]
        %v330 = vld [vmem:[%s265 + $0x98] sm:$0xf]
        %v331 = vld [vmem:[%s265 + $0x9c] sm:$0xf]
        %v332 = vld [vmem:[%s265 + $0xa0] sm:$0xf]
        %v333 = vld [vmem:[%s265 + $0xa4] sm:$0xf]
        %v334 = vld [vmem:[%s265 + $0xa8] sm:$0xf]
        %v335 = vld [vmem:[%s265 + $0xac] sm:$0xf]
        %v336 = vld [vmem:[%s265 + $0xb0] sm:$0xf]
        %v337 = vld [vmem:[%s265 + $0xb4] sm:$0xf]
        %v338 = vld [vmem:[%s265 + $0xb8] sm:$0xf]
        %v339 = vld [vmem:[%s265 + $0xbc] sm:$0xf]
        %v340 = vld [vmem:[%s265 + $0xc0] sm:$0xf]
        %v341 = vld [vmem:[%s265 + $0xc4] sm:$0xf]
        %v342 = vld [vmem:[%s265 + $0xc8] sm:$0xf]
        %v343 = vld [vmem:[%s265 + $0xcc] sm:$0xf]
        %v344 = vld [vmem:[%s265 + $0xd0] sm:$0xf]
        %v345 = vld [vmem:[%s265 + $0xd4] sm:$0xf]
        %v346 = vld [vmem:[%s265 + $0xd8] sm:$0xf]
        %v347 = vld [vmem:[%s265 + $0xdc] sm:$0xf]
        %v348 = vld [vmem:[%s265 + $0xe0] sm:$0xf]
        %v349 = vld [vmem:[%s265 + $0xe4] sm:$0xf]
        %v350 = vld [vmem:[%s265 + $0xe8] sm:$0xf]
        %v351 = vld [vmem:[%s265 + $0xec] sm:$0xf]
        %v352 = vld [vmem:[%s265 + $0xf0] sm:$0xf]
        %v353 = vld [vmem:[%s265 + $0xf4] sm:$0xf]
        %v354 = vld [vmem:[%s265 + $0xf8] sm:$0xf]
        %v355 = vld [vmem:[%s265 + $0xfc] sm:$0xf]
        %v360 = vunpack.c.l.b16 %v288
        %v361 = vunpack.c.h.b16 %v288
        %v362 = vunpack.c.l.b16 %v289
        %v363 = vunpack.c.h.b16 %v289
        %v364 = vunpack.c.l.b16 %v290
        %v365 = vunpack.c.h.b16 %v290
        %v366 = vunpack.c.l.b16 %v291
        %v367 = vunpack.c.h.b16 %v291
        %v368 = vpack.c.b16 %v364, %v360
        %v369 = vpack.c.b16 %v365, %v361
        %v370 = vpack.c.b16 %v366, %v362
        %v371 = vpack.c.b16 %v367, %v363
        %v440 = vunpack.c.l.b16 %v292
        %v441 = vunpack.c.l.b16 %v293
        %v442 = vunpack.c.l.b16 %v294
        %v443 = vunpack.c.l.b16 %v295
        %v444 = vunpack.c.l.b16 %v296
        %v445 = vunpack.c.l.b16 %v297
        %v446 = vunpack.c.l.b16 %v298
        %v447 = vunpack.c.l.b16 %v299
        %v448 = vunpack.c.l.b16 %v300
        %v449 = vunpack.c.l.b16 %v301
        %v450 = vunpack.c.l.b16 %v302
        %v451 = vunpack.c.l.b16 %v303
        %v452 = vunpack.c.l.b16 %v304
        %v453 = vunpack.c.l.b16 %v305
        %v454 = vunpack.c.l.b16 %v306
        %v455 = vunpack.c.l.b16 %v307
        %v456 = vunpack.c.l.b16 %v308
        %v457 = vunpack.c.l.b16 %v309
        %v458 = vunpack.c.l.b16 %v310
        %v459 = vunpack.c.l.b16 %v311
        %v460 = vunpack.c.l.b16 %v312
        %v461 = vunpack.c.l.b16 %v313
        %v462 = vunpack.c.l.b16 %v314
        %v463 = vunpack.c.l.b16 %v315
        %v464 = vunpack.c.l.b16 %v316
        %v465 = vunpack.c.l.b16 %v317
        %v466 = vunpack.c.l.b16 %v318
        %v467 = vunpack.c.l.b16 %v319
        %v468 = vunpack.c.l.b16 %v320
        %v469 = vunpack.c.l.b16 %v321
        %v470 = vunpack.c.l.b16 %v322
        %v471 = vunpack.c.l.b16 %v323
        %v472 = vunpack.c.l.b16 %v324
        %v473 = vunpack.c.l.b16 %v325
        %v474 = vunpack.c.l.b16 %v326
        %v475 = vunpack.c.l.b16 %v327
        %v476 = vunpack.c.l.b16 %v328
        %v477 = vunpack.c.l.b16 %v329
        %v478 = vunpack.c.l.b16 %v330
        %v479 = vunpack.c.l.b16 %v331
        %v480 = vunpack.c.l.b16 %v332
        %v481 = vunpack.c.l.b16 %v333
        %v482 = vunpack.c.l.b16 %v334
        %v483 = vunpack.c.l.b16 %v335
        %v484 = vunpack.c.l.b16 %v336
        %v485 = vunpack.c.l.b16 %v337
        %v486 = vunpack.c.l.b16 %v338
        %v487 = vunpack.c.l.b16 %v339
        %v488 = vunpack.c.l.b16 %v340
        %v489 = vunpack.c.l.b16 %v341
        %v490 = vunpack.c.l.b16 %v342
        %v491 = vunpack.c.l.b16 %v343
        %v492 = vunpack.c.l.b16 %v344
        %v493 = vunpack.c.l.b16 %v345
        %v494 = vunpack.c.l.b16 %v346
        %v495 = vunpack.c.l.b16 %v347
        %v496 = vunpack.c.l.b16 %v348
        %v497 = vunpack.c.l.b16 %v349
        %v498 = vunpack.c.l.b16 %v350
        %v499 = vunpack.c.l.b16 %v351
        %v500 = vunpack.c.l.b16 %v352
        %v501 = vunpack.c.l.b16 %v353
        %v502 = vunpack.c.l.b16 %v354
        %v503 = vunpack.c.l.b16 %v355
        %v504 = vpack.c.b16 %v441, %v440
        %v505 = vpack.c.b16 %v443, %v442
        %v506 = vpack.c.b16 %v445, %v444
        %v507 = vpack.c.b16 %v447, %v446
        %v508 = vpack.c.b16 %v449, %v448
        %v509 = vpack.c.b16 %v451, %v450
        %v510 = vpack.c.b16 %v453, %v452
        %v511 = vpack.c.b16 %v455, %v454
        %v512 = vpack.c.b16 %v457, %v456
        %v513 = vpack.c.b16 %v459, %v458
        %v514 = vpack.c.b16 %v461, %v460
        %v515 = vpack.c.b16 %v463, %v462
        %v516 = vpack.c.b16 %v465, %v464
        %v517 = vpack.c.b16 %v467, %v466
        %v518 = vpack.c.b16 %v469, %v468
        %v519 = vpack.c.b16 %v471, %v470
        %v520 = vpack.c.b16 %v473, %v472
        %v521 = vpack.c.b16 %v475, %v474
        %v522 = vpack.c.b16 %v477, %v476
        %v523 = vpack.c.b16 %v479, %v478
        %v524 = vpack.c.b16 %v481, %v480
        %v525 = vpack.c.b16 %v483, %v482
        %v526 = vpack.c.b16 %v485, %v484
        %v527 = vpack.c.b16 %v487, %v486
        %v528 = vpack.c.b16 %v489, %v488
        %v529 = vpack.c.b16 %v491, %v490
        %v530 = vpack.c.b16 %v493, %v492
        %v531 = vpack.c.b16 %v495, %v494
        %v532 = vpack.c.b16 %v497, %v496
        %v533 = vpack.c.b16 %v499, %v498
        %v534 = vpack.c.b16 %v501, %v500
        %v535 = vpack.c.b16 %v503, %v502
        %568 = vmatprep.subr.bf16.mxu0 0
        %569 = vmatpush1.bf16.msra.mxu0 %v504
        %570 = vmatprep.subr.bf16.mxu0 0
        %571 = vmatpush1.bf16.msra.mxu0 %v505
        %572 = vmatprep.subr.bf16.mxu0 0
        %573 = vmatpush1.bf16.msra.mxu0 %v506
        %574 = vmatprep.subr.bf16.mxu0 0
        %575 = vmatpush1.bf16.msra.mxu0 %v507
        %576 = vmatprep.subr.bf16.mxu0 0
        %577 = vmatpush1.bf16.msra.mxu0 %v508
        %578 = vmatprep.subr.bf16.mxu0 0
        %579 = vmatpush1.bf16.msra.mxu0 %v509
        %580 = vmatprep.subr.bf16.mxu0 0
        %581 = vmatpush1.bf16.msra.mxu0 %v510
        %582 = vmatprep.subr.bf16.mxu0 0
        %583 = vmatpush1.bf16.msra.mxu0 %v511
        %584 = vmatprep.subr.bf16.mxu0 0
        %585 = vmatpush1.bf16.msra.mxu0 %v512
        %586 = vmatprep.subr.bf16.mxu0 0
        %587 = vmatpush1.bf16.msra.mxu0 %v513
        %588 = vmatprep.subr.bf16.mxu0 0
        %589 = vmatpush1.bf16.msra.mxu0 %v514
        %590 = vmatprep.subr.bf16.mxu0 0
        %591 = vmatpush1.bf16.msra.mxu0 %v515
        %592 = vmatprep.subr.bf16.mxu0 0
        %593 = vmatpush1.bf16.msra.mxu0 %v516
        %594 = vmatprep.subr.bf16.mxu0 0
        %595 = vmatpush1.bf16.msra.mxu0 %v517
        %596 = vmatprep.subr.bf16.mxu0 0
        %597 = vmatpush1.bf16.msra.mxu0 %v518
        %598 = vmatprep.subr.bf16.mxu0 0
        %599 = vmatpush1.bf16.msra.mxu0 %v519
        %600 = vmatprep.mubr.bf16.mxu0 %v369
        %601 = vmatmul.mubr.bf16.gmra.mrb[0].mxu0 %v368
        %v602 = vpop.f32.mrb[0].mxu0
        %v603 = vadd.f32 0.0, %v602
        %v604 = vpop.f32.mrb[0].mxu0
        %v605 = vpop.f32.mrb[0].mxu0
        %v606 = vadd.f32 0.0, %v605
        %v607 = vpop.f32.mrb[0].mxu0
        %608 = vdwg.mxu0
        %609 = vmatprep.subr.bf16.mxu0 0
        %610 = vmatpush1.bf16.msra.mxu0 %v520
        %611 = vmatprep.subr.bf16.mxu0 0
        %612 = vmatpush1.bf16.msra.mxu0 %v521
        %613 = vmatprep.subr.bf16.mxu0 0
        %614 = vmatpush1.bf16.msra.mxu0 %v522
        %615 = vmatprep.subr.bf16.mxu0 0
        %616 = vmatpush1.bf16.msra.mxu0 %v523
        %617 = vmatprep.subr.bf16.mxu0 0
        %618 = vmatpush1.bf16.msra.mxu0 %v524
        %619 = vmatprep.subr.bf16.mxu0 0
        %620 = vmatpush1.bf16.msra.mxu0 %v525
        %621 = vmatprep.subr.bf16.mxu0 0
        %622 = vmatpush1.bf16.msra.mxu0 %v526
        %623 = vmatprep.subr.bf16.mxu0 0
        %624 = vmatpush1.bf16.msra.mxu0 %v527
        %625 = vmatprep.subr.bf16.mxu0 0
        %626 = vmatpush1.bf16.msra.mxu0 %v528
        %627 = vmatprep.subr.bf16.mxu0 0
        %628 = vmatpush1.bf16.msra.mxu0 %v529
        %629 = vmatprep.subr.bf16.mxu0 0
        %630 = vmatpush1.bf16.msra.mxu0 %v530
        %631 = vmatprep.subr.bf16.mxu0 0
        %632 = vmatpush1.bf16.msra.mxu0 %v531
        %633 = vmatprep.subr.bf16.mxu0 0
        %634 = vmatpush1.bf16.msra.mxu0 %v532
        %635 = vmatprep.subr.bf16.mxu0 0
        %636 = vmatpush1.bf16.msra.mxu0 %v533
        %637 = vmatprep.subr.bf16.mxu0 0
        %638 = vmatpush1.bf16.msra.mxu0 %v534
        %639 = vmatprep.subr.bf16.mxu0 0
        %640 = vmatpush1.bf16.msra.mxu0 %v535
        %641 = vmatprep.mubr.bf16.mxu0 %v371
        %642 = vmatmul.mubr.bf16.gmra.mrb[0].mxu0 %v370
        %v643 = vpop.f32.mrb[0].mxu0
        %v644 = vadd.f32 %v603, %v643
        %v645 = vpop.f32.mrb[0].mxu0
        %v646 = vpop.f32.mrb[0].mxu0
        %v647 = vadd.f32 %v606, %v646
        %v648 = vpop.f32.mrb[0].mxu0
        %649 = vdwg.mxu0
        %v650 = vadd.f32 %v286, %v644
        %v651 = vadd.f32 %v287, %v647
        %652 = vst [vmem:[#allocation2] sm:$0xff] %v650
        %653 = vst [vmem:[#allocation2 + $0x8] sm:$0xff] %v651
        %p654 = scmp.eq.s32.totalorder %s21, 1
        // Predicated region
        $region60: #{discriminator_forward.9} parent=50 // pred_check
          %p655 = pneg %p654
        $region61: #{discriminator_forward.9} parent=50 // pred_check_branch
          %657 = sbr.rel (%p655) target = $region63
        $region62: #{discriminator_forward.9} parent=50 // pred_region
          %v658 = vld [vmem:[#allocation2] sm:$0xff]
          %v659 = vld [vmem:[#allocation2 + $0x8] sm:$0xff]
          %v660 = vld [vmem:[%s269] sm:$0x1]
          %v662 = vlaneseq
          %v663 = vshrl.u32 %v662, 7
          %v664 = vsub.s32 0, %v663
          %v665 = vrot.slane %v660, %v664
          %v667 = vadd.f32 %v658, %v665
          %v668 = vadd.f32 %v659, %v665
          %vm669 = vcmp.ge.f32.partialorder %v667, 0.0
          %vm670 = vcmp.ge.f32.partialorder %v668, 0.0
          %v671 = vmul.f32 %v667, 0.01
          %v672 = vmul.f32 %v668, 0.01
          %v673 = vsel %vm669, %v667, %v671
          %v674 = vsel %vm670, %v668, %v672
          %675 = vst [vmem:[%s277] sm:$0xff] %v673
          %676 = vst [vmem:[%s277 + $0x8] sm:$0xff] %v674
        $region63: #{discriminator_forward.9} parent=50 // pred_fallthru
          _
        %s677 = smul.u32 2, %s19
        %p678 = scmp.lt.s32.totalorder %s677, 1
        %s679 = scalar_select %p678, %s677, 1
        %p680 = scmp.lt.s32.totalorder %s20, 0
        %s681 = scalar_select %p680, %s20, 0
        %s682 = sadd.s32 %s681, %s679
        %s683 = smul.addr %s682, 8
        %s684 = scalar_lea.vmem %s3, %s683
        // Predicated region
        $region64: #{discriminator_forward.9} parent=50 // pred_check
          %p685 = pneg %p135
        $region65: #{discriminator_forward.9} parent=50 // pred_check_branch
          %687 = sbr.rel (%p685) target = $region67
        $region66: #{discriminator_forward.9} parent=50 // pred_region
          %s688 = smul.u32 2, %s19
        $region67: #{discriminator_forward.9} parent=50 // pred_fallthru
          _
        // Predicated region
        $region68: #{discriminator_forward.9} parent=50 // pred_check
          %p689 = pneg %p135
        $region69: #{discriminator_forward.9} parent=50 // pred_check_branch
          %691 = sbr.rel (%p689) target = $region71
        $region70: #{discriminator_forward.9} parent=50 // pred_region
          %s692 = smul.u32 2, %s19
          %p693 = scmp.lt.s32.totalorder %s692, 1
          %s694 = scalar_select %p693, %s692, 1
          %p695 = scmp.lt.s32.totalorder %s20, 0
          %s696 = scalar_select %p695, %s20, 0
          %s697 = sadd.s32 %s696, %s694
          %s698 = smul.addr %s697, 8
          %s699 = scalar_lea.vmem %s3, %s698
        $region71: #{discriminator_forward.9} parent=50 // pred_fallthru
          _
      $region51: #{discriminator_forward.9} parent=5 // pred_fallthru
        _
      %p700 = scmp.le.s32.totalorder 2, %s9
      // Predicated region
      $region72: #{discriminator_forward.9} parent=5 // pred_check
        %p701 = pneg %p700
      $region73: #{discriminator_forward.9} parent=5 // pred_check_branch
        %703 = sbr.rel (%p701) target = $region75
      $region74: #{discriminator_forward.9} parent=5 // pred_region
        %s704 = ssub.s32 %s9, 2
      $region75: #{discriminator_forward.9} parent=5 // pred_fallthru
        _
    $region6: #{discriminator_forward.9} parent=1 // loop_footer
      %s13 = sadd.s32 1, %s9
    $region7: #{discriminator_forward.9} parent=1 // loop_footer_branch
      %8 = sbr.rel target = $region3
    $region8: #{discriminator_forward.9} parent=1 // loop_exit
      _

// kernel: discriminator_forward.10
$region0: #{discriminator_forward.10}
  #allocation0 [shape = 'u32[]', space=smem, size = 0x4, offset = 0x4, fixed_abs, tag = 'smem constant byte address 0x4 - core index']
  #allocation1 [shape = 'u32[144,128]{1,0:T(1,128)}', space=vmem, size = 0x12000, scoped, tag = 'internal scratch']
  #allocation2 [shape = 'f32[16,128]{1,0:T(8,128)}', space=vmem, size = 0x2000, scoped, tag = 'scratch operand']
  %s0 = inlined_call_operand.vmem [shape: bf16[16,2048], index: 0, kind: input, shape index: {}]
  %s1 = inlined_call_operand.vmem [shape: bf16[2048,256], index: 1, kind: input, shape index: {}]
  %s2 = inlined_call_operand.vmem [shape: f32[1,256], index: 2, kind: input, shape index: {}]
  %s3 = inlined_call_operand.vmem [shape: f32[16,256], index: 3, kind: output, shape index: {}]
  %s4 = sld [smem:[#allocation0]]
  $region151: #{discriminator_forward.10} parent=0
    _
  %s6 = ssub.s32 1, %s4
  %s7 = scalar_select 0, %s6, %s4
  $region1: #{discriminator_forward.10} parent=0
    #allocation3 [shape = 'u8[32768]{0}', space=vmem, size = 0x8000, scoped, tag = 'input window, operand 0']
    #allocation4 [shape = 'u8[262144]{0}', space=vmem, size = 0x40000, scoped, tag = 'input window, operand 1']
    #allocation5 [shape = 'u8[16384]{0}', space=vmem, size = 0x4000, scoped, tag = 'output window, operand 0']
    loop: start=0, step=1, limit=10
    $region2: #{discriminator_forward.10} parent=1 // loop_pre_header
      _
    $region3: #{discriminator_forward.10} parent=1 // loop_header
      %s9 = sphi 0, %s13
      %p10 = scmp.ge.s32.totalorder %s9, 10
      %s16 = sphi 0, %s35
      %s17 = sphi 0, %s31
      %s18 = sphi 0, %s27
      %s19 = sphi 0, %s16
      %s20 = sphi 0, %s17
      %s21 = sphi 0, %s18
      %s22 = sphi 0, %s19
      %s23 = sphi 0, %s20
      %s24 = sphi 0, %s21
      %s40 = sphi 0, %s42
      %s43 = sphi 0, %s40
      %s44 = sphi 0, %s43
      %s60 = sphi 0, %s44
      %s68 = sphi 0, %s70
      %s71 = sphi 0, %s68
      %s72 = sphi 0, %s71
      %s88 = sphi 0, %s72
      %s94 = sphi 0, %s96
      %s97 = sphi 0, %s94
      %s98 = sphi 0, %s97
      %s114 = sphi 0, %s98
      %s122 = sphi 0, %s124
      %s125 = sphi 0, %s122
      %s126 = sphi 0, %s125
      %s142 = sphi 0, %s126
    $region4: #{discriminator_forward.10} parent=1 // loop_header_branch
      %12 = sbr.rel (%p10) target = $region8
    $region5: #{discriminator_forward.10} parent=1 // loop_body
      %s14 = ssub.s32 %s9, 1
      %s15 = ssub.s32 %s9, 2
      %s25 = sadd.s32 1, %s18
      %p26 = scmp.ge.s32.totalorder %s25, 4
      %s27 = scalar_select %p26, 0, %s25
      %s28 = sadd.s32 1, %s17
      %s29 = scalar_select %p26, %s28, %s17
      %p30 = scmp.ge.s32.totalorder %s29, 2
      %s31 = scalar_select %p30, 0, %s29
      %s32 = sadd.s32 1, %s16
      %s33 = scalar_select %p30, %s32, %s16
      %p34 = scmp.ge.s32.totalorder %s33, 1
      %s35 = scalar_select %p34, 0, %s33
      %s36 = ssub.s32 %s16, %s35
      %s37 = ssub.s32 %s18, %s27
      %s38 = sor.u32 %s36, %s37
      %p39 = scmp.eq.s32.totalorder %s38, 0
      %s41 = sadd.s32 %s40, 1
      %s42 = scalar_select %p39, %s40, %s41
      %p45 = pneg %p39
      %p46 = scmp.eq.s32.totalorder %s9, 7
      %p47 = por %p45, %p46
      %p48 = scmp.ne.s32.totalorder %s40, %s43
      %p49 = scmp.eq.s32.totalorder %s9, 0
      %p50 = por %p48, %p49
      %p51 = scmp.ne.s32.totalorder %s40, %s43
      %p52 = scmp.eq.s32.totalorder %s14, 7
      %p53 = por %p51, %p52
      %p54 = scmp.ne.s32.totalorder %s43, %s44
      %p55 = scmp.eq.s32.totalorder %s14, 0
      %p56 = por %p54, %p55
      %p57 = scmp.ne.s32.totalorder %s43, %s44
      %p58 = scmp.eq.s32.totalorder %s15, 7
      %p59 = por %p57, %p58
      %p61 = scmp.ne.s32.totalorder %s44, %s60
      %p62 = scmp.eq.s32.totalorder %s15, 0
      %p63 = por %p61, %p62
      %s64 = ssub.s32 %s18, %s27
      %s65 = ssub.s32 %s17, %s31
      %s66 = sor.u32 %s64, %s65
      %p67 = scmp.eq.s32.totalorder %s66, 0
      %s69 = sadd.s32 %s68, 1
      %s70 = scalar_select %p67, %s68, %s69
      %p73 = pneg %p67
      %p74 = scmp.eq.s32.totalorder %s9, 7
      %p75 = por %p73, %p74
      %p76 = scmp.ne.s32.totalorder %s68, %s71
      %p77 = scmp.eq.s32.totalorder %s9, 0
      %p78 = por %p76, %p77
      %p79 = scmp.ne.s32.totalorder %s68, %s71
      %p80 = scmp.eq.s32.totalorder %s14, 7
      %p81 = por %p79, %p80
      %p82 = scmp.ne.s32.totalorder %s71, %s72
      %p83 = scmp.eq.s32.totalorder %s14, 0
      %p84 = por %p82, %p83
      %p85 = scmp.ne.s32.totalorder %s71, %s72
      %p86 = scmp.eq.s32.totalorder %s15, 7
      %p87 = por %p85, %p86
      %p89 = scmp.ne.s32.totalorder %s72, %s88
      %p90 = scmp.eq.s32.totalorder %s15, 0
      %p91 = por %p89, %p90
      %s92 = ssub.s32 %s17, %s31
      %p93 = scmp.eq.s32.totalorder %s92, 0
      %s95 = sadd.s32 %s94, 1
      %s96 = scalar_select %p93, %s94, %s95
      %p99 = pneg %p93
      %p100 = scmp.eq.s32.totalorder %s9, 7
      %p101 = por %p99, %p100
      %p102 = scmp.ne.s32.totalorder %s94, %s97
      %p103 = scmp.eq.s32.totalorder %s9, 0
      %p104 = por %p102, %p103
      %p105 = scmp.ne.s32.totalorder %s94, %s97
      %p106 = scmp.eq.s32.totalorder %s14, 7
      %p107 = por %p105, %p106
      %p108 = scmp.ne.s32.totalorder %s97, %s98
      %p109 = scmp.eq.s32.totalorder %s14, 0
      %p110 = por %p108, %p109
      %p111 = scmp.ne.s32.totalorder %s97, %s98
      %p112 = scmp.eq.s32.totalorder %s15, 7
      %p113 = por %p111, %p112
      %p115 = scmp.ne.s32.totalorder %s98, %s114
      %p116 = scmp.eq.s32.totalorder %s15, 0
      %p117 = por %p115, %p116
      %s118 = ssub.s32 %s16, %s35
      %s119 = ssub.s32 %s17, %s31
      %s120 = sor.u32 %s118, %s119
      %p121 = scmp.eq.s32.totalorder %s120, 0
      %s123 = sadd.s32 %s122, 1
      %s124 = scalar_select %p121, %s122, %s123
      %p127 = pneg %p121
      %p128 = scmp.eq.s32.totalorder %s9, 7
      %p129 = por %p127, %p128
      %p130 = scmp.ne.s32.totalorder %s122, %s125
      %p131 = scmp.eq.s32.totalorder %s9, 0
      %p132 = por %p130, %p131
      %p133 = scmp.ne.s32.totalorder %s122, %s125
      %p134 = scmp.eq.s32.totalorder %s14, 7
      %p135 = por %p133, %p134
      %p136 = scmp.ne.s32.totalorder %s125, %s126
      %p137 = scmp.eq.s32.totalorder %s14, 0
      %p138 = por %p136, %p137
      %p139 = scmp.ne.s32.totalorder %s125, %s126
      %p140 = scmp.eq.s32.totalorder %s15, 7
      %p141 = por %p139, %p140
      %p143 = scmp.ne.s32.totalorder %s126, %s142
      %p144 = scmp.eq.s32.totalorder %s15, 0
      %p145 = por %p143, %p144
      %p146 = scmp.le.s32.totalorder 1, %s9
      %p147 = scmp.lt.s32.totalorder %s9, 9
      %p148 = pnand %p146, %p147
      %p149 = pneg %p148
      // Predicated region
      $region9: #{discriminator_forward.10} parent=5 // pred_check
        _
      $region10: #{discriminator_forward.10} parent=5 // pred_check_branch
        %151 = sbr.rel (%p148) target = $region12
      $region11: #{discriminator_forward.10} parent=5 // pred_region
        %s152 = ssub.s32 %s9, 1
      $region12: #{discriminator_forward.10} parent=5 // pred_fallthru
        _
      %p153 = scmp.lt.s32.totalorder %s9, 8
      // Predicated region
      $region13: #{discriminator_forward.10} parent=5 // pred_check
        %p154 = pneg %p153
      $region14: #{discriminator_forward.10} parent=5 // pred_check_branch
        %156 = sbr.rel (%p154) target = $region16
      $region15: #{discriminator_forward.10} parent=5 // pred_region
        // Predicated region
        $region17: #{discriminator_forward.10} parent=15 // pred_check
          %p157 = pneg %p50
        $region18: #{discriminator_forward.10} parent=15 // pred_check_branch
          %159 = sbr.rel (%p157) target = $region20
        $region19: #{discriminator_forward.10} parent=15 // pred_region
          %s160 = sand.u32 %s40, 1
          %s161 = sand.u32 %s40, 1
          %s162 = smul.addr %s161, 32
          %s163 = scalar_lea.vmem [#allocation3], %s162
          %s164 = smul.u32 2, %s16
          %s165 = smul.u32 4, %s18
          %s166 = smul.addr %s164, 16
          %s167 = sadd.s32 %s165, %s166
          %s168 = smul.addr %s167, 4
          %s169 = scalar_lea.vmem %s0, %s168
          // Predicated region
          $region21: #{discriminator_forward.10} parent=19 // pred_check
            _
          $region22: #{discriminator_forward.10} parent=19 // pred_check_branch
            %171 = sbr.rel (0) target = $region24
          $region23: #{discriminator_forward.10} parent=19 // pred_region
            // Predicated region
            $region25: #{discriminator_forward.10} parent=23 // pred_check
              _
            $region26: #{discriminator_forward.10} parent=23 // pred_check_branch
              %173 = sbr.rel (0) target = $region28
            $region27: #{discriminator_forward.10} parent=23 // pred_region
              loop: start=0, step=1, limit=1
              $region29: #{discriminator_forward.10} parent=27 // loop_pre_header
                _
              $region30: #{discriminator_forward.10} parent=27 // loop_header
                %s175 = sphi 0, %s179
                %p176 = scmp.ge.s32.totalorder %s175, 1
                %s180 = sphi %s169, %s169
                %s181 = sphi %s163, %s163
              $region31: #{discriminator_forward.10} parent=27 // loop_header_branch
                %178 = sbr.rel (%p176) target = $region35
              $region32: #{discriminator_forward.10} parent=27 // loop_body
                %v182 = vld [vmem:[%s180] sm:$0xff]
                %183 = vst [vmem:[%s181] sm:$0xff] %v182
                %v184 = vld [vmem:[%s180 + $0x8] sm:$0xff]
                %185 = vst [vmem:[%s181 + $0x8] sm:$0xff] %v184
                %v186 = vld [vmem:[%s180 + $0x40] sm:$0xff]
                %187 = vst [vmem:[%s181 + $0x10] sm:$0xff] %v186
                %v188 = vld [vmem:[%s180 + $0x48] sm:$0xff]
                %189 = vst [vmem:[%s181 + $0x18] sm:$0xff] %v188
              $region33: #{discriminator_forward.10} parent=27 // loop_footer
                %s179 = sadd.s32 1, %s175
              $region34: #{discriminator_forward.10} parent=27 // loop_footer_branch
                %174 = sbr.rel target = $region30
              $region35: #{discriminator_forward.10} parent=27 // loop_exit
                _
            $region28: #{discriminator_forward.10} parent=23 // pred_fallthru
              _
            // Predicated region
            $region36: #{discriminator_forward.10} parent=23 // pred_check
              _
            $region37: #{discriminator_forward.10} parent=23 // pred_check_branch
              %191 = sbr.rel target = $region39
            $region38: #{discriminator_forward.10} parent=23 // pred_region
              _
            $region39: #{discriminator_forward.10} parent=23 // pred_fallthru
              _
          $region24: #{discriminator_forward.10} parent=19 // pred_fallthru
            _
          %192 = vnop
        $region20: #{discriminator_forward.10} parent=15 // pred_fallthru
          _
        // Predicated region
        $region40: #{discriminator_forward.10} parent=15 // pred_check
          %p193 = pneg %p78
        $region41: #{discriminator_forward.10} parent=15 // pred_check_branch
          %195 = sbr.rel (%p193) target = $region43
        $region42: #{discriminator_forward.10} parent=15 // pred_region
          %s196 = sand.u32 %s68, 1
          %s197 = sand.u32 %s68, 1
          %s198 = smul.addr %s197, 256
          %s199 = scalar_lea.vmem [#allocation4], %s198
          %s200 = smul.u32 64, %s18
          %s201 = smul.addr %s200, 2
          %s202 = sadd.s32 %s17, %s201
          %s203 = smul.addr %s202, 4
          %s204 = scalar_lea.vmem %s1, %s203
          // Predicated region
          $region44: #{discriminator_forward.10} parent=42 // pred_check
            _
          $region45: #{discriminator_forward.10} parent=42 // pred_check_branch
            %206 = sbr.rel (0) target = $region47
          $region46: #{discriminator_forward.10} parent=42 // pred_region
            // Predicated region
            $region48: #{discriminator_forward.10} parent=46 // pred_check
              _
            $region49: #{discriminator_forward.10} parent=46 // pred_check_branch
              %208 = sbr.rel target = $region51
            $region50: #{discriminator_forward.10} parent=46 // pred_region
              // Predicated region
              $region63: #{discriminator_forward.10} parent=50 // pred_check
                _
              $region64: #{discriminator_forward.10} parent=50 // pred_check_branch
                %349 = sbr.rel (0) target = $region66
              $region65: #{discriminator_forward.10} parent=50 // pred_region
                loop: start=0, step=1, limit=1
                $region67: #{discriminator_forward.10} parent=65 // loop_pre_header
                  _
                $region68: #{discriminator_forward.10} parent=65 // loop_header
                  %s351 = sphi 0, %s355
                  %p352 = scmp.ge.s32.totalorder %s351, 1
                  %s356 = sphi %s204, %s204
                  %s357 = sphi %s199, %s199
                $region69: #{discriminator_forward.10} parent=65 // loop_header_branch
                  %354 = sbr.rel (%p352) target = $region73
                $region70: #{discriminator_forward.10} parent=65 // loop_body
                  _
                $region71: #{discriminator_forward.10} parent=65 // loop_footer
                  %s355 = sadd.s32 1, %s351
                $region72: #{discriminator_forward.10} parent=65 // loop_footer_branch
                  %350 = sbr.rel target = $region68
                $region73: #{discriminator_forward.10} parent=65 // loop_exit
                  _
                loop: start=0, step=1, limit=1
                $region74: #{discriminator_forward.10} parent=65 // loop_pre_header
                  _
                $region75: #{discriminator_forward.10} parent=65 // loop_header
                  %s360 = sphi 0, %s364
                  %p361 = scmp.ge.s32.totalorder %s360, 1
                  %s365 = sphi %s204, %s204
                  %s366 = sphi %s199, %s199
                $region76: #{discriminator_forward.10} parent=65 // loop_header_branch
                  %363 = sbr.rel (%p361) target = $region80
                $region77: #{discriminator_forward.10} parent=65 // loop_body
                  %v367 = vld [vmem:[%s365] sm:$0xf]
                  %368 = vst [vmem:[%s366] sm:$0xf] %v367
                  %v369 = vld [vmem:[%s365 + $0x8] sm:$0xf]
                  %370 = vst [vmem:[%s366 + $0x4] sm:$0xf] %v369
                  %v371 = vld [vmem:[%s365 + $0x10] sm:$0xf]
                  %372 = vst [vmem:[%s366 + $0x8] sm:$0xf] %v371
                  %v373 = vld [vmem:[%s365 + $0x18] sm:$0xf]
                  %374 = vst [vmem:[%s366 + $0xc] sm:$0xf] %v373
                  %v375 = vld [vmem:[%s365 + $0x20] sm:$0xf]
                  %376 = vst [vmem:[%s366 + $0x10] sm:$0xf] %v375
                  %v377 = vld [vmem:[%s365 + $0x28] sm:$0xf]
                  %378 = vst [vmem:[%s366 + $0x14] sm:$0xf] %v377
                  %v379 = vld [vmem:[%s365 + $0x30] sm:$0xf]
                  %380 = vst [vmem:[%s366 + $0x18] sm:$0xf] %v379
                  %v381 = vld [vmem:[%s365 + $0x38] sm:$0xf]
                  %382 = vst [vmem:[%s366 + $0x1c] sm:$0xf] %v381
                  %v383 = vld [vmem:[%s365 + $0x40] sm:$0xf]
                  %384 = vst [vmem:[%s366 + $0x20] sm:$0xf] %v383
                  %v385 = vld [vmem:[%s365 + $0x48] sm:$0xf]
                  %386 = vst [vmem:[%s366 + $0x24] sm:$0xf] %v385
                  %v387 = vld [vmem:[%s365 + $0x50] sm:$0xf]
                  %388 = vst [vmem:[%s366 + $0x28] sm:$0xf] %v387
                  %v389 = vld [vmem:[%s365 + $0x58] sm:$0xf]
                  %390 = vst [vmem:[%s366 + $0x2c] sm:$0xf] %v389
                  %v391 = vld [vmem:[%s365 + $0x60] sm:$0xf]
                  %392 = vst [vmem:[%s366 + $0x30] sm:$0xf] %v391
                  %v393 = vld [vmem:[%s365 + $0x68] sm:$0xf]
                  %394 = vst [vmem:[%s366 + $0x34] sm:$0xf] %v393
                  %v395 = vld [vmem:[%s365 + $0x70] sm:$0xf]
                  %396 = vst [vmem:[%s366 + $0x38] sm:$0xf] %v395
                  %v397 = vld [vmem:[%s365 + $0x78] sm:$0xf]
                  %398 = vst [vmem:[%s366 + $0x3c] sm:$0xf] %v397
                  %v399 = vld [vmem:[%s365 + $0x80] sm:$0xf]
                  %400 = vst [vmem:[%s366 + $0x40] sm:$0xf] %v399
                  %v401 = vld [vmem:[%s365 + $0x88] sm:$0xf]
                  %402 = vst [vmem:[%s366 + $0x44] sm:$0xf] %v401
                  %v403 = vld [vmem:[%s365 + $0x90] sm:$0xf]
                  %404 = vst [vmem:[%s366 + $0x48] sm:$0xf] %v403
                  %v405 = vld [vmem:[%s365 + $0x98] sm:$0xf]
                  %406 = vst [vmem:[%s366 + $0x4c] sm:$0xf] %v405
                  %v407 = vld [vmem:[%s365 + $0xa0] sm:$0xf]
                  %408 = vst [vmem:[%s366 + $0x50] sm:$0xf] %v407
                  %v409 = vld [vmem:[%s365 + $0xa8] sm:$0xf]
                  %410 = vst [vmem:[%s366 + $0x54] sm:$0xf] %v409
                  %v411 = vld [vmem:[%s365 + $0xb0] sm:$0xf]
                  %412 = vst [vmem:[%s366 + $0x58] sm:$0xf] %v411
                  %v413 = vld [vmem:[%s365 + $0xb8] sm:$0xf]
                  %414 = vst [vmem:[%s366 + $0x5c] sm:$0xf] %v413
                  %v415 = vld [vmem:[%s365 + $0xc0] sm:$0xf]
                  %416 = vst [vmem:[%s366 + $0x60] sm:$0xf] %v415
                  %v417 = vld [vmem:[%s365 + $0xc8] sm:$0xf]
                  %418 = vst [vmem:[%s366 + $0x64] sm:$0xf] %v417
                  %v419 = vld [vmem:[%s365 + $0xd0] sm:$0xf]
                  %420 = vst [vmem:[%s366 + $0x68] sm:$0xf] %v419
                  %v421 = vld [vmem:[%s365 + $0xd8] sm:$0xf]
                  %422 = vst [vmem:[%s366 + $0x6c] sm:$0xf] %v421
                  %v423 = vld [vmem:[%s365 + $0xe0] sm:$0xf]
                  %424 = vst [vmem:[%s366 + $0x70] sm:$0xf] %v423
                  %v425 = vld [vmem:[%s365 + $0xe8] sm:$0xf]
                  %426 = vst [vmem:[%s366 + $0x74] sm:$0xf] %v425
                  %v427 = vld [vmem:[%s365 + $0xf0] sm:$0xf]
                  %428 = vst [vmem:[%s366 + $0x78] sm:$0xf] %v427
                  %v429 = vld [vmem:[%s365 + $0xf8] sm:$0xf]
                  %430 = vst [vmem:[%s366 + $0x7c] sm:$0xf] %v429
                  %v431 = vld [vmem:[%s365 + $0x100] sm:$0xf]
                  %432 = vst [vmem:[%s366 + $0x80] sm:$0xf] %v431
                  %v433 = vld [vmem:[%s365 + $0x108] sm:$0xf]
                  %434 = vst [vmem:[%s366 + $0x84] sm:$0xf] %v433
                  %v435 = vld [vmem:[%s365 + $0x110] sm:$0xf]
                  %436 = vst [vmem:[%s366 + $0x88] sm:$0xf] %v435
                  %v437 = vld [vmem:[%s365 + $0x118] sm:$0xf]
                  %438 = vst [vmem:[%s366 + $0x8c] sm:$0xf] %v437
                  %v439 = vld [vmem:[%s365 + $0x120] sm:$0xf]
                  %440 = vst [vmem:[%s366 + $0x90] sm:$0xf] %v439
                  %v441 = vld [vmem:[%s365 + $0x128] sm:$0xf]
                  %442 = vst [vmem:[%s366 + $0x94] sm:$0xf] %v441
                  %v443 = vld [vmem:[%s365 + $0x130] sm:$0xf]
                  %444 = vst [vmem:[%s366 + $0x98] sm:$0xf] %v443
                  %v445 = vld [vmem:[%s365 + $0x138] sm:$0xf]
                  %446 = vst [vmem:[%s366 + $0x9c] sm:$0xf] %v445
                  %v447 = vld [vmem:[%s365 + $0x140] sm:$0xf]
                  %448 = vst [vmem:[%s366 + $0xa0] sm:$0xf] %v447
                  %v449 = vld [vmem:[%s365 + $0x148] sm:$0xf]
                  %450 = vst [vmem:[%s366 + $0xa4] sm:$0xf] %v449
                  %v451 = vld [vmem:[%s365 + $0x150] sm:$0xf]
                  %452 = vst [vmem:[%s366 + $0xa8] sm:$0xf] %v451
                  %v453 = vld [vmem:[%s365 + $0x158] sm:$0xf]
                  %454 = vst [vmem:[%s366 + $0xac] sm:$0xf] %v453
                  %v455 = vld [vmem:[%s365 + $0x160] sm:$0xf]
                  %456 = vst [vmem:[%s366 + $0xb0] sm:$0xf] %v455
                  %v457 = vld [vmem:[%s365 + $0x168] sm:$0xf]
                  %458 = vst [vmem:[%s366 + $0xb4] sm:$0xf] %v457
                  %v459 = vld [vmem:[%s365 + $0x170] sm:$0xf]
                  %460 = vst [vmem:[%s366 + $0xb8] sm:$0xf] %v459
                  %v461 = vld [vmem:[%s365 + $0x178] sm:$0xf]
                  %462 = vst [vmem:[%s366 + $0xbc] sm:$0xf] %v461
                  %v463 = vld [vmem:[%s365 + $0x180] sm:$0xf]
                  %464 = vst [vmem:[%s366 + $0xc0] sm:$0xf] %v463
                  %v465 = vld [vmem:[%s365 + $0x188] sm:$0xf]
                  %466 = vst [vmem:[%s366 + $0xc4] sm:$0xf] %v465
                  %v467 = vld [vmem:[%s365 + $0x190] sm:$0xf]
                  %468 = vst [vmem:[%s366 + $0xc8] sm:$0xf] %v467
                  %v469 = vld [vmem:[%s365 + $0x198] sm:$0xf]
                  %470 = vst [vmem:[%s366 + $0xcc] sm:$0xf] %v469
                  %v471 = vld [vmem:[%s365 + $0x1a0] sm:$0xf]
                  %472 = vst [vmem:[%s366 + $0xd0] sm:$0xf] %v471
                  %v473 = vld [vmem:[%s365 + $0x1a8] sm:$0xf]
                  %474 = vst [vmem:[%s366 + $0xd4] sm:$0xf] %v473
                  %v475 = vld [vmem:[%s365 + $0x1b0] sm:$0xf]
                  %476 = vst [vmem:[%s366 + $0xd8] sm:$0xf] %v475
                  %v477 = vld [vmem:[%s365 + $0x1b8] sm:$0xf]
                  %478 = vst [vmem:[%s366 + $0xdc] sm:$0xf] %v477
                  %v479 = vld [vmem:[%s365 + $0x1c0] sm:$0xf]
                  %480 = vst [vmem:[%s366 + $0xe0] sm:$0xf] %v479
                  %v481 = vld [vmem:[%s365 + $0x1c8] sm:$0xf]
                  %482 = vst [vmem:[%s366 + $0xe4] sm:$0xf] %v481
                  %v483 = vld [vmem:[%s365 + $0x1d0] sm:$0xf]
                  %484 = vst [vmem:[%s366 + $0xe8] sm:$0xf] %v483
                  %v485 = vld [vmem:[%s365 + $0x1d8] sm:$0xf]
                  %486 = vst [vmem:[%s366 + $0xec] sm:$0xf] %v485
                  %v487 = vld [vmem:[%s365 + $0x1e0] sm:$0xf]
                  %488 = vst [vmem:[%s366 + $0xf0] sm:$0xf] %v487
                  %v489 = vld [vmem:[%s365 + $0x1e8] sm:$0xf]
                  %490 = vst [vmem:[%s366 + $0xf4] sm:$0xf] %v489
                  %v491 = vld [vmem:[%s365 + $0x1f0] sm:$0xf]
                  %492 = vst [vmem:[%s366 + $0xf8] sm:$0xf] %v491
                  %v493 = vld [vmem:[%s365 + $0x1f8] sm:$0xf]
                  %494 = vst [vmem:[%s366 + $0xfc] sm:$0xf] %v493
                $region78: #{discriminator_forward.10} parent=65 // loop_footer
                  %s364 = sadd.s32 1, %s360
                $region79: #{discriminator_forward.10} parent=65 // loop_footer_branch
                  %359 = sbr.rel target = $region75
                $region80: #{discriminator_forward.10} parent=65 // loop_exit
                  _
              $region66: #{discriminator_forward.10} parent=50 // pred_fallthru
                _
            $region51: #{discriminator_forward.10} parent=46 // pred_fallthru
              _
            // Predicated region
            $region52: #{discriminator_forward.10} parent=46 // pred_check
              _
            $region53: #{discriminator_forward.10} parent=46 // pred_check_branch
              %210 = sbr.rel (0) target = $region55
            $region54: #{discriminator_forward.10} parent=46 // pred_region
              loop: start=0, step=1, limit=1
              $region56: #{discriminator_forward.10} parent=54 // loop_pre_header
                _
              $region57: #{discriminator_forward.10} parent=54 // loop_header
                %s213 = sphi 0, %s217
                %p214 = scmp.ge.s32.totalorder %s213, 1
                %s218 = sphi %s204, %s204
                %s219 = sphi %s199, %s199
              $region58: #{discriminator_forward.10} parent=54 // loop_header_branch
                %216 = sbr.rel (%p214) target = $region62
              $region59: #{discriminator_forward.10} parent=54 // loop_body
                %v220 = vld [vmem:[%s218] sm:$0xf]
                %221 = vst [vmem:[%s219] sm:$0xf] %v220
                %v222 = vld [vmem:[%s218 + $0x8] sm:$0xf]
                %223 = vst [vmem:[%s219 + $0x4] sm:$0xf] %v222
                %v224 = vld [vmem:[%s218 + $0x10] sm:$0xf]
                %225 = vst [vmem:[%s219 + $0x8] sm:$0xf] %v224
                %v226 = vld [vmem:[%s218 + $0x18] sm:$0xf]
                %227 = vst [vmem:[%s219 + $0xc] sm:$0xf] %v226
                %v228 = vld [vmem:[%s218 + $0x20] sm:$0xf]
                %229 = vst [vmem:[%s219 + $0x10] sm:$0xf] %v228
                %v230 = vld [vmem:[%s218 + $0x28] sm:$0xf]
                %231 = vst [vmem:[%s219 + $0x14] sm:$0xf] %v230
                %v232 = vld [vmem:[%s218 + $0x30] sm:$0xf]
                %233 = vst [vmem:[%s219 + $0x18] sm:$0xf] %v232
                %v234 = vld [vmem:[%s218 + $0x38] sm:$0xf]
                %235 = vst [vmem:[%s219 + $0x1c] sm:$0xf] %v234
                %v236 = vld [vmem:[%s218 + $0x40] sm:$0xf]
                %237 = vst [vmem:[%s219 + $0x20] sm:$0xf] %v236
                %v238 = vld [vmem:[%s218 + $0x48] sm:$0xf]
                %239 = vst [vmem:[%s219 + $0x24] sm:$0xf] %v238
                %v240 = vld [vmem:[%s218 + $0x50] sm:$0xf]
                %241 = vst [vmem:[%s219 + $0x28] sm:$0xf] %v240
                %v242 = vld [vmem:[%s218 + $0x58] sm:$0xf]
                %243 = vst [vmem:[%s219 + $0x2c] sm:$0xf] %v242
                %v244 = vld [vmem:[%s218 + $0x60] sm:$0xf]
                %245 = vst [vmem:[%s219 + $0x30] sm:$0xf] %v244
                %v246 = vld [vmem:[%s218 + $0x68] sm:$0xf]
                %247 = vst [vmem:[%s219 + $0x34] sm:$0xf] %v246
                %v248 = vld [vmem:[%s218 + $0x70] sm:$0xf]
                %249 = vst [vmem:[%s219 + $0x38] sm:$0xf] %v248
                %v250 = vld [vmem:[%s218 + $0x78] sm:$0xf]
                %251 = vst [vmem:[%s219 + $0x3c] sm:$0xf] %v250
                %v252 = vld [vmem:[%s218 + $0x80] sm:$0xf]
                %253 = vst [vmem:[%s219 + $0x40] sm:$0xf] %v252
                %v254 = vld [vmem:[%s218 + $0x88] sm:$0xf]
                %255 = vst [vmem:[%s219 + $0x44] sm:$0xf] %v254
                %v256 = vld [vmem:[%s218 + $0x90] sm:$0xf]
                %257 = vst [vmem:[%s219 + $0x48] sm:$0xf] %v256
                %v258 = vld [vmem:[%s218 + $0x98] sm:$0xf]
                %259 = vst [vmem:[%s219 + $0x4c] sm:$0xf] %v258
                %v260 = vld [vmem:[%s218 + $0xa0] sm:$0xf]
                %261 = vst [vmem:[%s219 + $0x50] sm:$0xf] %v260
                %v262 = vld [vmem:[%s218 + $0xa8] sm:$0xf]
                %263 = vst [vmem:[%s219 + $0x54] sm:$0xf] %v262
                %v264 = vld [vmem:[%s218 + $0xb0] sm:$0xf]
                %265 = vst [vmem:[%s219 + $0x58] sm:$0xf] %v264
                %v266 = vld [vmem:[%s218 + $0xb8] sm:$0xf]
                %267 = vst [vmem:[%s219 + $0x5c] sm:$0xf] %v266
                %v268 = vld [vmem:[%s218 + $0xc0] sm:$0xf]
                %269 = vst [vmem:[%s219 + $0x60] sm:$0xf] %v268
                %v270 = vld [vmem:[%s218 + $0xc8] sm:$0xf]
                %271 = vst [vmem:[%s219 + $0x64] sm:$0xf] %v270
                %v272 = vld [vmem:[%s218 + $0xd0] sm:$0xf]
                %273 = vst [vmem:[%s219 + $0x68] sm:$0xf] %v272
                %v274 = vld [vmem:[%s218 + $0xd8] sm:$0xf]
                %275 = vst [vmem:[%s219 + $0x6c] sm:$0xf] %v274
                %v276 = vld [vmem:[%s218 + $0xe0] sm:$0xf]
                %277 = vst [vmem:[%s219 + $0x70] sm:$0xf] %v276
                %v278 = vld [vmem:[%s218 + $0xe8] sm:$0xf]
                %279 = vst [vmem:[%s219 + $0x74] sm:$0xf] %v278
                %v280 = vld [vmem:[%s218 + $0xf0] sm:$0xf]
                %281 = vst [vmem:[%s219 + $0x78] sm:$0xf] %v280
                %v282 = vld [vmem:[%s218 + $0xf8] sm:$0xf]
                %283 = vst [vmem:[%s219 + $0x7c] sm:$0xf] %v282
                %v284 = vld [vmem:[%s218 + $0x100] sm:$0xf]
                %285 = vst [vmem:[%s219 + $0x80] sm:$0xf] %v284
                %v286 = vld [vmem:[%s218 + $0x108] sm:$0xf]
                %287 = vst [vmem:[%s219 + $0x84] sm:$0xf] %v286
                %v288 = vld [vmem:[%s218 + $0x110] sm:$0xf]
                %289 = vst [vmem:[%s219 + $0x88] sm:$0xf] %v288
                %v290 = vld [vmem:[%s218 + $0x118] sm:$0xf]
                %291 = vst [vmem:[%s219 + $0x8c] sm:$0xf] %v290
                %v292 = vld [vmem:[%s218 + $0x120] sm:$0xf]
                %293 = vst [vmem:[%s219 + $0x90] sm:$0xf] %v292
                %v294 = vld [vmem:[%s218 + $0x128] sm:$0xf]
                %295 = vst [vmem:[%s219 + $0x94] sm:$0xf] %v294
                %v296 = vld [vmem:[%s218 + $0x130] sm:$0xf]
                %297 = vst [vmem:[%s219 + $0x98] sm:$0xf] %v296
                %v298 = vld [vmem:[%s218 + $0x138] sm:$0xf]
                %299 = vst [vmem:[%s219 + $0x9c] sm:$0xf] %v298
                %v300 = vld [vmem:[%s218 + $0x140] sm:$0xf]
                %301 = vst [vmem:[%s219 + $0xa0] sm:$0xf] %v300
                %v302 = vld [vmem:[%s218 + $0x148] sm:$0xf]
                %303 = vst [vmem:[%s219 + $0xa4] sm:$0xf] %v302
                %v304 = vld [vmem:[%s218 + $0x150] sm:$0xf]
                %305 = vst [vmem:[%s219 + $0xa8] sm:$0xf] %v304
                %v306 = vld [vmem:[%s218 + $0x158] sm:$0xf]
                %307 = vst [vmem:[%s219 + $0xac] sm:$0xf] %v306
                %v308 = vld [vmem:[%s218 + $0x160] sm:$0xf]
                %309 = vst [vmem:[%s219 + $0xb0] sm:$0xf] %v308
                %v310 = vld [vmem:[%s218 + $0x168] sm:$0xf]
                %311 = vst [vmem:[%s219 + $0xb4] sm:$0xf] %v310
                %v312 = vld [vmem:[%s218 + $0x170] sm:$0xf]
                %313 = vst [vmem:[%s219 + $0xb8] sm:$0xf] %v312
                %v314 = vld [vmem:[%s218 + $0x178] sm:$0xf]
                %315 = vst [vmem:[%s219 + $0xbc] sm:$0xf] %v314
                %v316 = vld [vmem:[%s218 + $0x180] sm:$0xf]
                %317 = vst [vmem:[%s219 + $0xc0] sm:$0xf] %v316
                %v318 = vld [vmem:[%s218 + $0x188] sm:$0xf]
                %319 = vst [vmem:[%s219 + $0xc4] sm:$0xf] %v318
                %v320 = vld [vmem:[%s218 + $0x190] sm:$0xf]
                %321 = vst [vmem:[%s219 + $0xc8] sm:$0xf] %v320
                %v322 = vld [vmem:[%s218 + $0x198] sm:$0xf]
                %323 = vst [vmem:[%s219 + $0xcc] sm:$0xf] %v322
                %v324 = vld [vmem:[%s218 + $0x1a0] sm:$0xf]
                %325 = vst [vmem:[%s219 + $0xd0] sm:$0xf] %v324
                %v326 = vld [vmem:[%s218 + $0x1a8] sm:$0xf]
                %327 = vst [vmem:[%s219 + $0xd4] sm:$0xf] %v326
                %v328 = vld [vmem:[%s218 + $0x1b0] sm:$0xf]
                %329 = vst [vmem:[%s219 + $0xd8] sm:$0xf] %v328
                %v330 = vld [vmem:[%s218 + $0x1b8] sm:$0xf]
                %331 = vst [vmem:[%s219 + $0xdc] sm:$0xf] %v330
                %v332 = vld [vmem:[%s218 + $0x1c0] sm:$0xf]
                %333 = vst [vmem:[%s219 + $0xe0] sm:$0xf] %v332
                %v334 = vld [vmem:[%s218 + $0x1c8] sm:$0xf]
                %335 = vst [vmem:[%s219 + $0xe4] sm:$0xf] %v334
                %v336 = vld [vmem:[%s218 + $0x1d0] sm:$0xf]
                %337 = vst [vmem:[%s219 + $0xe8] sm:$0xf] %v336
                %v338 = vld [vmem:[%s218 + $0x1d8] sm:$0xf]
                %339 = vst [vmem:[%s219 + $0xec] sm:$0xf] %v338
                %v340 = vld [vmem:[%s218 + $0x1e0] sm:$0xf]
                %341 = vst [vmem:[%s219 + $0xf0] sm:$0xf] %v340
                %v342 = vld [vmem:[%s218 + $0x1e8] sm:$0xf]
                %343 = vst [vmem:[%s219 + $0xf4] sm:$0xf] %v342
                %v344 = vld [vmem:[%s218 + $0x1f0] sm:$0xf]
                %345 = vst [vmem:[%s219 + $0xf8] sm:$0xf] %v344
                %v346 = vld [vmem:[%s218 + $0x1f8] sm:$0xf]
                %347 = vst [vmem:[%s219 + $0xfc] sm:$0xf] %v346
              $region60: #{discriminator_forward.10} parent=54 // loop_footer
                %s217 = sadd.s32 1, %s213
              $region61: #{discriminator_forward.10} parent=54 // loop_footer_branch
                %212 = sbr.rel target = $region57
              $region62: #{discriminator_forward.10} parent=54 // loop_exit
                _
            $region55: #{discriminator_forward.10} parent=46 // pred_fallthru
              _
          $region47: #{discriminator_forward.10} parent=42 // pred_fallthru
            _
          %495 = vnop
        $region43: #{discriminator_forward.10} parent=15 // pred_fallthru
          _
        // Predicated region
        $region81: #{discriminator_forward.10} parent=15 // pred_check
          %p496 = pneg %p104
        $region82: #{discriminator_forward.10} parent=15 // pred_check_branch
          %498 = sbr.rel (%p496) target = $region84
        $region83: #{discriminator_forward.10} parent=15 // pred_region
          %p499 = scmp.lt.s32.totalorder %s17, 1
          %s500 = scalar_select %p499, %s17, 1
          %s501 = scalar_lea.vmem %s2, %s500
        $region84: #{discriminator_forward.10} parent=15 // pred_fallthru
          _
      $region16: #{discriminator_forward.10} parent=5 // pred_fallthru
        _
      %p502 = scmp.le.s32.totalorder 1, %s9
      %p503 = scmp.lt.s32.totalorder %s9, 9
      %p504 = pnand %p502, %p503
      %p505 = pneg %p504
      // Predicated region
      $region85: #{discriminator_forward.10} parent=5 // pred_check
        _
      $region86: #{discriminator_forward.10} parent=5 // pred_check_branch
        %507 = sbr.rel (%p504) target = $region88
      $region87: #{discriminator_forward.10} parent=5 // pred_region
        %s508 = ssub.s32 %s9, 1
        %s509 = sand.u32 %s43, 1
        %s510 = sand.u32 %s43, 1
        %s511 = smul.addr %s510, 32
        %s512 = scalar_lea.vmem [#allocation3], %s511
        // Predicated region
        $region89: #{discriminator_forward.10} parent=87 // pred_check
          %p513 = pneg %p56
        $region90: #{discriminator_forward.10} parent=87 // pred_check_branch
          %515 = sbr.rel (%p513) target = $region92
        $region91: #{discriminator_forward.10} parent=87 // pred_region
          _
        $region92: #{discriminator_forward.10} parent=87 // pred_fallthru
          _
        %s516 = sand.u32 %s71, 1
        %s517 = sand.u32 %s71, 1
        %s518 = smul.addr %s517, 256
        %s519 = scalar_lea.vmem [#allocation4], %s518
        // Predicated region
        $region93: #{discriminator_forward.10} parent=87 // pred_check
          %p520 = pneg %p84
        $region94: #{discriminator_forward.10} parent=87 // pred_check_branch
          %522 = sbr.rel (%p520) target = $region96
        $region95: #{discriminator_forward.10} parent=87 // pred_region
          _
        $region96: #{discriminator_forward.10} parent=87 // pred_fallthru
          _
        %s523 = sand.u32 %s43, 1
        %s524 = sand.u32 %s43, 1
        %s525 = smul.addr %s524, 32
        %s526 = scalar_lea.vmem [#allocation3], %s525
        %p527 = pneg %p56
        %p528 = pneg %p53
        %s529 = sand.u32 %s71, 1
        %s530 = sand.u32 %s71, 1
        %s531 = smul.addr %s530, 256
        %s532 = scalar_lea.vmem [#allocation4], %s531
        %p533 = pneg %p84
        %p534 = pneg %p81
        %p535 = scmp.lt.s32.totalorder %s20, 1
        %s536 = scalar_select %p535, %s20, 1
        %s537 = scalar_lea.vmem %s2, %s536
        %p538 = pneg %p110
        %p539 = pneg %p107
        %p540 = pneg %p138
        %p541 = pneg %p135
        %s542 = sand.u32 %s125, 1
        %s543 = sand.u32 %s125, 1
        %s544 = smul.addr %s543, 16
        %s545 = scalar_lea.vmem [#allocation5], %s544
        %s546 = smul.u32 2, %s19
        %s547 = smul.u32 4, %s21
        %s548 = smul.u32 64, %s21
        %p549 = scmp.lt.s32.totalorder %s20, 1
        %s550 = scalar_select %p549, %s20, 1
        %s551 = scalar_lea.vmem %s2, %s550
        %s552 = smul.u32 2, %s19
        %p554 = scmp.eq.s32.totalorder %s21, 0
        // Predicated region
        $region97: #{discriminator_forward.10} parent=87 // pred_check
          %p555 = pneg %p554
        $region98: #{discriminator_forward.10} parent=87 // pred_check_branch
          %557 = sbr.rel (%p555) target = $region100
        $region99: #{discriminator_forward.10} parent=87 // pred_region
          %558 = vst [vmem:[#allocation2] sm:$0xff] 0.0
          %559 = vst [vmem:[#allocation2 + $0x8] sm:$0xff] 0.0
        $region100: #{discriminator_forward.10} parent=87 // pred_fallthru
          _
        %v560 = vld [vmem:[#allocation2] sm:$0xff]
        %v561 = vld [vmem:[#allocation2 + $0x8] sm:$0xff]
        %v562 = vld [vmem:[%s512] sm:$0xff]
        %v563 = vld [vmem:[%s512 + $0x8] sm:$0xff]
        %v564 = vld [vmem:[%s512 + $0x10] sm:$0xff]
        %v565 = vld [vmem:[%s512 + $0x18] sm:$0xff]
        %v566 = vld [vmem:[%s519] sm:$0xf]
        %v567 = vld [vmem:[%s519 + $0x4] sm:$0xf]
        %v568 = vld [vmem:[%s519 + $0x8] sm:$0xf]
        %v569 = vld [vmem:[%s519 + $0xc] sm:$0xf]
        %v570 = vld [vmem:[%s519 + $0x10] sm:$0xf]
        %v571 = vld [vmem:[%s519 + $0x14] sm:$0xf]
        %v572 = vld [vmem:[%s519 + $0x18] sm:$0xf]
        %v573 = vld [vmem:[%s519 + $0x1c] sm:$0xf]
        %v574 = vld [vmem:[%s519 + $0x20] sm:$0xf]
        %v575 = vld [vmem:[%s519 + $0x24] sm:$0xf]
        %v576 = vld [vmem:[%s519 + $0x28] sm:$0xf]
        %v577 = vld [vmem:[%s519 + $0x2c] sm:$0xf]
        %v578 = vld [vmem:[%s519 + $0x30] sm:$0xf]
        %v579 = vld [vmem:[%s519 + $0x34] sm:$0xf]
        %v580 = vld [vmem:[%s519 + $0x38] sm:$0xf]
        %v581 = vld [vmem:[%s519 + $0x3c] sm:$0xf]
        %v582 = vld [vmem:[%s519 + $0x40] sm:$0xf]
        %v583 = vld [vmem:[%s519 + $0x44] sm:$0xf]
        %v584 = vld [vmem:[%s519 + $0x48] sm:$0xf]
        %v585 = vld [vmem:[%s519 + $0x4c] sm:$0xf]
        %v586 = vld [vmem:[%s519 + $0x50] sm:$0xf]
        %v587 = vld [vmem:[%s519 + $0x54] sm:$0xf]
        %v588 = vld [vmem:[%s519 + $0x58] sm:$0xf]
        %v589 = vld [vmem:[%s519 + $0x5c] sm:$0xf]
        %v590 = vld [vmem:[%s519 + $0x60] sm:$0xf]
        %v591 = vld [vmem:[%s519 + $0x64] sm:$0xf]
        %v592 = vld [vmem:[%s519 + $0x68] sm:$0xf]
        %v593 = vld [vmem:[%s519 + $0x6c] sm:$0xf]
        %v594 = vld [vmem:[%s519 + $0x70] sm:$0xf]
        %v595 = vld [vmem:[%s519 + $0x74] sm:$0xf]
        %v596 = vld [vmem:[%s519 + $0x78] sm:$0xf]
        %v597 = vld [vmem:[%s519 + $0x7c] sm:$0xf]
        %v598 = vld [vmem:[%s519 + $0x80] sm:$0xf]
        %v599 = vld [vmem:[%s519 + $0x84] sm:$0xf]
        %v600 = vld [vmem:[%s519 + $0x88] sm:$0xf]
        %v601 = vld [vmem:[%s519 + $0x8c] sm:$0xf]
        %v602 = vld [vmem:[%s519 + $0x90] sm:$0xf]
        %v603 = vld [vmem:[%s519 + $0x94] sm:$0xf]
        %v604 = vld [vmem:[%s519 + $0x98] sm:$0xf]
        %v605 = vld [vmem:[%s519 + $0x9c] sm:$0xf]
        %v606 = vld [vmem:[%s519 + $0xa0] sm:$0xf]
        %v607 = vld [vmem:[%s519 + $0xa4] sm:$0xf]
        %v608 = vld [vmem:[%s519 + $0xa8] sm:$0xf]
        %v609 = vld [vmem:[%s519 + $0xac] sm:$0xf]
        %v610 = vld [vmem:[%s519 + $0xb0] sm:$0xf]
        %v611 = vld [vmem:[%s519 + $0xb4] sm:$0xf]
        %v612 = vld [vmem:[%s519 + $0xb8] sm:$0xf]
        %v613 = vld [vmem:[%s519 + $0xbc] sm:$0xf]
        %v614 = vld [vmem:[%s519 + $0xc0] sm:$0xf]
        %v615 = vld [vmem:[%s519 + $0xc4] sm:$0xf]
        %v616 = vld [vmem:[%s519 + $0xc8] sm:$0xf]
        %v617 = vld [vmem:[%s519 + $0xcc] sm:$0xf]
        %v618 = vld [vmem:[%s519 + $0xd0] sm:$0xf]
        %v619 = vld [vmem:[%s519 + $0xd4] sm:$0xf]
        %v620 = vld [vmem:[%s519 + $0xd8] sm:$0xf]
        %v621 = vld [vmem:[%s519 + $0xdc] sm:$0xf]
        %v622 = vld [vmem:[%s519 + $0xe0] sm:$0xf]
        %v623 = vld [vmem:[%s519 + $0xe4] sm:$0xf]
        %v624 = vld [vmem:[%s519 + $0xe8] sm:$0xf]
        %v625 = vld [vmem:[%s519 + $0xec] sm:$0xf]
        %v626 = vld [vmem:[%s519 + $0xf0] sm:$0xf]
        %v627 = vld [vmem:[%s519 + $0xf4] sm:$0xf]
        %v628 = vld [vmem:[%s519 + $0xf8] sm:$0xf]
        %v629 = vld [vmem:[%s519 + $0xfc] sm:$0xf]
        %v634 = vunpack.c.l.b16 %v562
        %v635 = vunpack.c.h.b16 %v562
        %v636 = vunpack.c.l.b16 %v563
        %v637 = vunpack.c.h.b16 %v563
        %v638 = vunpack.c.l.b16 %v564
        %v639 = vunpack.c.h.b16 %v564
        %v640 = vunpack.c.l.b16 %v565
        %v641 = vunpack.c.h.b16 %v565
        %v642 = vpack.c.b16 %v638, %v634
        %v643 = vpack.c.b16 %v639, %v635
        %v644 = vpack.c.b16 %v640, %v636
        %v645 = vpack.c.b16 %v641, %v637
        %v714 = vunpack.c.l.b16 %v566
        %v715 = vunpack.c.l.b16 %v567
        %v716 = vunpack.c.l.b16 %v568
        %v717 = vunpack.c.l.b16 %v569
        %v718 = vunpack.c.l.b16 %v570
        %v719 = vunpack.c.l.b16 %v571
        %v720 = vunpack.c.l.b16 %v572
        %v721 = vunpack.c.l.b16 %v573
        %v722 = vunpack.c.l.b16 %v574
        %v723 = vunpack.c.l.b16 %v575
        %v724 = vunpack.c.l.b16 %v576
        %v725 = vunpack.c.l.b16 %v577
        %v726 = vunpack.c.l.b16 %v578
        %v727 = vunpack.c.l.b16 %v579
        %v728 = vunpack.c.l.b16 %v580
        %v729 = vunpack.c.l.b16 %v581
        %v730 = vunpack.c.l.b16 %v582
        %v731 = vunpack.c.l.b16 %v583
        %v732 = vunpack.c.l.b16 %v584
        %v733 = vunpack.c.l.b16 %v585
        %v734 = vunpack.c.l.b16 %v586
        %v735 = vunpack.c.l.b16 %v587
        %v736 = vunpack.c.l.b16 %v588
        %v737 = vunpack.c.l.b16 %v589
        %v738 = vunpack.c.l.b16 %v590
        %v739 = vunpack.c.l.b16 %v591
        %v740 = vunpack.c.l.b16 %v592
        %v741 = vunpack.c.l.b16 %v593
        %v742 = vunpack.c.l.b16 %v594
        %v743 = vunpack.c.l.b16 %v595
        %v744 = vunpack.c.l.b16 %v596
        %v745 = vunpack.c.l.b16 %v597
        %v746 = vunpack.c.l.b16 %v598
        %v747 = vunpack.c.l.b16 %v599
        %v748 = vunpack.c.l.b16 %v600
        %v749 = vunpack.c.l.b16 %v601
        %v750 = vunpack.c.l.b16 %v602
        %v751 = vunpack.c.l.b16 %v603
        %v752 = vunpack.c.l.b16 %v604
        %v753 = vunpack.c.l.b16 %v605
        %v754 = vunpack.c.l.b16 %v606
        %v755 = vunpack.c.l.b16 %v607
        %v756 = vunpack.c.l.b16 %v608
        %v757 = vunpack.c.l.b16 %v609
        %v758 = vunpack.c.l.b16 %v610
        %v759 = vunpack.c.l.b16 %v611
        %v760 = vunpack.c.l.b16 %v612
        %v761 = vunpack.c.l.b16 %v613
        %v762 = vunpack.c.l.b16 %v614
        %v763 = vunpack.c.l.b16 %v615
        %v764 = vunpack.c.l.b16 %v616
        %v765 = vunpack.c.l.b16 %v617
        %v766 = vunpack.c.l.b16 %v618
        %v767 = vunpack.c.l.b16 %v619
        %v768 = vunpack.c.l.b16 %v620
        %v769 = vunpack.c.l.b16 %v621
        %v770 = vunpack.c.l.b16 %v622
        %v771 = vunpack.c.l.b16 %v623
        %v772 = vunpack.c.l.b16 %v624
        %v773 = vunpack.c.l.b16 %v625
        %v774 = vunpack.c.l.b16 %v626
        %v775 = vunpack.c.l.b16 %v627
        %v776 = vunpack.c.l.b16 %v628
        %v777 = vunpack.c.l.b16 %v629
        %v778 = vpack.c.b16 %v715, %v714
        %v779 = vpack.c.b16 %v717, %v716
        %v780 = vpack.c.b16 %v719, %v718
        %v781 = vpack.c.b16 %v721, %v720
        %v782 = vpack.c.b16 %v723, %v722
        %v783 = vpack.c.b16 %v725, %v724
        %v784 = vpack.c.b16 %v727, %v726
        %v785 = vpack.c.b16 %v729, %v728
        %v786 = vpack.c.b16 %v731, %v730
        %v787 = vpack.c.b16 %v733, %v732
        %v788 = vpack.c.b16 %v735, %v734
        %v789 = vpack.c.b16 %v737, %v736
        %v790 = vpack.c.b16 %v739, %v738
        %v791 = vpack.c.b16 %v741, %v740
        %v792 = vpack.c.b16 %v743, %v742
        %v793 = vpack.c.b16 %v745, %v744
        %v794 = vpack.c.b16 %v747, %v746
        %v795 = vpack.c.b16 %v749, %v748
        %v796 = vpack.c.b16 %v751, %v750
        %v797 = vpack.c.b16 %v753, %v752
        %v798 = vpack.c.b16 %v755, %v754
        %v799 = vpack.c.b16 %v757, %v756
        %v800 = vpack.c.b16 %v759, %v758
        %v801 = vpack.c.b16 %v761, %v760
        %v802 = vpack.c.b16 %v763, %v762
        %v803 = vpack.c.b16 %v765, %v764
        %v804 = vpack.c.b16 %v767, %v766
        %v805 = vpack.c.b16 %v769, %v768
        %v806 = vpack.c.b16 %v771, %v770
        %v807 = vpack.c.b16 %v773, %v772
        %v808 = vpack.c.b16 %v775, %v774
        %v809 = vpack.c.b16 %v777, %v776
        %842 = vmatprep.subr.bf16.mxu0 0
        %843 = vmatpush1.bf16.msra.mxu0 %v778
        %844 = vmatprep.subr.bf16.mxu0 0
        %845 = vmatpush1.bf16.msra.mxu0 %v779
        %846 = vmatprep.subr.bf16.mxu0 0
        %847 = vmatpush1.bf16.msra.mxu0 %v780
        %848 = vmatprep.subr.bf16.mxu0 0
        %849 = vmatpush1.bf16.msra.mxu0 %v781
        %850 = vmatprep.subr.bf16.mxu0 0
        %851 = vmatpush1.bf16.msra.mxu0 %v782
        %852 = vmatprep.subr.bf16.mxu0 0
        %853 = vmatpush1.bf16.msra.mxu0 %v783
        %854 = vmatprep.subr.bf16.mxu0 0
        %855 = vmatpush1.bf16.msra.mxu0 %v784
        %856 = vmatprep.subr.bf16.mxu0 0
        %857 = vmatpush1.bf16.msra.mxu0 %v785
        %858 = vmatprep.subr.bf16.mxu0 0
        %859 = vmatpush1.bf16.msra.mxu0 %v786
        %860 = vmatprep.subr.bf16.mxu0 0
        %861 = vmatpush1.bf16.msra.mxu0 %v787
        %862 = vmatprep.subr.bf16.mxu0 0
        %863 = vmatpush1.bf16.msra.mxu0 %v788
        %864 = vmatprep.subr.bf16.mxu0 0
        %865 = vmatpush1.bf16.msra.mxu0 %v789
        %866 = vmatprep.subr.bf16.mxu0 0
        %867 = vmatpush1.bf16.msra.mxu0 %v790
        %868 = vmatprep.subr.bf16.mxu0 0
        %869 = vmatpush1.bf16.msra.mxu0 %v791
        %870 = vmatprep.subr.bf16.mxu0 0
        %871 = vmatpush1.bf16.msra.mxu0 %v792
        %872 = vmatprep.subr.bf16.mxu0 0
        %873 = vmatpush1.bf16.msra.mxu0 %v793
        %874 = vmatprep.mubr.bf16.mxu0 %v643
        %875 = vmatmul.mubr.bf16.gmra.mrb[0].mxu0 %v642
        %v876 = vpop.f32.mrb[0].mxu0
        %v877 = vadd.f32 0.0, %v876
        %v878 = vpop.f32.mrb[0].mxu0
        %v879 = vpop.f32.mrb[0].mxu0
        %v880 = vadd.f32 0.0, %v879
        %v881 = vpop.f32.mrb[0].mxu0
        %882 = vdwg.mxu0
        %883 = vmatprep.subr.bf16.mxu0 0
        %884 = vmatpush1.bf16.msra.mxu0 %v794
        %885 = vmatprep.subr.bf16.mxu0 0
        %886 = vmatpush1.bf16.msra.mxu0 %v795
        %887 = vmatprep.subr.bf16.mxu0 0
        %888 = vmatpush1.bf16.msra.mxu0 %v796
        %889 = vmatprep.subr.bf16.mxu0 0
        %890 = vmatpush1.bf16.msra.mxu0 %v797
        %891 = vmatprep.subr.bf16.mxu0 0
        %892 = vmatpush1.bf16.msra.mxu0 %v798
        %893 = vmatprep.subr.bf16.mxu0 0
        %894 = vmatpush1.bf16.msra.mxu0 %v799
        %895 = vmatprep.subr.bf16.mxu0 0
        %896 = vmatpush1.bf16.msra.mxu0 %v800
        %897 = vmatprep.subr.bf16.mxu0 0
        %898 = vmatpush1.bf16.msra.mxu0 %v801
        %899 = vmatprep.subr.bf16.mxu0 0
        %900 = vmatpush1.bf16.msra.mxu0 %v802
        %901 = vmatprep.subr.bf16.mxu0 0
        %902 = vmatpush1.bf16.msra.mxu0 %v803
        %903 = vmatprep.subr.bf16.mxu0 0
        %904 = vmatpush1.bf16.msra.mxu0 %v804
        %905 = vmatprep.subr.bf16.mxu0 0
        %906 = vmatpush1.bf16.msra.mxu0 %v805
        %907 = vmatprep.subr.bf16.mxu0 0
        %908 = vmatpush1.bf16.msra.mxu0 %v806
        %909 = vmatprep.subr.bf16.mxu0 0
        %910 = vmatpush1.bf16.msra.mxu0 %v807
        %911 = vmatprep.subr.bf16.mxu0 0
        %912 = vmatpush1.bf16.msra.mxu0 %v808
        %913 = vmatprep.subr.bf16.mxu0 0
        %914 = vmatpush1.bf16.msra.mxu0 %v809
        %915 = vmatprep.mubr.bf16.mxu0 %v645
        %916 = vmatmul.mubr.bf16.gmra.mrb[0].mxu0 %v644
        %v917 = vpop.f32.mrb[0].mxu0
        %v918 = vadd.f32 %v877, %v917
        %v919 = vpop.f32.mrb[0].mxu0
        %v920 = vpop.f32.mrb[0].mxu0
        %v921 = vadd.f32 %v880, %v920
        %v922 = vpop.f32.mrb[0].mxu0
        %923 = vdwg.mxu0
        %v924 = vadd.f32 %v560, %v918
        %v925 = vadd.f32 %v561, %v921
        %926 = vst [vmem:[#allocation2] sm:$0xff] %v924
        %927 = vst [vmem:[#allocation2 + $0x8] sm:$0xff] %v925
        %p928 = scmp.eq.s32.totalorder %s21, 3
        // Predicated region
        $region101: #{discriminator_forward.10} parent=87 // pred_check
          %p929 = pneg %p928
        $region102: #{discriminator_forward.10} parent=87 // pred_check_branch
          %931 = sbr.rel (%p929) target = $region104
        $region103: #{discriminator_forward.10} parent=87 // pred_region
          %v932 = vld [vmem:[#allocation2] sm:$0xff]
          %v933 = vld [vmem:[#allocation2 + $0x8] sm:$0xff]
          %v934 = vld [vmem:[%s551] sm:$0x1]
          %v936 = vlaneseq
          %v937 = vshrl.u32 %v936, 7
          %v938 = vsub.s32 0, %v937
          %v939 = vrot.slane %v934, %v938
          %v941 = vadd.f32 %v932, %v939
          %v942 = vadd.f32 %v933, %v939
          %vm943 = vcmp.ge.f32.partialorder %v941, 0.0
          %vm944 = vcmp.ge.f32.partialorder %v942, 0.0
          %v945 = vmul.f32 %v941, 0.01
          %v946 = vmul.f32 %v942, 0.01
          %v947 = vsel %vm943, %v941, %v945
          %v948 = vsel %vm944, %v942, %v946
          %949 = vst [vmem:[%s545] sm:$0xff] %v947
          %950 = vst [vmem:[%s545 + $0x8] sm:$0xff] %v948
        $region104: #{discriminator_forward.10} parent=87 // pred_fallthru
          _
        %s951 = sand.u32 %s125, 1
        %s952 = sand.u32 %s125, 1
        %s953 = smul.addr %s952, 16
        %s954 = scalar_lea.vmem [#allocation5], %s953
        // Predicated region
        $region105: #{discriminator_forward.10} parent=87 // pred_check
          %p955 = pneg %p135
        $region106: #{discriminator_forward.10} parent=87 // pred_check_branch
          %957 = sbr.rel (%p955) target = $region108
        $region107: #{discriminator_forward.10} parent=87 // pred_region
          %s958 = smul.u32 2, %s19
          %s959 = smul.addr %s958, 2
          %s960 = sadd.s32 %s20, %s959
          %s961 = smul.addr %s960, 8
          %s962 = scalar_lea.vmem %s3, %s961
          // Predicated region
          $region109: #{discriminator_forward.10} parent=107 // pred_check
            _
          $region110: #{discriminator_forward.10} parent=107 // pred_check_branch
            %964 = sbr.rel (0) target = $region112
          $region111: #{discriminator_forward.10} parent=107 // pred_region
            // Predicated region
            $region113: #{discriminator_forward.10} parent=111 // pred_check
              _
            $region114: #{discriminator_forward.10} parent=111 // pred_check_branch
              %966 = sbr.rel (0) target = $region116
            $region115: #{discriminator_forward.10} parent=111 // pred_region
              // Predicated region
              $region128: #{discriminator_forward.10} parent=115 // pred_check
                _
              $region129: #{discriminator_forward.10} parent=115 // pred_check_branch
                %983 = sbr.rel (0) target = $region131
              $region130: #{discriminator_forward.10} parent=115 // pred_region
                loop: start=0, step=1, limit=1
                $region132: #{discriminator_forward.10} parent=130 // loop_pre_header
                  _
                $region133: #{discriminator_forward.10} parent=130 // loop_header
                  %s985 = sphi 0, %s989
                  %p986 = scmp.ge.s32.totalorder %s985, 1
                  %s990 = sphi %s954, %s954
                  %s991 = sphi %s962, %s962
                $region134: #{discriminator_forward.10} parent=130 // loop_header_branch
                  %988 = sbr.rel (%p986) target = $region138
                $region135: #{discriminator_forward.10} parent=130 // loop_body
                  %v992 = vld [vmem:[%s990] sm:$0xff]
                  %993 = vst [vmem:[%s991] sm:$0xff] %v992
                  %v994 = vld [vmem:[%s990 + $0x8] sm:$0xff]
                  %995 = vst [vmem:[%s991 + $0x10] sm:$0xff] %v994
                $region136: #{discriminator_forward.10} parent=130 // loop_footer
                  %s989 = sadd.s32 1, %s985
                $region137: #{discriminator_forward.10} parent=130 // loop_footer_branch
                  %984 = sbr.rel target = $region133
                $region138: #{discriminator_forward.10} parent=130 // loop_exit
                  _
              $region131: #{discriminator_forward.10} parent=115 // pred_fallthru
                _
              // Predicated region
              $region139: #{discriminator_forward.10} parent=115 // pred_check
                _
              $region140: #{discriminator_forward.10} parent=115 // pred_check_branch
                %997 = sbr.rel target = $region142
              $region141: #{discriminator_forward.10} parent=115 // pred_region
                _
              $region142: #{discriminator_forward.10} parent=115 // pred_fallthru
                _
            $region116: #{discriminator_forward.10} parent=111 // pred_fallthru
              _
            // Predicated region
            $region117: #{discriminator_forward.10} parent=111 // pred_check
              _
            $region118: #{discriminator_forward.10} parent=111 // pred_check_branch
              %968 = sbr.rel target = $region120
            $region119: #{discriminator_forward.10} parent=111 // pred_region
              loop: start=0, step=1, limit=1
              $region121: #{discriminator_forward.10} parent=119 // loop_pre_header
                _
              $region122: #{discriminator_forward.10} parent=119 // loop_header
                %s971 = sphi 0, %s975
                %p972 = scmp.ge.s32.totalorder %s971, 1
                %s976 = sphi %s954, %s954
                %s977 = sphi %s962, %s962
              $region123: #{discriminator_forward.10} parent=119 // loop_header_branch
                %974 = sbr.rel (%p972) target = $region127
              $region124: #{discriminator_forward.10} parent=119 // loop_body
                %v978 = vld [vmem:[%s976] sm:$0xff]
                %979 = vst [vmem:[%s977] sm:$0xff] %v978
                %v980 = vld [vmem:[%s976 + $0x8] sm:$0xff]
                %981 = vst [vmem:[%s977 + $0x10] sm:$0xff] %v980
              $region125: #{discriminator_forward.10} parent=119 // loop_footer
                %s975 = sadd.s32 1, %s971
              $region126: #{discriminator_forward.10} parent=119 // loop_footer_branch
                %970 = sbr.rel target = $region122
              $region127: #{discriminator_forward.10} parent=119 // loop_exit
                _
            $region120: #{discriminator_forward.10} parent=111 // pred_fallthru
              _
          $region112: #{discriminator_forward.10} parent=107 // pred_fallthru
            _
          %998 = vnop
        $region108: #{discriminator_forward.10} parent=87 // pred_fallthru
          _
      $region88: #{discriminator_forward.10} parent=5 // pred_fallthru
        _
      %p999 = scmp.le.s32.totalorder 2, %s9
      // Predicated region
      $region143: #{discriminator_forward.10} parent=5 // pred_check
        %p1000 = pneg %p999
      $region144: #{discriminator_forward.10} parent=5 // pred_check_branch
        %1002 = sbr.rel (%p1000) target = $region146
      $region145: #{discriminator_forward.10} parent=5 // pred_region
        %s1003 = ssub.s32 %s9, 2
        // Predicated region
        $region147: #{discriminator_forward.10} parent=145 // pred_check
          %p1004 = pneg %p141
        $region148: #{discriminator_forward.10} parent=145 // pred_check_branch
          %1006 = sbr.rel (%p1004) target = $region150
        $region149: #{discriminator_forward.10} parent=145 // pred_region
          %s1007 = sand.u32 %s126, 1
          %s1008 = sand.u32 %s126, 1
          %s1009 = smul.addr %s1008, 16
          %s1010 = scalar_lea.vmem [#allocation5], %s1009
        $region150: #{discriminator_forward.10} parent=145 // pred_fallthru
          _
      $region146: #{discriminator_forward.10} parent=5 // pred_fallthru
        _
    $region6: #{discriminator_forward.10} parent=1 // loop_footer
      %s13 = sadd.s32 1, %s9
    $region7: #{discriminator_forward.10} parent=1 // loop_footer_branch
      %8 = sbr.rel target = $region3
    $region8: #{discriminator_forward.10} parent=1 // loop_exit
      _

// kernel: discriminator_forward.11
$region0: #{discriminator_forward.11}
  #allocation0 [shape = 'u32[]', space=smem, size = 0x4, offset = 0x4, fixed_abs, tag = 'smem constant byte address 0x4 - core index']
  #allocation1 [shape = 'u32[144,128]{1,0:T(1,128)}', space=vmem, size = 0x12000, scoped, tag = 'internal scratch']
  #allocation2 [shape = 'f32[16,128]{1,0:T(8,128)}', space=vmem, size = 0x2000, scoped, tag = 'scratch operand']
  %s0 = inlined_call_operand.vmem [shape: bf16[16,256], index: 0, kind: input, shape index: {}]
  %s1 = inlined_call_operand.vmem [shape: bf16[256,128], index: 1, kind: input, shape index: {}]
  %s2 = inlined_call_operand.vmem [shape: f32[1,128], index: 2, kind: input, shape index: {}]
  %s3 = inlined_call_operand.vmem [shape: f32[16,128], index: 3, kind: output, shape index: {}]
  %s4 = sld [smem:[#allocation0]]
  $region30: #{discriminator_forward.11} parent=0
    _
  %s6 = ssub.s32 1, %s4
  %s7 = scalar_select 0, %s6, %s4
  // Predicated region
  $region2: #{discriminator_forward.11} parent=0 // pred_check
    _
  $region3: #{discriminator_forward.11} parent=0 // pred_check_branch
    %9 = sbr.rel (0) target = $region5
  $region4: #{discriminator_forward.11} parent=0 // pred_region
    _
  $region5: #{discriminator_forward.11} parent=0 // pred_fallthru
    _
  // Predicated region
  $region6: #{discriminator_forward.11} parent=0 // pred_check
    _
  $region7: #{discriminator_forward.11} parent=0 // pred_check_branch
    %11 = sbr.rel (0) target = $region9
  $region8: #{discriminator_forward.11} parent=0 // pred_region
    _
  $region9: #{discriminator_forward.11} parent=0 // pred_fallthru
    _
  // Predicated region
  $region10: #{discriminator_forward.11} parent=0 // pred_check
    _
  $region11: #{discriminator_forward.11} parent=0 // pred_check_branch
    %13 = sbr.rel (0) target = $region13
  $region12: #{discriminator_forward.11} parent=0 // pred_region
    _
  $region13: #{discriminator_forward.11} parent=0 // pred_fallthru
    _
  %p15 = scmp.eq.s32.totalorder 0, 0
  // Predicated region
  $region14: #{discriminator_forward.11} parent=0 // pred_check
    %p16 = pneg %p15
  $region15: #{discriminator_forward.11} parent=0 // pred_check_branch
    %18 = sbr.rel (%p16) target = $region17
  $region16: #{discriminator_forward.11} parent=0 // pred_region
    %19 = vst [vmem:[#allocation2] sm:$0xff] 0.0
    %20 = vst [vmem:[#allocation2 + $0x8] sm:$0xff] 0.0
  $region17: #{discriminator_forward.11} parent=0 // pred_fallthru
    _
  %v21 = vld [vmem:[#allocation2] sm:$0xff]
  %v22 = vld [vmem:[#allocation2 + $0x8] sm:$0xff]
  %v23 = vld [vmem:[%s0] sm:$0xff]
  %v24 = vld [vmem:[%s0 + $0x8] sm:$0xff]
  %v25 = vld [vmem:[%s1] sm:$0xf]
  %v26 = vld [vmem:[%s1 + $0x4] sm:$0xf]
  %v27 = vld [vmem:[%s1 + $0x8] sm:$0xf]
  %v28 = vld [vmem:[%s1 + $0xc] sm:$0xf]
  %v29 = vld [vmem:[%s1 + $0x10] sm:$0xf]
  %v30 = vld [vmem:[%s1 + $0x14] sm:$0xf]
  %v31 = vld [vmem:[%s1 + $0x18] sm:$0xf]
  %v32 = vld [vmem:[%s1 + $0x1c] sm:$0xf]
  %v33 = vld [vmem:[%s1 + $0x20] sm:$0xf]
  %v34 = vld [vmem:[%s1 + $0x24] sm:$0xf]
  %v35 = vld [vmem:[%s1 + $0x28] sm:$0xf]
  %v36 = vld [vmem:[%s1 + $0x2c] sm:$0xf]
  %v37 = vld [vmem:[%s1 + $0x30] sm:$0xf]
  %v38 = vld [vmem:[%s1 + $0x34] sm:$0xf]
  %v39 = vld [vmem:[%s1 + $0x38] sm:$0xf]
  %v40 = vld [vmem:[%s1 + $0x3c] sm:$0xf]
  %v41 = vld [vmem:[%s1 + $0x40] sm:$0xf]
  %v42 = vld [vmem:[%s1 + $0x44] sm:$0xf]
  %v43 = vld [vmem:[%s1 + $0x48] sm:$0xf]
  %v44 = vld [vmem:[%s1 + $0x4c] sm:$0xf]
  %v45 = vld [vmem:[%s1 + $0x50] sm:$0xf]
  %v46 = vld [vmem:[%s1 + $0x54] sm:$0xf]
  %v47 = vld [vmem:[%s1 + $0x58] sm:$0xf]
  %v48 = vld [vmem:[%s1 + $0x5c] sm:$0xf]
  %v49 = vld [vmem:[%s1 + $0x60] sm:$0xf]
  %v50 = vld [vmem:[%s1 + $0x64] sm:$0xf]
  %v51 = vld [vmem:[%s1 + $0x68] sm:$0xf]
  %v52 = vld [vmem:[%s1 + $0x6c] sm:$0xf]
  %v53 = vld [vmem:[%s1 + $0x70] sm:$0xf]
  %v54 = vld [vmem:[%s1 + $0x74] sm:$0xf]
  %v55 = vld [vmem:[%s1 + $0x78] sm:$0xf]
  %v56 = vld [vmem:[%s1 + $0x7c] sm:$0xf]
  %v59 = vunpack.c.l.b16 %v23
  %v60 = vunpack.c.h.b16 %v23
  %v61 = vunpack.c.l.b16 %v24
  %v62 = vunpack.c.h.b16 %v24
  %v63 = vpack.c.b16 %v61, %v59
  %v64 = vpack.c.b16 %v62, %v60
  %v99 = vunpack.c.l.b16 %v25
  %v100 = vunpack.c.l.b16 %v26
  %v101 = vunpack.c.l.b16 %v27
  %v102 = vunpack.c.l.b16 %v28
  %v103 = vunpack.c.l.b16 %v29
  %v104 = vunpack.c.l.b16 %v30
  %v105 = vunpack.c.l.b16 %v31
  %v106 = vunpack.c.l.b16 %v32
  %v107 = vunpack.c.l.b16 %v33
  %v108 = vunpack.c.l.b16 %v34
  %v109 = vunpack.c.l.b16 %v35
  %v110 = vunpack.c.l.b16 %v36
  %v111 = vunpack.c.l.b16 %v37
  %v112 = vunpack.c.l.b16 %v38
  %v113 = vunpack.c.l.b16 %v39
  %v114 = vunpack.c.l.b16 %v40
  %v115 = vunpack.c.l.b16 %v41
  %v116 = vunpack.c.l.b16 %v42
  %v117 = vunpack.c.l.b16 %v43
  %v118 = vunpack.c.l.b16 %v44
  %v119 = vunpack.c.l.b16 %v45
  %v120 = vunpack.c.l.b16 %v46
  %v121 = vunpack.c.l.b16 %v47
  %v122 = vunpack.c.l.b16 %v48
  %v123 = vunpack.c.l.b16 %v49
  %v124 = vunpack.c.l.b16 %v50
  %v125 = vunpack.c.l.b16 %v51
  %v126 = vunpack.c.l.b16 %v52
  %v127 = vunpack.c.l.b16 %v53
  %v128 = vunpack.c.l.b16 %v54
  %v129 = vunpack.c.l.b16 %v55
  %v130 = vunpack.c.l.b16 %v56
  %v131 = vpack.c.b16 %v100, %v99
  %v132 = vpack.c.b16 %v102, %v101
  %v133 = vpack.c.b16 %v104, %v103
  %v134 = vpack.c.b16 %v106, %v105
  %v135 = vpack.c.b16 %v108, %v107
  %v136 = vpack.c.b16 %v110, %v109
  %v137 = vpack.c.b16 %v112, %v111
  %v138 = vpack.c.b16 %v114, %v113
  %v139 = vpack.c.b16 %v116, %v115
  %v140 = vpack.c.b16 %v118, %v117
  %v141 = vpack.c.b16 %v120, %v119
  %v142 = vpack.c.b16 %v122, %v121
  %v143 = vpack.c.b16 %v124, %v123
  %v144 = vpack.c.b16 %v126, %v125
  %v145 = vpack.c.b16 %v128, %v127
  %v146 = vpack.c.b16 %v130, %v129
  %163 = vmatprep.subr.bf16.mxu0 0
  %164 = vmatpush1.bf16.msra.mxu0 %v131
  %165 = vmatprep.subr.bf16.mxu0 0
  %166 = vmatpush1.bf16.msra.mxu0 %v132
  %167 = vmatprep.subr.bf16.mxu0 0
  %168 = vmatpush1.bf16.msra.mxu0 %v133
  %169 = vmatprep.subr.bf16.mxu0 0
  %170 = vmatpush1.bf16.msra.mxu0 %v134
  %171 = vmatprep.subr.bf16.mxu0 0
  %172 = vmatpush1.bf16.msra.mxu0 %v135
  %173 = vmatprep.subr.bf16.mxu0 0
  %174 = vmatpush1.bf16.msra.mxu0 %v136
  %175 = vmatprep.subr.bf16.mxu0 0
  %176 = vmatpush1.bf16.msra.mxu0 %v137
  %177 = vmatprep.subr.bf16.mxu0 0
  %178 = vmatpush1.bf16.msra.mxu0 %v138
  %179 = vmatprep.subr.bf16.mxu0 0
  %180 = vmatpush1.bf16.msra.mxu0 %v139
  %181 = vmatprep.subr.bf16.mxu0 0
  %182 = vmatpush1.bf16.msra.mxu0 %v140
  %183 = vmatprep.subr.bf16.mxu0 0
  %184 = vmatpush1.bf16.msra.mxu0 %v141
  %185 = vmatprep.subr.bf16.mxu0 0
  %186 = vmatpush1.bf16.msra.mxu0 %v142
  %187 = vmatprep.subr.bf16.mxu0 0
  %188 = vmatpush1.bf16.msra.mxu0 %v143
  %189 = vmatprep.subr.bf16.mxu0 0
  %190 = vmatpush1.bf16.msra.mxu0 %v144
  %191 = vmatprep.subr.bf16.mxu0 0
  %192 = vmatpush1.bf16.msra.mxu0 %v145
  %193 = vmatprep.subr.bf16.mxu0 0
  %194 = vmatpush1.bf16.msra.mxu0 %v146
  %195 = vmatprep.mubr.bf16.mxu0 %v64
  %196 = vmatmul.mubr.bf16.gmra.mrb[0].mxu0 %v63
  %v197 = vpop.f32.mrb[0].mxu0
  %v198 = vadd.f32 0.0, %v197
  %v199 = vpop.f32.mrb[0].mxu0
  %v200 = vpop.f32.mrb[0].mxu0
  %v201 = vadd.f32 0.0, %v200
  %v202 = vpop.f32.mrb[0].mxu0
  %203 = vdwg.mxu0
  %v204 = vadd.f32 %v21, %v198
  %v205 = vadd.f32 %v22, %v201
  %206 = vst [vmem:[#allocation2] sm:$0xff] %v204
  %207 = vst [vmem:[#allocation2 + $0x8] sm:$0xff] %v205
  // Predicated region
  $region18: #{discriminator_forward.11} parent=0 // pred_check
    %p208 = pneg %p15
  $region19: #{discriminator_forward.11} parent=0 // pred_check_branch
    %210 = sbr.rel (%p208) target = $region21
  $region20: #{discriminator_forward.11} parent=0 // pred_region
    %v211 = vld [vmem:[#allocation2] sm:$0xff]
    %v212 = vld [vmem:[#allocation2 + $0x8] sm:$0xff]
    %v213 = vld [vmem:[%s2] sm:$0x1]
    %v215 = vlaneseq
    %v216 = vshrl.u32 %v215, 7
    %v217 = vsub.s32 0, %v216
    %v218 = vrot.slane %v213, %v217
    %v220 = vadd.f32 %v211, %v218
    %v221 = vadd.f32 %v212, %v218
    %222 = vst [vmem:[%s3] sm:$0xff] %v220
    %223 = vst [vmem:[%s3 + $0x8] sm:$0xff] %v221
  $region21: #{discriminator_forward.11} parent=0 // pred_fallthru
    _
  // Predicated region
  $region22: #{discriminator_forward.11} parent=0 // pred_check
    _
  $region23: #{discriminator_forward.11} parent=0 // pred_check_branch
    %225 = sbr.rel (0) target = $region25
  $region24: #{discriminator_forward.11} parent=0 // pred_region
    _
  $region25: #{discriminator_forward.11} parent=0 // pred_fallthru
    _
  // Predicated region
  $region26: #{discriminator_forward.11} parent=0 // pred_check
    _
  $region27: #{discriminator_forward.11} parent=0 // pred_check_branch
    %227 = sbr.rel (0) target = $region29
  $region28: #{discriminator_forward.11} parent=0 // pred_region
    _
  $region29: #{discriminator_forward.11} parent=0 // pred_fallthru
    _

</llo_original>
